<compile_context>
chip_gen: v7x
topology: tpu7x:2x2x1
jax: 0.10.0
libtpu: 0.0.40
codegen_flags: <defaults>
</compile_context>

<pallas_src>
import numpy as np
import jax
import jax.numpy as jnp
from jax.experimental import pallas as pl
from jax.experimental.pallas import tpu as pltpu

# -----------------------------------------------------------------------------
# Geometry constants (16x16 input images).
# -----------------------------------------------------------------------------
H = W = 16
G16, G8, G4 = 18, 10, 6        # padded grid side length at 16x16 / 8x8 / 4x4
B16, B8, B4 = 384, 128, 64     # per-image flattened block sizes (lane friendly)

assert B16 % 128 == 0 and B8 % 128 == 0
assert B16 >= G16 * G16 and B8 >= G8 * G8 and B4 >= G4 * G4
# interior conv outputs never read a wrapped (rolled) lane:
assert (G16 - 2) * G16 + (G16 - 2) + (G16 + 1) < G16 * G16
assert (G8 - 2) * G8 + (G8 - 2) + (G8 + 1) < G8 * G8


# -----------------------------------------------------------------------------
# Kernel (built once per parameter packing; offsets are static Python ints).
# -----------------------------------------------------------------------------
def _make_kernel(offs):
    def pload(p_ref, name):
        r0, rr, cc = offs[name]
        return p_ref[r0:r0 + rr, 0:cc]

    def shifted(x, s):
        # T[:, q] = x[:, q + s]; circular, but wrapped lanes only ever land on
        # pad/tail positions which are masked or never read by interior outputs.
        if s == 0:
            return x
        return pltpu.roll(x, shift=(-s) % x.shape[-1], axis=1)

    def conv3x3(x, w, g):
        # One fused MXU matmul per layer: [Cout, 9*Cin] @ [9*Cin, L].
        taps = [shifted(x, (t // 3 - 1) * g + (t % 3 - 1)) for t in range(9)]
        col = jnp.concatenate(taps, axis=0)
        return jnp.dot(w, col, preferred_element_type=jnp.float32)

    def kernel(x_ref, p_ref, d16to8, d8to4, u4to8, u8to16, out_ref, xpad):
        relu = lambda v: jnp.maximum(v, 0.0)
        f32 = jnp.float32

        # ---- in-kernel pad: (2, 256) image -> zeroed (2, B16) padded 18x18 grid
        xpad[...] = jnp.zeros_like(xpad)
        for r in range(H):
            xpad[:, G16 * (r + 1) + 1: G16 * (r + 1) + 1 + W] = \
                x_ref[0, :, W * r: W * (r + 1)]
        x = xpad[...]                                                    # (2, B16)

        # hoist the mask broadcast once (JAX does not CSE broadcast_in_dim)
        m8 = jnp.broadcast_to(pload(p_ref, "mask8"), (16, B8))

        # ---------------- encoder ----------------
        a = conv3x3(x, pload(p_ref, "we0"), G16)                         # (16, B16)
        a = jnp.dot(a, d16to8[...], preferred_element_type=f32)          # stride-2 sample
        a = relu(a + pload(p_ref, "bp0"))                                # masked bias plane

        a = relu(conv3x3(a, pload(p_ref, "we1"), G8) + pload(p_ref, "be1")) * m8
        a = relu(conv3x3(a, pload(p_ref, "we2"), G8) + pload(p_ref, "be2")) * m8

        a = conv3x3(a, pload(p_ref, "we3"), G8)                          # (BC, B8)
        a = jnp.dot(a, d8to4[...], preferred_element_type=f32)           # stride-2 sample
        a = relu(a + pload(p_ref, "bp3"))                                # (BC, B4)

        # ---------------- decoder ----------------
        a = jnp.dot(a, u4to8[...], preferred_element_type=f32)           # dilate + pad
        a = relu(conv3x3(a, pload(p_ref, "wd0"), G8) + pload(p_ref, "bd0")) * m8
        a = relu(conv3x3(a, pload(p_ref, "wd1"), G8) + pload(p_ref, "bd1")) * m8
        a = relu(conv3x3(a, pload(p_ref, "wd2"), G8) + pload(p_ref, "bd2")) * m8

        a = jnp.dot(a, u8to16[...], preferred_element_type=f32)          # dilate + pad
        y = jnp.tanh(conv3x3(a, pload(p_ref, "wd3"), G16) + pload(p_ref, "bd3"))

        # ---- in-kernel crop: interior 16x16 of the padded grid -> (2, 256)
        for r in range(H):
            out_ref[0, :, W * r: W * (r + 1)] = \
                y[:, G16 * (r + 1) + 1: G16 * (r + 1) + 1 + W]

    return kernel


# -----------------------------------------------------------------------------
# Parameter init (PyTorch layouts) and one-time host-side packing.
# -----------------------------------------------------------------------------
def init_params(key, bottleneck_channels):
    """Raw parameters: Conv2d (Cout,Cin,3,3); ConvTranspose2d (Cin,Cout,3,3)."""
    bc = bottleneck_channels
    specs = {
        "enc0_w": (16, 2, 3, 3), "enc0_b": (16,),
        "enc1_w": (16, 16, 3, 3), "enc1_b": (16,),
        "enc2_w": (16, 16, 3, 3), "enc2_b": (16,),
        "enc3_w": (bc, 16, 3, 3), "enc3_b": (bc,),
        "dec0_w": (bc, 16, 3, 3), "dec0_b": (16,),
        "dec1_w": (16, 16, 3, 3), "dec1_b": (16,),
        "dec2_w": (16, 16, 3, 3), "dec2_b": (16,),
        "dec3_w": (16, 2, 3, 3), "dec3_b": (2,),
    }
    params = {}
    keys = jax.random.split(key, len(specs))
    for (name, shape), k in zip(specs.items(), keys):
        if name.endswith("_w"):
            fan_in = shape[1] * shape[2] * shape[3]
            params[name] = (jax.random.normal(k, shape, jnp.float32)
                            * (1.0 / jnp.sqrt(fan_in)))
        else:
            params[name] = jax.random.normal(k, shape, jnp.float32) * 0.01
    return params


def prepare_params(raw):
    """One-time host-side packing (inference-only; not traceable/differentiable):
    tap-fused [Cout, 9*Cin] weights (ConvTranspose2d converted to its equivalent
    forward conv), masked bias planes / column biases and interior masks packed
    into ONE buffer, plus per-image 0/1 stride-2 resampling matrices."""
    bc = int(np.asarray(raw["enc3_b"]).shape[0])

    def tap_pack(w_conv):            # (Cout,Cin,3,3) -> (Cout, 9*Cin), K = t*Cin + ci
        co, ci = w_conv.shape[0], w_conv.shape[1]
        return np.transpose(w_conv, (0, 2, 3, 1)).reshape(co, 9 * ci).astype(np.float32)

    def convT_to_conv(w_t):          # (Cin,Cout,3,3) -> equivalent forward conv
        wt = np.asarray(w_t, np.float32)
        return np.transpose(wt[:, :, ::-1, ::-1], (1, 0, 2, 3)).copy()

    # interior masks of the padded 10x10 / 6x6 grids
    mask8 = np.zeros((1, B8), np.float32)
    mask4 = np.zeros((1, B4), np.float32)
    for i in range(8):
        for j in range(8):
            mask8[0, (i + 1) * G8 + (j + 1)] = 1.0
    for i in range(4):
        for j in range(4):
            mask4[0, (i + 1) * G4 + (j + 1)] = 1.0

    col = lambda b: np.asarray(b, np.float32).reshape(-1, 1)

    entries = [
        ("we0", tap_pack(np.asarray(raw["enc0_w"], np.float32))),
        ("we1", tap_pack(np.asarray(raw["enc1_w"], np.float32))),
        ("we2", tap_pack(np.asarray(raw["enc2_w"], np.float32))),
        ("we3", tap_pack(np.asarray(raw["enc3_w"], np.float32))),
        ("wd0", tap_pack(convT_to_conv(raw["dec0_w"]))),
        ("wd1", tap_pack(convT_to_conv(raw["dec1_w"]))),
        ("wd2", tap_pack(convT_to_conv(raw["dec2_w"]))),
        ("wd3", tap_pack(convT_to_conv(raw["dec3_w"]))),
        ("bp0", col(raw["enc0_b"]) * mask8),   # mask folded into bias (post-resample)
        ("bp3", col(raw["enc3_b"]) * mask4),
        ("be1", col(raw["enc1_b"])),
        ("be2", col(raw["enc2_b"])),
        ("bd0", col(raw["dec0_b"])),
        ("bd1", col(raw["dec1_b"])),
        ("bd2", col(raw["dec2_b"])),
        ("bd3", col(raw["dec3_b"])),
        ("mask8", mask8),
        ("mask4", mask4),
    ]

    width = max(a.shape[1] for _, a in entries)        # 144
    offs, row = {}, 0
    for name, a in entries:
        offs[name] = (row, a.shape[0], a.shape[1])
        row += ((a.shape[0] + 7) // 8) * 8              # 8-aligned row blocks
    buf = np.zeros((row, width), np.float32)
    for name, a in entries:
        r0, rr, cc = offs[name]
        buf[r0:r0 + rr, :cc] = a

    # per-image 0/1 stride-2 resampling matrices
    d16to8 = np.zeros((B16, B8), np.float32)
    u8to16 = np.zeros((B8, B16), np.float32)
    d8to4 = np.zeros((B8, B4), np.float32)
    u4to8 = np.zeros((B4, B8), np.float32)
    for i in range(8):
        for j in range(8):
            p16 = (2 * i + 1) * G16 + (2 * j + 1)
            p8 = (i + 1) * G8 + (j + 1)
            d16to8[p16, p8] = 1.0     # stride-2 conv: sample full-res conv at (2i,2j)
            u8to16[p8, p16] = 1.0     # convT s2: place x[i,j] on dilated+padded grid
    for i in range(4):
        for j in range(4):
            p8 = (2 * i + 1) * G8 + (2 * j + 1)
            p4 = (i + 1) * G4 + (j + 1)
            d8to4[p8, p4] = 1.0
            u4to8[p4, p8] = 1.0

    return {
        "bc": bc, "offs": offs,
        "P": jnp.asarray(buf),
        "d16to8": jnp.asarray(d16to8), "d8to4": jnp.asarray(d8to4),
        "u4to8": jnp.asarray(u4to8), "u8to16": jnp.asarray(u8to16),
    }


# -----------------------------------------------------------------------------
# Forward (squeeze0 + ComplexToChannels ... ChannelsToComplex + unsqueeze0).
# -----------------------------------------------------------------------------
def make_forward(prep):
    offs = prep["offs"]
    kernel = _make_kernel(offs)
    arrays = (prep["P"], prep["d16to8"], prep["d8to4"], prep["u4to8"], prep["u8to16"])

    def fused(xf, P, d16to8, d8to4, u4to8, u8to16):
        n = xf.shape[0]
        return pl.pallas_call(
            kernel,
            out_shape=jax.ShapeDtypeStruct((n, 2, H * W), jnp.float32),
            grid=(n,),
            in_specs=[
                pl.BlockSpec((1, 2, H * W), lambda i: (i, 0, 0)),   # per-image input
                pl.BlockSpec(P.shape, lambda i: (0, 0)),            # packed params (1 DMA)
                pl.BlockSpec(d16to8.shape, lambda i: (0, 0)),
                pl.BlockSpec(d8to4.shape, lambda i: (0, 0)),
                pl.BlockSpec(u4to8.shape, lambda i: (0, 0)),
                pl.BlockSpec(u8to16.shape, lambda i: (0, 0)),
            ],
            out_specs=pl.BlockSpec((1, 2, H * W), lambda i: (i, 0, 0)),
            scratch_shapes=[pltpu.VMEM((2, B16), jnp.float32)],      # padded-input scratch
            compiler_params=pltpu.CompilerParams(
                dimension_semantics=("parallel",)),
        )(xf, P, d16to8, d8to4, u4to8, u8to16)

    @jax.jit
    def forward(x_complex, P, d16to8, d8to4, u4to8, u8to16):
        # TODO(synk): complex dtype unsupported in Mosaic -> real/imag split &
        # recombine stay as (tiny) XLA ops; all padding/cropping is in-kernel.
        xs = jnp.squeeze(x_complex, axis=0)                          # (N, 16, 16) c64
        xr = jnp.stack((jnp.real(xs), jnp.imag(xs)), axis=1)         # (N, 2, 16, 16) f32
        xf = xr.astype(jnp.float32).reshape(xr.shape[0], 2, H * W)   # (N, 2, 256)
        yf = fused(xf, P, d16to8, d8to4, u4to8, u8to16)              # (N, 2, 256)
        y = yf.reshape(yf.shape[0], 2, H, W)
        return jax.lax.complex(y[:, 0], y[:, 1])[None]               # (1, N, 16, 16)

    return lambda x: forward(x, *arrays)


if __name__ == "__main__":
    key = jax.random.PRNGKey(0)
    k_params, k_re, k_im = jax.random.split(key, 3)

    BOTTLENECK = 4
    N = 2

    raw_params = init_params(k_params, BOTTLENECK)
    prep = prepare_params(raw_params)

    x_re = jax.random.normal(k_re, (1, N, H, W), jnp.float32)
    x_im = jax.random.normal(k_im, (1, N, H, W), jnp.float32)
    x = jax.lax.complex(x_re, x_im)

    fwd = make_forward(prep)
    y = jax.block_until_ready(fwd(x))

    assert y.shape == (1, N, H, W), y.shape
    assert y.dtype == jnp.complex64, y.dtype
    assert bool(jnp.all(jnp.isfinite(jnp.abs(y)))), "non-finite output"
    print("KERNEL_OK")
</pallas_src>

<mosaic_0001>
module attributes {stable_mosaic.version = 11 : i64} {
  func.func @kernel(%arg0: i32, %arg1: memref<1x2x256xf32, #tpu.memory_space<vmem>>, %arg2: memref<240x144xf32, #tpu.memory_space<vmem>>, %arg3: memref<384x128xf32, #tpu.memory_space<vmem>>, %arg4: memref<128x64xf32, #tpu.memory_space<vmem>>, %arg5: memref<64x128xf32, #tpu.memory_space<vmem>>, %arg6: memref<128x384xf32, #tpu.memory_space<vmem>>, %arg7: memref<1x2x256xf32, #tpu.memory_space<vmem>>, %arg8: memref<2x384xf32, #tpu.memory_space<vmem>>) attributes {dimension_semantics = [#tpu.dimension_semantics<parallel>], iteration_bounds = array<i64: 2>, scalar_prefetch = 0 : i64, scratch_operands = 1 : i64, tpu.core_type = #tpu.core_type<tc>, window_params = [{transform_indices = @transform_0, window_bounds = array<i64: 1, 2, 256>}, {pipeline_mode = #tpu.pipeline_mode<synchronous>, transform_indices = @transform_1, window_bounds = array<i64: 240, 144>}, {pipeline_mode = #tpu.pipeline_mode<synchronous>, transform_indices = @transform_2, window_bounds = array<i64: 384, 128>}, {pipeline_mode = #tpu.pipeline_mode<synchronous>, transform_indices = @transform_3, window_bounds = array<i64: 128, 64>}, {pipeline_mode = #tpu.pipeline_mode<synchronous>, transform_indices = @transform_4, window_bounds = array<i64: 64, 128>}, {pipeline_mode = #tpu.pipeline_mode<synchronous>, transform_indices = @transform_5, window_bounds = array<i64: 128, 384>}, {transform_indices = @transform_6, window_bounds = array<i64: 1, 2, 256>}]} {
    %cst = arith.constant 0.000000e+00 : f32
    %0 = vector.broadcast %cst : f32 to vector<2x384xf32>
    %c0 = arith.constant 0 : index
    %c0_0 = arith.constant 0 : index
    %1 = vector.load %arg8[%c0, %c0_0] : memref<2x384xf32, #tpu.memory_space<vmem>>, vector<2x384xf32>
    tpu.vector_store %arg8[%c0, %c0_0], %0 {strides = array<i32>} : memref<2x384xf32, #tpu.memory_space<vmem>>, vector<2x384xf32>,
    %c0_1 = arith.constant 0 : index
    %c0_2 = arith.constant 0 : index
    %c0_3 = arith.constant 0 : index
    %2 = vector.load %arg1[%c0_1, %c0_2, %c0_3] : memref<1x2x256xf32, #tpu.memory_space<vmem>>, vector<1x2x16xf32>
    %3 = vector.shape_cast %2 : vector<1x2x16xf32> to vector<2x16xf32>
    %c0_4 = arith.constant 0 : index
    %c19 = arith.constant 19 : index
    %4 = vector.load %arg8[%c0_4, %c19] : memref<2x384xf32, #tpu.memory_space<vmem>>, vector<2x16xf32>
    tpu.vector_store %arg8[%c0_4, %c19], %3 {strides = array<i32>} : memref<2x384xf32, #tpu.memory_space<vmem>>, vector<2x16xf32>,
    %c0_5 = arith.constant 0 : index
    %c0_6 = arith.constant 0 : index
    %c16 = arith.constant 16 : index
    %5 = vector.load %arg1[%c0_5, %c0_6, %c16] : memref<1x2x256xf32, #tpu.memory_space<vmem>>, vector<1x2x16xf32>
    %6 = vector.shape_cast %5 : vector<1x2x16xf32> to vector<2x16xf32>
    %c0_7 = arith.constant 0 : index
    %c37 = arith.constant 37 : index
    %7 = vector.load %arg8[%c0_7, %c37] : memref<2x384xf32, #tpu.memory_space<vmem>>, vector<2x16xf32>
    tpu.vector_store %arg8[%c0_7, %c37], %6 {strides = array<i32>} : memref<2x384xf32, #tpu.memory_space<vmem>>, vector<2x16xf32>,
    %c0_8 = arith.constant 0 : index
    %c0_9 = arith.constant 0 : index
    %c32 = arith.constant 32 : index
    %8 = vector.load %arg1[%c0_8, %c0_9, %c32] : memref<1x2x256xf32, #tpu.memory_space<vmem>>, vector<1x2x16xf32>
    %9 = vector.shape_cast %8 : vector<1x2x16xf32> to vector<2x16xf32>
    %c0_10 = arith.constant 0 : index
    %c55 = arith.constant 55 : index
    %10 = vector.load %arg8[%c0_10, %c55] : memref<2x384xf32, #tpu.memory_space<vmem>>, vector<2x16xf32>
    tpu.vector_store %arg8[%c0_10, %c55], %9 {strides = array<i32>} : memref<2x384xf32, #tpu.memory_space<vmem>>, vector<2x16xf32>,
    %c0_11 = arith.constant 0 : index
    %c0_12 = arith.constant 0 : index
    %c48 = arith.constant 48 : index
    %11 = vector.load %arg1[%c0_11, %c0_12, %c48] : memref<1x2x256xf32, #tpu.memory_space<vmem>>, vector<1x2x16xf32>
    %12 = vector.shape_cast %11 : vector<1x2x16xf32> to vector<2x16xf32>
    %c0_13 = arith.constant 0 : index
    %c73 = arith.constant 73 : index
    %13 = vector.load %arg8[%c0_13, %c73] : memref<2x384xf32, #tpu.memory_space<vmem>>, vector<2x16xf32>
    tpu.vector_store %arg8[%c0_13, %c73], %12 {strides = array<i32>} : memref<2x384xf32, #tpu.memory_space<vmem>>, vector<2x16xf32>,
    %c0_14 = arith.constant 0 : index
    %c0_15 = arith.constant 0 : index
    %c64 = arith.constant 64 : index
    %14 = vector.load %arg1[%c0_14, %c0_15, %c64] : memref<1x2x256xf32, #tpu.memory_space<vmem>>, vector<1x2x16xf32>
    %15 = vector.shape_cast %14 : vector<1x2x16xf32> to vector<2x16xf32>
    %c0_16 = arith.constant 0 : index
    %c91 = arith.constant 91 : index
    %16 = vector.load %arg8[%c0_16, %c91] : memref<2x384xf32, #tpu.memory_space<vmem>>, vector<2x16xf32>
    tpu.vector_store %arg8[%c0_16, %c91], %15 {strides = array<i32>} : memref<2x384xf32, #tpu.memory_space<vmem>>, vector<2x16xf32>,
    %c0_17 = arith.constant 0 : index
    %c0_18 = arith.constant 0 : index
    %c80 = arith.constant 80 : index
    %17 = vector.load %arg1[%c0_17, %c0_18, %c80] : memref<1x2x256xf32, #tpu.memory_space<vmem>>, vector<1x2x16xf32>
    %18 = vector.shape_cast %17 : vector<1x2x16xf32> to vector<2x16xf32>
    %c0_19 = arith.constant 0 : index
    %c109 = arith.constant 109 : index
    %19 = vector.load %arg8[%c0_19, %c109] : memref<2x384xf32, #tpu.memory_space<vmem>>, vector<2x16xf32>
    tpu.vector_store %arg8[%c0_19, %c109], %18 {strides = array<i32>} : memref<2x384xf32, #tpu.memory_space<vmem>>, vector<2x16xf32>,
    %c0_20 = arith.constant 0 : index
    %c0_21 = arith.constant 0 : index
    %c96 = arith.constant 96 : index
    %20 = vector.load %arg1[%c0_20, %c0_21, %c96] : memref<1x2x256xf32, #tpu.memory_space<vmem>>, vector<1x2x16xf32>
    %21 = vector.shape_cast %20 : vector<1x2x16xf32> to vector<2x16xf32>
    %c0_22 = arith.constant 0 : index
    %c127 = arith.constant 127 : index
    %22 = vector.load %arg8[%c0_22, %c127] : memref<2x384xf32, #tpu.memory_space<vmem>>, vector<2x16xf32>
    tpu.vector_store %arg8[%c0_22, %c127], %21 {strides = array<i32>} : memref<2x384xf32, #tpu.memory_space<vmem>>, vector<2x16xf32>,
    %c0_23 = arith.constant 0 : index
    %c0_24 = arith.constant 0 : index
    %c112 = arith.constant 112 : index
    %23 = vector.load %arg1[%c0_23, %c0_24, %c112] : memref<1x2x256xf32, #tpu.memory_space<vmem>>, vector<1x2x16xf32>
    %24 = vector.shape_cast %23 : vector<1x2x16xf32> to vector<2x16xf32>
    %c0_25 = arith.constant 0 : index
    %c145 = arith.constant 145 : index
    %25 = vector.load %arg8[%c0_25, %c145] : memref<2x384xf32, #tpu.memory_space<vmem>>, vector<2x16xf32>
    tpu.vector_store %arg8[%c0_25, %c145], %24 {strides = array<i32>} : memref<2x384xf32, #tpu.memory_space<vmem>>, vector<2x16xf32>,
    %c0_26 = arith.constant 0 : index
    %c0_27 = arith.constant 0 : index
    %c128 = arith.constant 128 : index
    %26 = vector.load %arg1[%c0_26, %c0_27, %c128] : memref<1x2x256xf32, #tpu.memory_space<vmem>>, vector<1x2x16xf32>
    %27 = vector.shape_cast %26 : vector<1x2x16xf32> to vector<2x16xf32>
    %c0_28 = arith.constant 0 : index
    %c163 = arith.constant 163 : index
    %28 = vector.load %arg8[%c0_28, %c163] : memref<2x384xf32, #tpu.memory_space<vmem>>, vector<2x16xf32>
    tpu.vector_store %arg8[%c0_28, %c163], %27 {strides = array<i32>} : memref<2x384xf32, #tpu.memory_space<vmem>>, vector<2x16xf32>,
    %c0_29 = arith.constant 0 : index
    %c0_30 = arith.constant 0 : index
    %c144 = arith.constant 144 : index
    %29 = vector.load %arg1[%c0_29, %c0_30, %c144] : memref<1x2x256xf32, #tpu.memory_space<vmem>>, vector<1x2x16xf32>
    %30 = vector.shape_cast %29 : vector<1x2x16xf32> to vector<2x16xf32>
    %c0_31 = arith.constant 0 : index
    %c181 = arith.constant 181 : index
    %31 = vector.load %arg8[%c0_31, %c181] : memref<2x384xf32, #tpu.memory_space<vmem>>, vector<2x16xf32>
    tpu.vector_store %arg8[%c0_31, %c181], %30 {strides = array<i32>} : memref<2x384xf32, #tpu.memory_space<vmem>>, vector<2x16xf32>,
    %c0_32 = arith.constant 0 : index
    %c0_33 = arith.constant 0 : index
    %c160 = arith.constant 160 : index
    %32 = vector.load %arg1[%c0_32, %c0_33, %c160] : memref<1x2x256xf32, #tpu.memory_space<vmem>>, vector<1x2x16xf32>
    %33 = vector.shape_cast %32 : vector<1x2x16xf32> to vector<2x16xf32>
    %c0_34 = arith.constant 0 : index
    %c199 = arith.constant 199 : index
    %34 = vector.load %arg8[%c0_34, %c199] : memref<2x384xf32, #tpu.memory_space<vmem>>, vector<2x16xf32>
    tpu.vector_store %arg8[%c0_34, %c199], %33 {strides = array<i32>} : memref<2x384xf32, #tpu.memory_space<vmem>>, vector<2x16xf32>,
    %c0_35 = arith.constant 0 : index
    %c0_36 = arith.constant 0 : index
    %c176 = arith.constant 176 : index
    %35 = vector.load %arg1[%c0_35, %c0_36, %c176] : memref<1x2x256xf32, #tpu.memory_space<vmem>>, vector<1x2x16xf32>
    %36 = vector.shape_cast %35 : vector<1x2x16xf32> to vector<2x16xf32>
    %c0_37 = arith.constant 0 : index
    %c217 = arith.constant 217 : index
    %37 = vector.load %arg8[%c0_37, %c217] : memref<2x384xf32, #tpu.memory_space<vmem>>, vector<2x16xf32>
    tpu.vector_store %arg8[%c0_37, %c217], %36 {strides = array<i32>} : memref<2x384xf32, #tpu.memory_space<vmem>>, vector<2x16xf32>,
    %c0_38 = arith.constant 0 : index
    %c0_39 = arith.constant 0 : index
    %c192 = arith.constant 192 : index
    %38 = vector.load %arg1[%c0_38, %c0_39, %c192] : memref<1x2x256xf32, #tpu.memory_space<vmem>>, vector<1x2x16xf32>
    %39 = vector.shape_cast %38 : vector<1x2x16xf32> to vector<2x16xf32>
    %c0_40 = arith.constant 0 : index
    %c235 = arith.constant 235 : index
    %40 = vector.load %arg8[%c0_40, %c235] : memref<2x384xf32, #tpu.memory_space<vmem>>, vector<2x16xf32>
    tpu.vector_store %arg8[%c0_40, %c235], %39 {strides = array<i32>} : memref<2x384xf32, #tpu.memory_space<vmem>>, vector<2x16xf32>,
    %c0_41 = arith.constant 0 : index
    %c0_42 = arith.constant 0 : index
    %c208 = arith.constant 208 : index
    %41 = vector.load %arg1[%c0_41, %c0_42, %c208] : memref<1x2x256xf32, #tpu.memory_space<vmem>>, vector<1x2x16xf32>
    %42 = vector.shape_cast %41 : vector<1x2x16xf32> to vector<2x16xf32>
    %c0_43 = arith.constant 0 : index
    %c253 = arith.constant 253 : index
    %43 = vector.load %arg8[%c0_43, %c253] : memref<2x384xf32, #tpu.memory_space<vmem>>, vector<2x16xf32>
    tpu.vector_store %arg8[%c0_43, %c253], %42 {strides = array<i32>} : memref<2x384xf32, #tpu.memory_space<vmem>>, vector<2x16xf32>,
    %c0_44 = arith.constant 0 : index
    %c0_45 = arith.constant 0 : index
    %c224 = arith.constant 224 : index
    %44 = vector.load %arg1[%c0_44, %c0_45, %c224] : memref<1x2x256xf32, #tpu.memory_space<vmem>>, vector<1x2x16xf32>
    %45 = vector.shape_cast %44 : vector<1x2x16xf32> to vector<2x16xf32>
    %c0_46 = arith.constant 0 : index
    %c271 = arith.constant 271 : index
    %46 = vector.load %arg8[%c0_46, %c271] : memref<2x384xf32, #tpu.memory_space<vmem>>, vector<2x16xf32>
    tpu.vector_store %arg8[%c0_46, %c271], %45 {strides = array<i32>} : memref<2x384xf32, #tpu.memory_space<vmem>>, vector<2x16xf32>,
    %c0_47 = arith.constant 0 : index
    %c0_48 = arith.constant 0 : index
    %c240 = arith.constant 240 : index
    %47 = vector.load %arg1[%c0_47, %c0_48, %c240] : memref<1x2x256xf32, #tpu.memory_space<vmem>>, vector<1x2x16xf32>
    %48 = vector.shape_cast %47 : vector<1x2x16xf32> to vector<2x16xf32>
    %c0_49 = arith.constant 0 : index
    %c289 = arith.constant 289 : index
    %49 = vector.load %arg8[%c0_49, %c289] : memref<2x384xf32, #tpu.memory_space<vmem>>, vector<2x16xf32>
    tpu.vector_store %arg8[%c0_49, %c289], %48 {strides = array<i32>} : memref<2x384xf32, #tpu.memory_space<vmem>>, vector<2x16xf32>,
    %c0_50 = arith.constant 0 : index
    %c0_51 = arith.constant 0 : index
    %50 = vector.load %arg8[%c0_50, %c0_51] : memref<2x384xf32, #tpu.memory_space<vmem>>, vector<2x384xf32>
    %c224_52 = arith.constant 224 : index
    %c0_53 = arith.constant 0 : index
    %51 = vector.load %arg2[%c224_52, %c0_53] : memref<240x144xf32, #tpu.memory_space<vmem>>, vector<1x128xf32>
    %52 = vector.shape_cast %51 : vector<1x128xf32> to vector<1x128xf32>
    %53 = vector.broadcast %52 : vector<1x128xf32> to vector<16x128xf32>
    %c0_54 = arith.constant 0 : index
    %c0_55 = arith.constant 0 : index
    %54 = vector.load %arg2[%c0_54, %c0_55] : memref<240x144xf32, #tpu.memory_space<vmem>>, vector<16x18xf32>
    %c19_i32 = arith.constant 19 : i32
    %55 = tpu.dynamic_rotate %50 by %c19_i32 dim 1 : vector<2x384xf32>, i32 -> vector<2x384xf32>
    %c18_i32 = arith.constant 18 : i32
    %56 = tpu.dynamic_rotate %50 by %c18_i32 dim 1 : vector<2x384xf32>, i32 -> vector<2x384xf32>
    %c17_i32 = arith.constant 17 : i32
    %57 = tpu.dynamic_rotate %50 by %c17_i32 dim 1 : vector<2x384xf32>, i32 -> vector<2x384xf32>
    %c1_i32 = arith.constant 1 : i32
    %58 = tpu.dynamic_rotate %50 by %c1_i32 dim 1 : vector<2x384xf32>, i32 -> vector<2x384xf32>
    %c383_i32 = arith.constant 383 : i32
    %59 = tpu.dynamic_rotate %50 by %c383_i32 dim 1 : vector<2x384xf32>, i32 -> vector<2x384xf32>
    %c367_i32 = arith.constant 367 : i32
    %60 = tpu.dynamic_rotate %50 by %c367_i32 dim 1 : vector<2x384xf32>, i32 -> vector<2x384xf32>
    %c366_i32 = arith.constant 366 : i32
    %61 = tpu.dynamic_rotate %50 by %c366_i32 dim 1 : vector<2x384xf32>, i32 -> vector<2x384xf32>
    %c365_i32 = arith.constant 365 : i32
    %62 = tpu.dynamic_rotate %50 by %c365_i32 dim 1 : vector<2x384xf32>, i32 -> vector<2x384xf32>
    %63 = tpu.concatenate %55, %56, %57, %58, %50, %59, %60, %61, %62 in 0 : vector<2x384xf32>, vector<2x384xf32>, vector<2x384xf32>, vector<2x384xf32>, vector<2x384xf32>, vector<2x384xf32>, vector<2x384xf32>, vector<2x384xf32>, vector<2x384xf32> -> vector<18x384xf32>
    %cst_56 = arith.constant dense<0.000000e+00> : vector<16x384xf32>
    %64 = tpu.matmul %54, %63, %cst_56 {dimension_numbers = #tpu.dot_dimension_numbers<[1], [0], [0], [1], [0, 0, 1, 1], [], []>} : vector<16x18xf32>, vector<18x384xf32>, vector<16x384xf32> -> vector<16x384xf32>
    %c0_57 = arith.constant 0 : index
    %c0_58 = arith.constant 0 : index
    %65 = vector.load %arg3[%c0_57, %c0_58] : memref<384x128xf32, #tpu.memory_space<vmem>>, vector<384x128xf32>
    %cst_59 = arith.constant dense<0.000000e+00> : vector<16x128xf32>
    %66 = tpu.matmul %64, %65, %cst_59 {dimension_numbers = #tpu.dot_dimension_numbers<[1], [0], [0], [1], [0, 0, 1, 1], [], []>} : vector<16x384xf32>, vector<384x128xf32>, vector<16x128xf32> -> vector<16x128xf32>
    %c112_60 = arith.constant 112 : index
    %c0_61 = arith.constant 0 : index
    %67 = vector.load %arg2[%c112_60, %c0_61] : memref<240x144xf32, #tpu.memory_space<vmem>>, vector<16x128xf32>
    %68 = arith.addf %66, %67 : vector<16x128xf32>
    %cst_62 = arith.constant 0.000000e+00 : f32
    %69 = vector.broadcast %cst_62 : f32 to vector<16x128xf32>
    %70 = arith.maximumf %68, %69 : vector<16x128xf32>
    %c16_63 = arith.constant 16 : index
    %c0_64 = arith.constant 0 : index
    %71 = vector.load %arg2[%c16_63, %c0_64] : memref<240x144xf32, #tpu.memory_space<vmem>>, vector<16x144xf32>
    %c11_i32 = arith.constant 11 : i32
    %72 = tpu.dynamic_rotate %70 by %c11_i32 dim 1 : vector<16x128xf32>, i32 -> vector<16x128xf32>
    %c10_i32 = arith.constant 10 : i32
    %73 = tpu.dynamic_rotate %70 by %c10_i32 dim 1 : vector<16x128xf32>, i32 -> vector<16x128xf32>
    %c9_i32 = arith.constant 9 : i32
    %74 = tpu.dynamic_rotate %70 by %c9_i32 dim 1 : vector<16x128xf32>, i32 -> vector<16x128xf32>
    %c1_i32_65 = arith.constant 1 : i32
    %75 = tpu.dynamic_rotate %70 by %c1_i32_65 dim 1 : vector<16x128xf32>, i32 -> vector<16x128xf32>
    %c127_i32 = arith.constant 127 : i32
    %76 = tpu.dynamic_rotate %70 by %c127_i32 dim 1 : vector<16x128xf32>, i32 -> vector<16x128xf32>
    %c119_i32 = arith.constant 119 : i32
    %77 = tpu.dynamic_rotate %70 by %c119_i32 dim 1 : vector<16x128xf32>, i32 -> vector<16x128xf32>
    %c118_i32 = arith.constant 118 : i32
    %78 = tpu.dynamic_rotate %70 by %c118_i32 dim 1 : vector<16x128xf32>, i32 -> vector<16x128xf32>
    %c117_i32 = arith.constant 117 : i32
    %79 = tpu.dynamic_rotate %70 by %c117_i32 dim 1 : vector<16x128xf32>, i32 -> vector<16x128xf32>
    %80 = tpu.concatenate %72, %73, %74, %75, %70, %76, %77, %78, %79 in 0 : vector<16x128xf32>, vector<16x128xf32>, vector<16x128xf32>, vector<16x128xf32>, vector<16x128xf32>, vector<16x128xf32>, vector<16x128xf32>, vector<16x128xf32>, vector<16x128xf32> -> vector<144x128xf32>
    %cst_66 = arith.constant dense<0.000000e+00> : vector<16x128xf32>
    %81 = tpu.matmul %71, %80, %cst_66 {dimension_numbers = #tpu.dot_dimension_numbers<[1], [0], [0], [1], [0, 0, 1, 1], [], []>} : vector<16x144xf32>, vector<144x128xf32>, vector<16x128xf32> -> vector<16x128xf32>
    %c136 = arith.constant 136 : index
    %c0_67 = arith.constant 0 : index
    %82 = vector.load %arg2[%c136, %c0_67] : memref<240x144xf32, #tpu.memory_space<vmem>>, vector<16x1xf32>
    %83 = vector.broadcast %82 : vector<16x1xf32> to vector<16x128xf32>
    %84 = arith.addf %81, %83 : vector<16x128xf32>
    %cst_68 = arith.constant 0.000000e+00 : f32
    %85 = vector.broadcast %cst_68 : f32 to vector<16x128xf32>
    %86 = arith.maximumf %84, %85 : vector<16x128xf32>
    %87 = arith.mulf %86, %53 : vector<16x128xf32>
    %c32_69 = arith.constant 32 : index
    %c0_70 = arith.constant 0 : index
    %88 = vector.load %arg2[%c32_69, %c0_70] : memref<240x144xf32, #tpu.memory_space<vmem>>, vector<16x144xf32>
    %c11_i32_71 = arith.constant 11 : i32
    %89 = tpu.dynamic_rotate %87 by %c11_i32_71 dim 1 : vector<16x128xf32>, i32 -> vector<16x128xf32>
    %c10_i32_72 = arith.constant 10 : i32
    %90 = tpu.dynamic_rotate %87 by %c10_i32_72 dim 1 : vector<16x128xf32>, i32 -> vector<16x128xf32>
    %c9_i32_73 = arith.constant 9 : i32
    %91 = tpu.dynamic_rotate %87 by %c9_i32_73 dim 1 : vector<16x128xf32>, i32 -> vector<16x128xf32>
    %c1_i32_74 = arith.constant 1 : i32
    %92 = tpu.dynamic_rotate %87 by %c1_i32_74 dim 1 : vector<16x128xf32>, i32 -> vector<16x128xf32>
    %c127_i32_75 = arith.constant 127 : i32
    %93 = tpu.dynamic_rotate %87 by %c127_i32_75 dim 1 : vector<16x128xf32>, i32 -> vector<16x128xf32>
    %c119_i32_76 = arith.constant 119 : i32
    %94 = tpu.dynamic_rotate %87 by %c119_i32_76 dim 1 : vector<16x128xf32>, i32 -> vector<16x128xf32>
    %c118_i32_77 = arith.constant 118 : i32
    %95 = tpu.dynamic_rotate %87 by %c118_i32_77 dim 1 : vector<16x128xf32>, i32 -> vector<16x128xf32>
    %c117_i32_78 = arith.constant 117 : i32
    %96 = tpu.dynamic_rotate %87 by %c117_i32_78 dim 1 : vector<16x128xf32>, i32 -> vector<16x128xf32>
    %97 = tpu.concatenate %89, %90, %91, %92, %87, %93, %94, %95, %96 in 0 : vector<16x128xf32>, vector<16x128xf32>, vector<16x128xf32>, vector<16x128xf32>, vector<16x128xf32>, vector<16x128xf32>, vector<16x128xf32>, vector<16x128xf32>, vector<16x128xf32> -> vector<144x128xf32>
    %cst_79 = arith.constant dense<0.000000e+00> : vector<16x128xf32>
    %98 = tpu.matmul %88, %97, %cst_79 {dimension_numbers = #tpu.dot_dimension_numbers<[1], [0], [0], [1], [0, 0, 1, 1], [], []>} : vector<16x144xf32>, vector<144x128xf32>, vector<16x128xf32> -> vector<16x128xf32>
    %c152 = arith.constant 152 : index
    %c0_80 = arith.constant 0 : index
    %99 = vector.load %arg2[%c152, %c0_80] : memref<240x144xf32, #tpu.memory_space<vmem>>, vector<16x1xf32>
    %100 = vector.broadcast %99 : vector<16x1xf32> to vector<16x128xf32>
    %101 = arith.addf %98, %100 : vector<16x128xf32>
    %cst_81 = arith.constant 0.000000e+00 : f32
    %102 = vector.broadcast %cst_81 : f32 to vector<16x128xf32>
    %103 = arith.maximumf %101, %102 : vector<16x128xf32>
    %104 = arith.mulf %103, %53 : vector<16x128xf32>
    %c48_82 = arith.constant 48 : index
    %c0_83 = arith.constant 0 : index
    %105 = vector.load %arg2[%c48_82, %c0_83] : memref<240x144xf32, #tpu.memory_space<vmem>>, vector<4x144xf32>
    %c11_i32_84 = arith.constant 11 : i32
    %106 = tpu.dynamic_rotate %104 by %c11_i32_84 dim 1 : vector<16x128xf32>, i32 -> vector<16x128xf32>
    %c10_i32_85 = arith.constant 10 : i32
    %107 = tpu.dynamic_rotate %104 by %c10_i32_85 dim 1 : vector<16x128xf32>, i32 -> vector<16x128xf32>
    %c9_i32_86 = arith.constant 9 : i32
    %108 = tpu.dynamic_rotate %104 by %c9_i32_86 dim 1 : vector<16x128xf32>, i32 -> vector<16x128xf32>
    %c1_i32_87 = arith.constant 1 : i32
    %109 = tpu.dynamic_rotate %104 by %c1_i32_87 dim 1 : vector<16x128xf32>, i32 -> vector<16x128xf32>
    %c127_i32_88 = arith.constant 127 : i32
    %110 = tpu.dynamic_rotate %104 by %c127_i32_88 dim 1 : vector<16x128xf32>, i32 -> vector<16x128xf32>
    %c119_i32_89 = arith.constant 119 : i32
    %111 = tpu.dynamic_rotate %104 by %c119_i32_89 dim 1 : vector<16x128xf32>, i32 -> vector<16x128xf32>
    %c118_i32_90 = arith.constant 118 : i32
    %112 = tpu.dynamic_rotate %104 by %c118_i32_90 dim 1 : vector<16x128xf32>, i32 -> vector<16x128xf32>
    %c117_i32_91 = arith.constant 117 : i32
    %113 = tpu.dynamic_rotate %104 by %c117_i32_91 dim 1 : vector<16x128xf32>, i32 -> vector<16x128xf32>
    %114 = tpu.concatenate %106, %107, %108, %109, %104, %110, %111, %112, %113 in 0 : vector<16x128xf32>, vector<16x128xf32>, vector<16x128xf32>, vector<16x128xf32>, vector<16x128xf32>, vector<16x128xf32>, vector<16x128xf32>, vector<16x128xf32>, vector<16x128xf32> -> vector<144x128xf32>
    %cst_92 = arith.constant dense<0.000000e+00> : vector<4x128xf32>
    %115 = tpu.matmul %105, %114, %cst_92 {dimension_numbers = #tpu.dot_dimension_numbers<[1], [0], [0], [1], [0, 0, 1, 1], [], []>} : vector<4x144xf32>, vector<144x128xf32>, vector<4x128xf32> -> vector<4x128xf32>
    %c0_93 = arith.constant 0 : index
    %c0_94 = arith.constant 0 : index
    %116 = vector.load %arg4[%c0_93, %c0_94] : memref<128x64xf32, #tpu.memory_space<vmem>>, vector<128x64xf32>
    %cst_95 = arith.constant dense<0.000000e+00> : vector<4x64xf32>
    %117 = tpu.matmul %115, %116, %cst_95 {dimension_numbers = #tpu.dot_dimension_numbers<[1], [0], [0], [1], [0, 0, 1, 1], [], []>} : vector<4x128xf32>, vector<128x64xf32>, vector<4x64xf32> -> vector<4x64xf32>
    %c128_96 = arith.constant 128 : index
    %c0_97 = arith.constant 0 : index
    %118 = vector.load %arg2[%c128_96, %c0_97] : memref<240x144xf32, #tpu.memory_space<vmem>>, vector<4x64xf32>
    %119 = arith.addf %117, %118 : vector<4x64xf32>
    %cst_98 = arith.constant 0.000000e+00 : f32
    %120 = vector.broadcast %cst_98 : f32 to vector<4x64xf32>
    %121 = arith.maximumf %119, %120 : vector<4x64xf32>
    %c0_99 = arith.constant 0 : index
    %c0_100 = arith.constant 0 : index
    %122 = vector.load %arg5[%c0_99, %c0_100] : memref<64x128xf32, #tpu.memory_space<vmem>>, vector<64x128xf32>
    %cst_101 = arith.constant dense<0.000000e+00> : vector<4x128xf32>
    %123 = tpu.matmul %121, %122, %cst_101 {dimension_numbers = #tpu.dot_dimension_numbers<[1], [0], [0], [1], [0, 0, 1, 1], [], []>} : vector<4x64xf32>, vector<64x128xf32>, vector<4x128xf32> -> vector<4x128xf32>
    %c56 = arith.constant 56 : index
    %c0_102 = arith.constant 0 : index
    %124 = vector.load %arg2[%c56, %c0_102] : memref<240x144xf32, #tpu.memory_space<vmem>>, vector<16x36xf32>
    %c11_i32_103 = arith.constant 11 : i32
    %125 = tpu.dynamic_rotate %123 by %c11_i32_103 dim 1 : vector<4x128xf32>, i32 -> vector<4x128xf32>
    %c10_i32_104 = arith.constant 10 : i32
    %126 = tpu.dynamic_rotate %123 by %c10_i32_104 dim 1 : vector<4x128xf32>, i32 -> vector<4x128xf32>
    %c9_i32_105 = arith.constant 9 : i32
    %127 = tpu.dynamic_rotate %123 by %c9_i32_105 dim 1 : vector<4x128xf32>, i32 -> vector<4x128xf32>
    %c1_i32_106 = arith.constant 1 : i32
    %128 = tpu.dynamic_rotate %123 by %c1_i32_106 dim 1 : vector<4x128xf32>, i32 -> vector<4x128xf32>
    %c127_i32_107 = arith.constant 127 : i32
    %129 = tpu.dynamic_rotate %123 by %c127_i32_107 dim 1 : vector<4x128xf32>, i32 -> vector<4x128xf32>
    %c119_i32_108 = arith.constant 119 : i32
    %130 = tpu.dynamic_rotate %123 by %c119_i32_108 dim 1 : vector<4x128xf32>, i32 -> vector<4x128xf32>
    %c118_i32_109 = arith.constant 118 : i32
    %131 = tpu.dynamic_rotate %123 by %c118_i32_109 dim 1 : vector<4x128xf32>, i32 -> vector<4x128xf32>
    %c117_i32_110 = arith.constant 117 : i32
    %132 = tpu.dynamic_rotate %123 by %c117_i32_110 dim 1 : vector<4x128xf32>, i32 -> vector<4x128xf32>
    %133 = tpu.concatenate %125, %126, %127, %128, %123, %129, %130, %131, %132 in 0 : vector<4x128xf32>, vector<4x128xf32>, vector<4x128xf32>, vector<4x128xf32>, vector<4x128xf32>, vector<4x128xf32>, vector<4x128xf32>, vector<4x128xf32>, vector<4x128xf32> -> vector<36x128xf32>
    %cst_111 = arith.constant dense<0.000000e+00> : vector<16x128xf32>
    %134 = tpu.matmul %124, %133, %cst_111 {dimension_numbers = #tpu.dot_dimension_numbers<[1], [0], [0], [1], [0, 0, 1, 1], [], []>} : vector<16x36xf32>, vector<36x128xf32>, vector<16x128xf32> -> vector<16x128xf32>
    %c168 = arith.constant 168 : index
    %c0_112 = arith.constant 0 : index
    %135 = vector.load %arg2[%c168, %c0_112] : memref<240x144xf32, #tpu.memory_space<vmem>>, vector<16x1xf32>
    %136 = vector.broadcast %135 : vector<16x1xf32> to vector<16x128xf32>
    %137 = arith.addf %134, %136 : vector<16x128xf32>
    %cst_113 = arith.constant 0.000000e+00 : f32
    %138 = vector.broadcast %cst_113 : f32 to vector<16x128xf32>
    %139 = arith.maximumf %137, %138 : vector<16x128xf32>
    %140 = arith.mulf %139, %53 : vector<16x128xf32>
    %c72 = arith.constant 72 : index
    %c0_114 = arith.constant 0 : index
    %141 = vector.load %arg2[%c72, %c0_114] : memref<240x144xf32, #tpu.memory_space<vmem>>, vector<16x144xf32>
    %c11_i32_115 = arith.constant 11 : i32
    %142 = tpu.dynamic_rotate %140 by %c11_i32_115 dim 1 : vector<16x128xf32>, i32 -> vector<16x128xf32>
    %c10_i32_116 = arith.constant 10 : i32
    %143 = tpu.dynamic_rotate %140 by %c10_i32_116 dim 1 : vector<16x128xf32>, i32 -> vector<16x128xf32>
    %c9_i32_117 = arith.constant 9 : i32
    %144 = tpu.dynamic_rotate %140 by %c9_i32_117 dim 1 : vector<16x128xf32>, i32 -> vector<16x128xf32>
    %c1_i32_118 = arith.constant 1 : i32
    %145 = tpu.dynamic_rotate %140 by %c1_i32_118 dim 1 : vector<16x128xf32>, i32 -> vector<16x128xf32>
    %c127_i32_119 = arith.constant 127 : i32
    %146 = tpu.dynamic_rotate %140 by %c127_i32_119 dim 1 : vector<16x128xf32>, i32 -> vector<16x128xf32>
    %c119_i32_120 = arith.constant 119 : i32
    %147 = tpu.dynamic_rotate %140 by %c119_i32_120 dim 1 : vector<16x128xf32>, i32 -> vector<16x128xf32>
    %c118_i32_121 = arith.constant 118 : i32
    %148 = tpu.dynamic_rotate %140 by %c118_i32_121 dim 1 : vector<16x128xf32>, i32 -> vector<16x128xf32>
    %c117_i32_122 = arith.constant 117 : i32
    %149 = tpu.dynamic_rotate %140 by %c117_i32_122 dim 1 : vector<16x128xf32>, i32 -> vector<16x128xf32>
    %150 = tpu.concatenate %142, %143, %144, %145, %140, %146, %147, %148, %149 in 0 : vector<16x128xf32>, vector<16x128xf32>, vector<16x128xf32>, vector<16x128xf32>, vector<16x128xf32>, vector<16x128xf32>, vector<16x128xf32>, vector<16x128xf32>, vector<16x128xf32> -> vector<144x128xf32>
    %cst_123 = arith.constant dense<0.000000e+00> : vector<16x128xf32>
    %151 = tpu.matmul %141, %150, %cst_123 {dimension_numbers = #tpu.dot_dimension_numbers<[1], [0], [0], [1], [0, 0, 1, 1], [], []>} : vector<16x144xf32>, vector<144x128xf32>, vector<16x128xf32> -> vector<16x128xf32>
    %c184 = arith.constant 184 : index
    %c0_124 = arith.constant 0 : index
    %152 = vector.load %arg2[%c184, %c0_124] : memref<240x144xf32, #tpu.memory_space<vmem>>, vector<16x1xf32>
    %153 = vector.broadcast %152 : vector<16x1xf32> to vector<16x128xf32>
    %154 = arith.addf %151, %153 : vector<16x128xf32>
    %cst_125 = arith.constant 0.000000e+00 : f32
    %155 = vector.broadcast %cst_125 : f32 to vector<16x128xf32>
    %156 = arith.maximumf %154, %155 : vector<16x128xf32>
    %157 = arith.mulf %156, %53 : vector<16x128xf32>
    %c88 = arith.constant 88 : index
    %c0_126 = arith.constant 0 : index
    %158 = vector.load %arg2[%c88, %c0_126] : memref<240x144xf32, #tpu.memory_space<vmem>>, vector<16x144xf32>
    %c11_i32_127 = arith.constant 11 : i32
    %159 = tpu.dynamic_rotate %157 by %c11_i32_127 dim 1 : vector<16x128xf32>, i32 -> vector<16x128xf32>
    %c10_i32_128 = arith.constant 10 : i32
    %160 = tpu.dynamic_rotate %157 by %c10_i32_128 dim 1 : vector<16x128xf32>, i32 -> vector<16x128xf32>
    %c9_i32_129 = arith.constant 9 : i32
    %161 = tpu.dynamic_rotate %157 by %c9_i32_129 dim 1 : vector<16x128xf32>, i32 -> vector<16x128xf32>
    %c1_i32_130 = arith.constant 1 : i32
    %162 = tpu.dynamic_rotate %157 by %c1_i32_130 dim 1 : vector<16x128xf32>, i32 -> vector<16x128xf32>
    %c127_i32_131 = arith.constant 127 : i32
    %163 = tpu.dynamic_rotate %157 by %c127_i32_131 dim 1 : vector<16x128xf32>, i32 -> vector<16x128xf32>
    %c119_i32_132 = arith.constant 119 : i32
    %164 = tpu.dynamic_rotate %157 by %c119_i32_132 dim 1 : vector<16x128xf32>, i32 -> vector<16x128xf32>
    %c118_i32_133 = arith.constant 118 : i32
    %165 = tpu.dynamic_rotate %157 by %c118_i32_133 dim 1 : vector<16x128xf32>, i32 -> vector<16x128xf32>
    %c117_i32_134 = arith.constant 117 : i32
    %166 = tpu.dynamic_rotate %157 by %c117_i32_134 dim 1 : vector<16x128xf32>, i32 -> vector<16x128xf32>
    %167 = tpu.concatenate %159, %160, %161, %162, %157, %163, %164, %165, %166 in 0 : vector<16x128xf32>, vector<16x128xf32>, vector<16x128xf32>, vector<16x128xf32>, vector<16x128xf32>, vector<16x128xf32>, vector<16x128xf32>, vector<16x128xf32>, vector<16x128xf32> -> vector<144x128xf32>
    %cst_135 = arith.constant dense<0.000000e+00> : vector<16x128xf32>
    %168 = tpu.matmul %158, %167, %cst_135 {dimension_numbers = #tpu.dot_dimension_numbers<[1], [0], [0], [1], [0, 0, 1, 1], [], []>} : vector<16x144xf32>, vector<144x128xf32>, vector<16x128xf32> -> vector<16x128xf32>
    %c200 = arith.constant 200 : index
    %c0_136 = arith.constant 0 : index
    %169 = vector.load %arg2[%c200, %c0_136] : memref<240x144xf32, #tpu.memory_space<vmem>>, vector<16x1xf32>
    %170 = vector.broadcast %169 : vector<16x1xf32> to vector<16x128xf32>
    %171 = arith.addf %168, %170 : vector<16x128xf32>
    %cst_137 = arith.constant 0.000000e+00 : f32
    %172 = vector.broadcast %cst_137 : f32 to vector<16x128xf32>
    %173 = arith.maximumf %171, %172 : vector<16x128xf32>
    %174 = arith.mulf %173, %53 : vector<16x128xf32>
    %c0_138 = arith.constant 0 : index
    %c0_139 = arith.constant 0 : index
    %175 = vector.load %arg6[%c0_138, %c0_139] : memref<128x384xf32, #tpu.memory_space<vmem>>, vector<128x384xf32>
    %cst_140 = arith.constant dense<0.000000e+00> : vector<16x384xf32>
    %176 = tpu.matmul %174, %175, %cst_140 {dimension_numbers = #tpu.dot_dimension_numbers<[1], [0], [0], [1], [0, 0, 1, 1], [], []>} : vector<16x128xf32>, vector<128x384xf32>, vector<16x384xf32> -> vector<16x384xf32>
    %c104 = arith.constant 104 : index
    %c0_141 = arith.constant 0 : index
    %177 = vector.load %arg2[%c104, %c0_141] : memref<240x144xf32, #tpu.memory_space<vmem>>, vector<2x144xf32>
    %c19_i32_142 = arith.constant 19 : i32
    %178 = tpu.dynamic_rotate %176 by %c19_i32_142 dim 1 : vector<16x384xf32>, i32 -> vector<16x384xf32>
    %c18_i32_143 = arith.constant 18 : i32
    %179 = tpu.dynamic_rotate %176 by %c18_i32_143 dim 1 : vector<16x384xf32>, i32 -> vector<16x384xf32>
    %c17_i32_144 = arith.constant 17 : i32
    %180 = tpu.dynamic_rotate %176 by %c17_i32_144 dim 1 : vector<16x384xf32>, i32 -> vector<16x384xf32>
    %c1_i32_145 = arith.constant 1 : i32
    %181 = tpu.dynamic_rotate %176 by %c1_i32_145 dim 1 : vector<16x384xf32>, i32 -> vector<16x384xf32>
    %c383_i32_146 = arith.constant 383 : i32
    %182 = tpu.dynamic_rotate %176 by %c383_i32_146 dim 1 : vector<16x384xf32>, i32 -> vector<16x384xf32>
    %c367_i32_147 = arith.constant 367 : i32
    %183 = tpu.dynamic_rotate %176 by %c367_i32_147 dim 1 : vector<16x384xf32>, i32 -> vector<16x384xf32>
    %c366_i32_148 = arith.constant 366 : i32
    %184 = tpu.dynamic_rotate %176 by %c366_i32_148 dim 1 : vector<16x384xf32>, i32 -> vector<16x384xf32>
    %c365_i32_149 = arith.constant 365 : i32
    %185 = tpu.dynamic_rotate %176 by %c365_i32_149 dim 1 : vector<16x384xf32>, i32 -> vector<16x384xf32>
    %186 = tpu.concatenate %178, %179, %180, %181, %176, %182, %183, %184, %185 in 0 : vector<16x384xf32>, vector<16x384xf32>, vector<16x384xf32>, vector<16x384xf32>, vector<16x384xf32>, vector<16x384xf32>, vector<16x384xf32>, vector<16x384xf32>, vector<16x384xf32> -> vector<144x384xf32>
    %cst_150 = arith.constant dense<0.000000e+00> : vector<2x384xf32>
    %187 = tpu.matmul %177, %186, %cst_150 {dimension_numbers = #tpu.dot_dimension_numbers<[1], [0], [0], [1], [0, 0, 1, 1], [], []>} : vector<2x144xf32>, vector<144x384xf32>, vector<2x384xf32> -> vector<2x384xf32>
    %c216 = arith.constant 216 : index
    %c0_151 = arith.constant 0 : index
    %188 = vector.load %arg2[%c216, %c0_151] : memref<240x144xf32, #tpu.memory_space<vmem>>, vector<2x1xf32>
    %189 = vector.broadcast %188 : vector<2x1xf32> to vector<2x384xf32>
    %190 = arith.addf %187, %189 : vector<2x384xf32>
    %191 = math.tanh %190 : vector<2x384xf32>
    %192 = vector.extract_strided_slice %191 {offsets = [0, 19], sizes = [2, 16], strides = [1, 1]} : vector<2x384xf32> to vector<2x16xf32>
    %c0_152 = arith.constant 0 : index
    %c0_153 = arith.constant 0 : index
    %c0_154 = arith.constant 0 : index
    %193 = vector.load %arg7[%c0_152, %c0_153, %c0_154] : memref<1x2x256xf32, #tpu.memory_space<vmem>>, vector<1x2x16xf32>
    %194 = vector.shape_cast %193 : vector<1x2x16xf32> to vector<2x16xf32>
    %195 = vector.shape_cast %192 : vector<2x16xf32> to vector<1x2x16xf32>
    tpu.vector_store %arg7[%c0_152, %c0_153, %c0_154], %195 {strides = array<i32>} : memref<1x2x256xf32, #tpu.memory_space<vmem>>, vector<1x2x16xf32>,
    %196 = vector.extract_strided_slice %191 {offsets = [0, 37], sizes = [2, 16], strides = [1, 1]} : vector<2x384xf32> to vector<2x16xf32>
    %c0_155 = arith.constant 0 : index
    %c0_156 = arith.constant 0 : index
    %c16_157 = arith.constant 16 : index
    %197 = vector.load %arg7[%c0_155, %c0_156, %c16_157] : memref<1x2x256xf32, #tpu.memory_space<vmem>>, vector<1x2x16xf32>
    %198 = vector.shape_cast %197 : vector<1x2x16xf32> to vector<2x16xf32>
    %199 = vector.shape_cast %196 : vector<2x16xf32> to vector<1x2x16xf32>
    tpu.vector_store %arg7[%c0_155, %c0_156, %c16_157], %199 {strides = array<i32>} : memref<1x2x256xf32, #tpu.memory_space<vmem>>, vector<1x2x16xf32>,
    %200 = vector.extract_strided_slice %191 {offsets = [0, 55], sizes = [2, 16], strides = [1, 1]} : vector<2x384xf32> to vector<2x16xf32>
    %c0_158 = arith.constant 0 : index
    %c0_159 = arith.constant 0 : index
    %c32_160 = arith.constant 32 : index
    %201 = vector.load %arg7[%c0_158, %c0_159, %c32_160] : memref<1x2x256xf32, #tpu.memory_space<vmem>>, vector<1x2x16xf32>
    %202 = vector.shape_cast %201 : vector<1x2x16xf32> to vector<2x16xf32>
    %203 = vector.shape_cast %200 : vector<2x16xf32> to vector<1x2x16xf32>
    tpu.vector_store %arg7[%c0_158, %c0_159, %c32_160], %203 {strides = array<i32>} : memref<1x2x256xf32, #tpu.memory_space<vmem>>, vector<1x2x16xf32>,
    %204 = vector.extract_strided_slice %191 {offsets = [0, 73], sizes = [2, 16], strides = [1, 1]} : vector<2x384xf32> to vector<2x16xf32>
    %c0_161 = arith.constant 0 : index
    %c0_162 = arith.constant 0 : index
    %c48_163 = arith.constant 48 : index
    %205 = vector.load %arg7[%c0_161, %c0_162, %c48_163] : memref<1x2x256xf32, #tpu.memory_space<vmem>>, vector<1x2x16xf32>
    %206 = vector.shape_cast %205 : vector<1x2x16xf32> to vector<2x16xf32>
    %207 = vector.shape_cast %204 : vector<2x16xf32> to vector<1x2x16xf32>
    tpu.vector_store %arg7[%c0_161, %c0_162, %c48_163], %207 {strides = array<i32>} : memref<1x2x256xf32, #tpu.memory_space<vmem>>, vector<1x2x16xf32>,
    %208 = vector.extract_strided_slice %191 {offsets = [0, 91], sizes = [2, 16], strides = [1, 1]} : vector<2x384xf32> to vector<2x16xf32>
    %c0_164 = arith.constant 0 : index
    %c0_165 = arith.constant 0 : index
    %c64_166 = arith.constant 64 : index
    %209 = vector.load %arg7[%c0_164, %c0_165, %c64_166] : memref<1x2x256xf32, #tpu.memory_space<vmem>>, vector<1x2x16xf32>
    %210 = vector.shape_cast %209 : vector<1x2x16xf32> to vector<2x16xf32>
    %211 = vector.shape_cast %208 : vector<2x16xf32> to vector<1x2x16xf32>
    tpu.vector_store %arg7[%c0_164, %c0_165, %c64_166], %211 {strides = array<i32>} : memref<1x2x256xf32, #tpu.memory_space<vmem>>, vector<1x2x16xf32>,
    %212 = vector.extract_strided_slice %191 {offsets = [0, 109], sizes = [2, 16], strides = [1, 1]} : vector<2x384xf32> to vector<2x16xf32>
    %c0_167 = arith.constant 0 : index
    %c0_168 = arith.constant 0 : index
    %c80_169 = arith.constant 80 : index
    %213 = vector.load %arg7[%c0_167, %c0_168, %c80_169] : memref<1x2x256xf32, #tpu.memory_space<vmem>>, vector<1x2x16xf32>
    %214 = vector.shape_cast %213 : vector<1x2x16xf32> to vector<2x16xf32>
    %215 = vector.shape_cast %212 : vector<2x16xf32> to vector<1x2x16xf32>
    tpu.vector_store %arg7[%c0_167, %c0_168, %c80_169], %215 {strides = array<i32>} : memref<1x2x256xf32, #tpu.memory_space<vmem>>, vector<1x2x16xf32>,
    %216 = vector.extract_strided_slice %191 {offsets = [0, 127], sizes = [2, 16], strides = [1, 1]} : vector<2x384xf32> to vector<2x16xf32>
    %c0_170 = arith.constant 0 : index
    %c0_171 = arith.constant 0 : index
    %c96_172 = arith.constant 96 : index
    %217 = vector.load %arg7[%c0_170, %c0_171, %c96_172] : memref<1x2x256xf32, #tpu.memory_space<vmem>>, vector<1x2x16xf32>
    %218 = vector.shape_cast %217 : vector<1x2x16xf32> to vector<2x16xf32>
    %219 = vector.shape_cast %216 : vector<2x16xf32> to vector<1x2x16xf32>
    tpu.vector_store %arg7[%c0_170, %c0_171, %c96_172], %219 {strides = array<i32>} : memref<1x2x256xf32, #tpu.memory_space<vmem>>, vector<1x2x16xf32>,
    %220 = vector.extract_strided_slice %191 {offsets = [0, 145], sizes = [2, 16], strides = [1, 1]} : vector<2x384xf32> to vector<2x16xf32>
    %c0_173 = arith.constant 0 : index
    %c0_174 = arith.constant 0 : index
    %c112_175 = arith.constant 112 : index
    %221 = vector.load %arg7[%c0_173, %c0_174, %c112_175] : memref<1x2x256xf32, #tpu.memory_space<vmem>>, vector<1x2x16xf32>
    %222 = vector.shape_cast %221 : vector<1x2x16xf32> to vector<2x16xf32>
    %223 = vector.shape_cast %220 : vector<2x16xf32> to vector<1x2x16xf32>
    tpu.vector_store %arg7[%c0_173, %c0_174, %c112_175], %223 {strides = array<i32>} : memref<1x2x256xf32, #tpu.memory_space<vmem>>, vector<1x2x16xf32>,
    %224 = vector.extract_strided_slice %191 {offsets = [0, 163], sizes = [2, 16], strides = [1, 1]} : vector<2x384xf32> to vector<2x16xf32>
    %c0_176 = arith.constant 0 : index
    %c0_177 = arith.constant 0 : index
    %c128_178 = arith.constant 128 : index
    %225 = vector.load %arg7[%c0_176, %c0_177, %c128_178] : memref<1x2x256xf32, #tpu.memory_space<vmem>>, vector<1x2x16xf32>
    %226 = vector.shape_cast %225 : vector<1x2x16xf32> to vector<2x16xf32>
    %227 = vector.shape_cast %224 : vector<2x16xf32> to vector<1x2x16xf32>
    tpu.vector_store %arg7[%c0_176, %c0_177, %c128_178], %227 {strides = array<i32>} : memref<1x2x256xf32, #tpu.memory_space<vmem>>, vector<1x2x16xf32>,
    %228 = vector.extract_strided_slice %191 {offsets = [0, 181], sizes = [2, 16], strides = [1, 1]} : vector<2x384xf32> to vector<2x16xf32>
    %c0_179 = arith.constant 0 : index
    %c0_180 = arith.constant 0 : index
    %c144_181 = arith.constant 144 : index
    %229 = vector.load %arg7[%c0_179, %c0_180, %c144_181] : memref<1x2x256xf32, #tpu.memory_space<vmem>>, vector<1x2x16xf32>
    %230 = vector.shape_cast %229 : vector<1x2x16xf32> to vector<2x16xf32>
    %231 = vector.shape_cast %228 : vector<2x16xf32> to vector<1x2x16xf32>
    tpu.vector_store %arg7[%c0_179, %c0_180, %c144_181], %231 {strides = array<i32>} : memref<1x2x256xf32, #tpu.memory_space<vmem>>, vector<1x2x16xf32>,
    %232 = vector.extract_strided_slice %191 {offsets = [0, 199], sizes = [2, 16], strides = [1, 1]} : vector<2x384xf32> to vector<2x16xf32>
    %c0_182 = arith.constant 0 : index
    %c0_183 = arith.constant 0 : index
    %c160_184 = arith.constant 160 : index
    %233 = vector.load %arg7[%c0_182, %c0_183, %c160_184] : memref<1x2x256xf32, #tpu.memory_space<vmem>>, vector<1x2x16xf32>
    %234 = vector.shape_cast %233 : vector<1x2x16xf32> to vector<2x16xf32>
    %235 = vector.shape_cast %232 : vector<2x16xf32> to vector<1x2x16xf32>
    tpu.vector_store %arg7[%c0_182, %c0_183, %c160_184], %235 {strides = array<i32>} : memref<1x2x256xf32, #tpu.memory_space<vmem>>, vector<1x2x16xf32>,
    %236 = vector.extract_strided_slice %191 {offsets = [0, 217], sizes = [2, 16], strides = [1, 1]} : vector<2x384xf32> to vector<2x16xf32>
    %c0_185 = arith.constant 0 : index
    %c0_186 = arith.constant 0 : index
    %c176_187 = arith.constant 176 : index
    %237 = vector.load %arg7[%c0_185, %c0_186, %c176_187] : memref<1x2x256xf32, #tpu.memory_space<vmem>>, vector<1x2x16xf32>
    %238 = vector.shape_cast %237 : vector<1x2x16xf32> to vector<2x16xf32>
    %239 = vector.shape_cast %236 : vector<2x16xf32> to vector<1x2x16xf32>
    tpu.vector_store %arg7[%c0_185, %c0_186, %c176_187], %239 {strides = array<i32>} : memref<1x2x256xf32, #tpu.memory_space<vmem>>, vector<1x2x16xf32>,
    %240 = vector.extract_strided_slice %191 {offsets = [0, 235], sizes = [2, 16], strides = [1, 1]} : vector<2x384xf32> to vector<2x16xf32>
    %c0_188 = arith.constant 0 : index
    %c0_189 = arith.constant 0 : index
    %c192_190 = arith.constant 192 : index
    %241 = vector.load %arg7[%c0_188, %c0_189, %c192_190] : memref<1x2x256xf32, #tpu.memory_space<vmem>>, vector<1x2x16xf32>
    %242 = vector.shape_cast %241 : vector<1x2x16xf32> to vector<2x16xf32>
    %243 = vector.shape_cast %240 : vector<2x16xf32> to vector<1x2x16xf32>
    tpu.vector_store %arg7[%c0_188, %c0_189, %c192_190], %243 {strides = array<i32>} : memref<1x2x256xf32, #tpu.memory_space<vmem>>, vector<1x2x16xf32>,
    %244 = vector.extract_strided_slice %191 {offsets = [0, 253], sizes = [2, 16], strides = [1, 1]} : vector<2x384xf32> to vector<2x16xf32>
    %c0_191 = arith.constant 0 : index
    %c0_192 = arith.constant 0 : index
    %c208_193 = arith.constant 208 : index
    %245 = vector.load %arg7[%c0_191, %c0_192, %c208_193] : memref<1x2x256xf32, #tpu.memory_space<vmem>>, vector<1x2x16xf32>
    %246 = vector.shape_cast %245 : vector<1x2x16xf32> to vector<2x16xf32>
    %247 = vector.shape_cast %244 : vector<2x16xf32> to vector<1x2x16xf32>
    tpu.vector_store %arg7[%c0_191, %c0_192, %c208_193], %247 {strides = array<i32>} : memref<1x2x256xf32, #tpu.memory_space<vmem>>, vector<1x2x16xf32>,
    %248 = vector.extract_strided_slice %191 {offsets = [0, 271], sizes = [2, 16], strides = [1, 1]} : vector<2x384xf32> to vector<2x16xf32>
    %c0_194 = arith.constant 0 : index
    %c0_195 = arith.constant 0 : index
    %c224_196 = arith.constant 224 : index
    %249 = vector.load %arg7[%c0_194, %c0_195, %c224_196] : memref<1x2x256xf32, #tpu.memory_space<vmem>>, vector<1x2x16xf32>
    %250 = vector.shape_cast %249 : vector<1x2x16xf32> to vector<2x16xf32>
    %251 = vector.shape_cast %248 : vector<2x16xf32> to vector<1x2x16xf32>
    tpu.vector_store %arg7[%c0_194, %c0_195, %c224_196], %251 {strides = array<i32>} : memref<1x2x256xf32, #tpu.memory_space<vmem>>, vector<1x2x16xf32>,
    %252 = vector.extract_strided_slice %191 {offsets = [0, 289], sizes = [2, 16], strides = [1, 1]} : vector<2x384xf32> to vector<2x16xf32>
    %c0_197 = arith.constant 0 : index
    %c0_198 = arith.constant 0 : index
    %c240_199 = arith.constant 240 : index
    %253 = vector.load %arg7[%c0_197, %c0_198, %c240_199] : memref<1x2x256xf32, #tpu.memory_space<vmem>>, vector<1x2x16xf32>
    %254 = vector.shape_cast %253 : vector<1x2x16xf32> to vector<2x16xf32>
    %255 = vector.shape_cast %252 : vector<2x16xf32> to vector<1x2x16xf32>
    tpu.vector_store %arg7[%c0_197, %c0_198, %c240_199], %255 {strides = array<i32>} : memref<1x2x256xf32, #tpu.memory_space<vmem>>, vector<1x2x16xf32>,
    return
  }
  func.func @transform_0(%arg0: i32) -> (i32, i32, i32) {
    %c0_i32 = arith.constant 0 : i32
    %c0_i32_0 = arith.constant 0 : i32
    %c0_i32_1 = arith.constant 0 : i32
    return %arg0, %c0_i32, %c0_i32_0 : i32, i32, i32
  }
  func.func @transform_1(%arg0: i32) -> (i32, i32) {
    %c0_i32 = arith.constant 0 : i32
    %c0_i32_0 = arith.constant 0 : i32
    %c0_i32_1 = arith.constant 0 : i32
    return %c0_i32, %c0_i32_0 : i32, i32
  }
  func.func @transform_2(%arg0: i32) -> (i32, i32) {
    %c0_i32 = arith.constant 0 : i32
    %c0_i32_0 = arith.constant 0 : i32
    %c0_i32_1 = arith.constant 0 : i32
    return %c0_i32, %c0_i32_0 : i32, i32
  }
  func.func @transform_3(%arg0: i32) -> (i32, i32) {
    %c0_i32 = arith.constant 0 : i32
    %c0_i32_0 = arith.constant 0 : i32
    %c0_i32_1 = arith.constant 0 : i32
    return %c0_i32, %c0_i32_0 : i32, i32
  }
  func.func @transform_4(%arg0: i32) -> (i32, i32) {
    %c0_i32 = arith.constant 0 : i32
    %c0_i32_0 = arith.constant 0 : i32
    %c0_i32_1 = arith.constant 0 : i32
    return %c0_i32, %c0_i32_0 : i32, i32
  }
  func.func @transform_5(%arg0: i32) -> (i32, i32) {
    %c0_i32 = arith.constant 0 : i32
    %c0_i32_0 = arith.constant 0 : i32
    %c0_i32_1 = arith.constant 0 : i32
    return %c0_i32, %c0_i32_0 : i32, i32
  }
  func.func @transform_6(%arg0: i32) -> (i32, i32, i32) {
    %c0_i32 = arith.constant 0 : i32
    %c0_i32_0 = arith.constant 0 : i32
    %c0_i32_1 = arith.constant 0 : i32
    return %arg0, %c0_i32, %c0_i32_0 : i32, i32, i32
  }
}

</mosaic_0001>

<llo_original>
// kernel: custom-call
$region0: #{custom-call}
  %s0 = inlined_call_operand.hbm [shape: c64[1,2,16,16], index: 0, kind: input, shape index: {}]
  %s1 = inlined_call_operand.vmem [shape: f32[1,2,16,16], index: 1, kind: output, shape index: {}]
  $region1: #{custom-call} parent=0
    #allocation0 [shape = 's32[1]{0}', space=sflag, size = 0x4, scoped, tag = 'scoped memory for custom-call']
    %2 = vsyncpa [#allocation0], 0
    %s3 = sshll.u32 %s1, 4
    %s4 = int_to_ptr.vmem [resolvable:$true] %s3
    %6 = dma.hbm_to_vmem [thread:$0]  %s0, 512, %s4, [#allocation0]
    %7 = dma.done [#allocation0], 512
    %8 = vsyncpa [#allocation0], 1

// kernel: custom-call.1
$region0: #{custom-call.1}
  %s0 = inlined_call_operand.hbm [shape: c64[1,2,16,16], index: 0, kind: input, shape index: {}]
  %s1 = inlined_call_operand.vmem [shape: f32[1,2,16,16], index: 1, kind: output, shape index: {}]
  %s2 = scalar_lea.hbm %s0, 512
  $region1: #{custom-call.1} parent=0
    #allocation0 [shape = 's32[1]{0}', space=sflag, size = 0x4, scoped, tag = 'scoped memory for custom-call.1']
    %3 = vsyncpa [#allocation0], 0
    %s4 = sshll.u32 %s1, 4
    %s5 = int_to_ptr.vmem [resolvable:$true] %s4
    %7 = dma.hbm_to_vmem [thread:$0]  %s2, 512, %s5, [#allocation0]
    %8 = dma.done [#allocation0], 512
    %9 = vsyncpa [#allocation0], 1

// kernel: custom-call.2
$region0: #{custom-call.2}
  %s0 = inlined_call_operand.vmem [shape: f32[1,2,16,16], index: 0, kind: input, shape index: {}]
  %s1 = inlined_call_operand.vmem [shape: f32[1,2,16,16], index: 1, kind: input, shape index: {}]
  %s2 = inlined_call_operand.hbm [shape: c64[1,2,16,16], index: 2, kind: output, shape index: {}]
  %s3 = scalar_lea.hbm %s2, 512
  $region1: #{custom-call.2} parent=0
    #allocation0 [shape = 's32[1]{0}', space=sflag, size = 0x4, scoped, tag = 'scoped memory for custom-call.2']
    %4 = vsyncpa [#allocation0], 0
    %s5 = sshll.u32 %s0, 4
    %s6 = int_to_ptr.vmem [resolvable:$true] %s5
    %8 = dma.vmem_to_hbm [thread:$0]  %s6, 512, %s2, [#allocation0]
    %9 = dma.done [#allocation0], 512
    %10 = vsyncpa [#allocation0], 1
  $region2: #{custom-call.2} parent=0
    #allocation1 [shape = 's32[1]{0}', space=sflag, size = 0x4, scoped, tag = 'scoped memory for custom-call.2']
    %11 = vsyncpa [#allocation1], 0
    %s12 = sshll.u32 %s1, 4
    %s13 = int_to_ptr.vmem [resolvable:$true] %s12
    %15 = dma.vmem_to_hbm [thread:$0]  %s13, 512, %s3, [#allocation1]
    %16 = dma.done [#allocation1], 512
    %17 = vsyncpa [#allocation1], 1

// kernel: forward.1
$region0: #{forward.1}
  #allocation0 [shape = 'u32[]', space=smem, size = 0x4, offset = 0x4, fixed_abs, tag = 'smem constant byte address 0x4 - core index']
  #allocation1 [shape = 'u32[144,128]{1,0:T(1,128)}', space=vmem, size = 0x12000, scoped, tag = 'internal scratch']
  #allocation2 [shape = 'f32[2,384]{1,0:T(2,128)}', space=vmem, size = 0xc00, scoped, tag = 'scratch operand']
  %s0 = inlined_call_operand.vmem [shape: f32[2,2,256], index: 0, kind: input, shape index: {}]
  %s1 = inlined_call_operand.vmem [shape: f32[240,144], index: 1, kind: input, shape index: {}]
  %s2 = inlined_call_operand.vmem [shape: f32[384,128], index: 2, kind: input, shape index: {}]
  %s3 = inlined_call_operand.vmem [shape: f32[128,64], index: 3, kind: input, shape index: {}]
  %s4 = inlined_call_operand.vmem [shape: f32[64,128], index: 4, kind: input, shape index: {}]
  %s5 = inlined_call_operand.vmem [shape: f32[128,384], index: 5, kind: input, shape index: {}]
  %s6 = inlined_call_operand.vmem [shape: f32[2,2,256], index: 6, kind: output, shape index: {}]
  %s7 = sld [smem:[#allocation0]]
  $region57: #{forward.1} parent=0
    _
  %s9 = ssub.s32 1, %s7
  %s10 = scalar_select 0, %s9, %s7
  loop: start=0, step=1, limit=4
  $region2: #{forward.1} parent=0 // loop_pre_header
    _
  $region3: #{forward.1} parent=0 // loop_header
    %s12 = sphi 0, %s16
    %p13 = scmp.ge.s32.totalorder %s12, 4
    %s22 = sphi 0, %s24
    %s25 = sphi 0, %s22
    %s26 = sphi 0, %s25
    %s42 = sphi 0, %s26
    %s46 = sphi 0, %s46
    %s48 = sphi 0, %s46
    %s49 = sphi 0, %s48
    %s63 = sphi 0, %s49
    %s67 = sphi 0, %s67
    %s69 = sphi 0, %s67
    %s70 = sphi 0, %s69
    %s84 = sphi 0, %s70
    %s88 = sphi 0, %s88
    %s90 = sphi 0, %s88
    %s91 = sphi 0, %s90
    %s105 = sphi 0, %s91
    %s109 = sphi 0, %s109
    %s111 = sphi 0, %s109
    %s112 = sphi 0, %s111
    %s126 = sphi 0, %s112
    %s130 = sphi 0, %s130
    %s132 = sphi 0, %s130
    %s133 = sphi 0, %s132
    %s147 = sphi 0, %s133
    %s153 = sphi 0, %s155
    %s156 = sphi 0, %s153
    %s157 = sphi 0, %s156
    %s173 = sphi 0, %s157
  $region4: #{forward.1} parent=0 // loop_header_branch
    %15 = sbr.rel (%p13) target = $region8
  $region5: #{forward.1} parent=0 // loop_body
    %s17 = ssub.s32 %s12, 1
    %s18 = ssub.s32 %s12, 2
    %s19 = sadd.s32 %s12, 1
    %s20 = ssub.s32 %s12, %s19
    %p21 = scmp.eq.s32.totalorder %s20, 0
    %s23 = sadd.s32 %s22, 1
    %s24 = scalar_select %p21, %s22, %s23
    %p27 = pneg %p21
    %p28 = scmp.eq.s32.totalorder %s12, 1
    %p29 = por %p27, %p28
    %p30 = scmp.ne.s32.totalorder %s22, %s25
    %p31 = scmp.eq.s32.totalorder %s12, 0
    %p32 = por %p30, %p31
    %p33 = scmp.ne.s32.totalorder %s22, %s25
    %p34 = scmp.eq.s32.totalorder %s17, 1
    %p35 = por %p33, %p34
    %p36 = scmp.ne.s32.totalorder %s25, %s26
    %p37 = scmp.eq.s32.totalorder %s17, 0
    %p38 = por %p36, %p37
    %p39 = scmp.ne.s32.totalorder %s25, %s26
    %p40 = scmp.eq.s32.totalorder %s18, 1
    %p41 = por %p39, %p40
    %p43 = scmp.ne.s32.totalorder %s26, %s42
    %p44 = scmp.eq.s32.totalorder %s18, 0
    %p45 = por %p43, %p44
    %s47 = sadd.s32 %s46, 1
    %p50 = scmp.eq.s32.totalorder %s12, 1
    %p51 = scmp.ne.s32.totalorder %s46, %s48
    %p52 = scmp.eq.s32.totalorder %s12, 0
    %p53 = por %p51, %p52
    %p54 = scmp.ne.s32.totalorder %s46, %s48
    %p55 = scmp.eq.s32.totalorder %s17, 1
    %p56 = por %p54, %p55
    %p57 = scmp.ne.s32.totalorder %s48, %s49
    %p58 = scmp.eq.s32.totalorder %s17, 0
    %p59 = por %p57, %p58
    %p60 = scmp.ne.s32.totalorder %s48, %s49
    %p61 = scmp.eq.s32.totalorder %s18, 1
    %p62 = por %p60, %p61
    %p64 = scmp.ne.s32.totalorder %s49, %s63
    %p65 = scmp.eq.s32.totalorder %s18, 0
    %p66 = por %p64, %p65
    %s68 = sadd.s32 %s67, 1
    %p71 = scmp.eq.s32.totalorder %s12, 1
    %p72 = scmp.ne.s32.totalorder %s67, %s69
    %p73 = scmp.eq.s32.totalorder %s12, 0
    %p74 = por %p72, %p73
    %p75 = scmp.ne.s32.totalorder %s67, %s69
    %p76 = scmp.eq.s32.totalorder %s17, 1
    %p77 = por %p75, %p76
    %p78 = scmp.ne.s32.totalorder %s69, %s70
    %p79 = scmp.eq.s32.totalorder %s17, 0
    %p80 = por %p78, %p79
    %p81 = scmp.ne.s32.totalorder %s69, %s70
    %p82 = scmp.eq.s32.totalorder %s18, 1
    %p83 = por %p81, %p82
    %p85 = scmp.ne.s32.totalorder %s70, %s84
    %p86 = scmp.eq.s32.totalorder %s18, 0
    %p87 = por %p85, %p86
    %s89 = sadd.s32 %s88, 1
    %p92 = scmp.eq.s32.totalorder %s12, 1
    %p93 = scmp.ne.s32.totalorder %s88, %s90
    %p94 = scmp.eq.s32.totalorder %s12, 0
    %p95 = por %p93, %p94
    %p96 = scmp.ne.s32.totalorder %s88, %s90
    %p97 = scmp.eq.s32.totalorder %s17, 1
    %p98 = por %p96, %p97
    %p99 = scmp.ne.s32.totalorder %s90, %s91
    %p100 = scmp.eq.s32.totalorder %s17, 0
    %p101 = por %p99, %p100
    %p102 = scmp.ne.s32.totalorder %s90, %s91
    %p103 = scmp.eq.s32.totalorder %s18, 1
    %p104 = por %p102, %p103
    %p106 = scmp.ne.s32.totalorder %s91, %s105
    %p107 = scmp.eq.s32.totalorder %s18, 0
    %p108 = por %p106, %p107
    %s110 = sadd.s32 %s109, 1
    %p113 = scmp.eq.s32.totalorder %s12, 1
    %p114 = scmp.ne.s32.totalorder %s109, %s111
    %p115 = scmp.eq.s32.totalorder %s12, 0
    %p116 = por %p114, %p115
    %p117 = scmp.ne.s32.totalorder %s109, %s111
    %p118 = scmp.eq.s32.totalorder %s17, 1
    %p119 = por %p117, %p118
    %p120 = scmp.ne.s32.totalorder %s111, %s112
    %p121 = scmp.eq.s32.totalorder %s17, 0
    %p122 = por %p120, %p121
    %p123 = scmp.ne.s32.totalorder %s111, %s112
    %p124 = scmp.eq.s32.totalorder %s18, 1
    %p125 = por %p123, %p124
    %p127 = scmp.ne.s32.totalorder %s112, %s126
    %p128 = scmp.eq.s32.totalorder %s18, 0
    %p129 = por %p127, %p128
    %s131 = sadd.s32 %s130, 1
    %p134 = scmp.eq.s32.totalorder %s12, 1
    %p135 = scmp.ne.s32.totalorder %s130, %s132
    %p136 = scmp.eq.s32.totalorder %s12, 0
    %p137 = por %p135, %p136
    %p138 = scmp.ne.s32.totalorder %s130, %s132
    %p139 = scmp.eq.s32.totalorder %s17, 1
    %p140 = por %p138, %p139
    %p141 = scmp.ne.s32.totalorder %s132, %s133
    %p142 = scmp.eq.s32.totalorder %s17, 0
    %p143 = por %p141, %p142
    %p144 = scmp.ne.s32.totalorder %s132, %s133
    %p145 = scmp.eq.s32.totalorder %s18, 1
    %p146 = por %p144, %p145
    %p148 = scmp.ne.s32.totalorder %s133, %s147
    %p149 = scmp.eq.s32.totalorder %s18, 0
    %p150 = por %p148, %p149
    %s151 = ssub.s32 %s12, %s19
    %p152 = scmp.eq.s32.totalorder %s151, 0
    %s154 = sadd.s32 %s153, 1
    %s155 = scalar_select %p152, %s153, %s154
    %p158 = pneg %p152
    %p159 = scmp.eq.s32.totalorder %s12, 1
    %p160 = por %p158, %p159
    %p161 = scmp.ne.s32.totalorder %s153, %s156
    %p162 = scmp.eq.s32.totalorder %s12, 0
    %p163 = por %p161, %p162
    %p164 = scmp.ne.s32.totalorder %s153, %s156
    %p165 = scmp.eq.s32.totalorder %s17, 1
    %p166 = por %p164, %p165
    %p167 = scmp.ne.s32.totalorder %s156, %s157
    %p168 = scmp.eq.s32.totalorder %s17, 0
    %p169 = por %p167, %p168
    %p170 = scmp.ne.s32.totalorder %s156, %s157
    %p171 = scmp.eq.s32.totalorder %s18, 1
    %p172 = por %p170, %p171
    %p174 = scmp.ne.s32.totalorder %s157, %s173
    %p175 = scmp.eq.s32.totalorder %s18, 0
    %p176 = por %p174, %p175
    %p177 = scmp.le.s32.totalorder 1, %s12
    %p178 = scmp.lt.s32.totalorder %s12, 3
    %p179 = pnand %p177, %p178
    %p180 = pneg %p179
    // Predicated region
    $region9: #{forward.1} parent=5 // pred_check
      _
    $region10: #{forward.1} parent=5 // pred_check_branch
      %182 = sbr.rel (%p179) target = $region12
    $region11: #{forward.1} parent=5 // pred_region
      %s183 = ssub.s32 %s12, 1
      // Predicated region
      $region13: #{forward.1} parent=11 // pred_check
        %p184 = pneg %p59
      $region14: #{forward.1} parent=11 // pred_check_branch
        %186 = sbr.rel (%p184) target = $region16
      $region15: #{forward.1} parent=11 // pred_region
        _
      $region16: #{forward.1} parent=11 // pred_fallthru
        _
      // Predicated region
      $region17: #{forward.1} parent=11 // pred_check
        %p187 = pneg %p80
      $region18: #{forward.1} parent=11 // pred_check_branch
        %189 = sbr.rel (%p187) target = $region20
      $region19: #{forward.1} parent=11 // pred_region
        _
      $region20: #{forward.1} parent=11 // pred_fallthru
        _
      // Predicated region
      $region21: #{forward.1} parent=11 // pred_check
        %p190 = pneg %p101
      $region22: #{forward.1} parent=11 // pred_check_branch
        %192 = sbr.rel (%p190) target = $region24
      $region23: #{forward.1} parent=11 // pred_region
        _
      $region24: #{forward.1} parent=11 // pred_fallthru
        _
      // Predicated region
      $region25: #{forward.1} parent=11 // pred_check
        %p193 = pneg %p122
      $region26: #{forward.1} parent=11 // pred_check_branch
        %195 = sbr.rel (%p193) target = $region28
      $region27: #{forward.1} parent=11 // pred_region
        _
      $region28: #{forward.1} parent=11 // pred_fallthru
        _
      // Predicated region
      $region29: #{forward.1} parent=11 // pred_check
        %p196 = pneg %p143
      $region30: #{forward.1} parent=11 // pred_check_branch
        %198 = sbr.rel (%p196) target = $region32
      $region31: #{forward.1} parent=11 // pred_region
        _
      $region32: #{forward.1} parent=11 // pred_fallthru
        _
    $region12: #{forward.1} parent=5 // pred_fallthru
      _
    %p199 = scmp.lt.s32.totalorder %s12, 2
    // Predicated region
    $region33: #{forward.1} parent=5 // pred_check
      %p200 = pneg %p199
    $region34: #{forward.1} parent=5 // pred_check_branch
      %202 = sbr.rel (%p200) target = $region36
    $region35: #{forward.1} parent=5 // pred_region
      // Predicated region
      $region37: #{forward.1} parent=35 // pred_check
        %p203 = pneg %p32
      $region38: #{forward.1} parent=35 // pred_check_branch
        %205 = sbr.rel (%p203) target = $region40
      $region39: #{forward.1} parent=35 // pred_region
        %p206 = scmp.lt.s32.totalorder %s12, 1
        %s207 = scalar_select %p206, %s12, 1
        %s208 = smul.addr %s207, 2
        %s209 = smul.addr %s208, 2
        %s210 = scalar_lea.vmem %s0, %s209
      $region40: #{forward.1} parent=35 // pred_fallthru
        _
    $region36: #{forward.1} parent=5 // pred_fallthru
      _
    %p211 = scmp.le.s32.totalorder 1, %s12
    %p212 = scmp.lt.s32.totalorder %s12, 3
    %p213 = pnand %p211, %p212
    %p214 = pneg %p213
    // Predicated region
    $region41: #{forward.1} parent=5 // pred_check
      _
    $region42: #{forward.1} parent=5 // pred_check_branch
      %216 = sbr.rel (%p213) target = $region44
    $region43: #{forward.1} parent=5 // pred_region
      %s217 = ssub.s32 %s12, 1
      %p218 = scmp.lt.s32.totalorder %s17, 1
      %s219 = scalar_select %p218, %s17, 1
      %s220 = smul.addr %s219, 2
      %s221 = smul.addr %s220, 2
      %s222 = scalar_lea.vmem %s0, %s221
      %p223 = pneg %p38
      %p224 = pneg %p35
      %p225 = pneg %p59
      %p226 = pneg %p56
      %p227 = pneg %p80
      %p228 = pneg %p77
      %p229 = pneg %p101
      %p230 = pneg %p98
      %p231 = pneg %p122
      %p232 = pneg %p119
      %p233 = pneg %p143
      %p234 = pneg %p140
      %p235 = pneg %p169
      %p236 = pneg %p166
      %p237 = scmp.lt.s32.totalorder %s17, 1
      %s238 = scalar_select %p237, %s17, 1
      %s239 = smul.addr %s238, 2
      %s240 = smul.addr %s239, 2
      %s241 = scalar_lea.vmem %s6, %s240
      %p242 = scmp.lt.s32.totalorder %s17, 1
      %s243 = scalar_select %p242, %s17, 1
      %s244 = smul.addr %s243, 2
      %s245 = smul.addr %s244, 2
      %s246 = scalar_lea.vmem %s0, %s245
      %p247 = scmp.lt.s32.totalorder %s17, 1
      %s248 = scalar_select %p247, %s17, 1
      %s249 = smul.addr %s248, 2
      %s250 = smul.addr %s249, 2
      %s251 = scalar_lea.vmem %s6, %s250
      %252 = vst [vmem:[#allocation2] sm:$0x3f] 0.0
      %v253 = vld [vmem:[%s246] sm:$0x3]
      %255 = vrot.lane.b32.xlu0 %v253, 19
      %v256 = vpop.permute.xlu0 %255
      %vm258 = vcmask 279704
      %259 = vst.msk [vmem:[#allocation2] sm:$0x3] %vm258, %v256
      %v260 = vld [vmem:[%s246] sm:$0x3]
      %262 = vrot.lane.b32.xlu0 %v260, 21
      %v263 = vpop.permute.xlu0 %262
      %vm265 = vcmask 427304
      %266 = vst.msk [vmem:[#allocation2] sm:$0x3] %vm265, %v263
      %v267 = vld [vmem:[%s246] sm:$0x3]
      %269 = vrot.lane.b32.xlu0 %v267, 23
      %v270 = vpop.permute.xlu0 %269
      %vm272 = vcmask 574904
      %273 = vst.msk [vmem:[#allocation2] sm:$0x3] %vm272, %v270
      %v274 = vld [vmem:[%s246] sm:$0x3]
      %276 = vrot.lane.b32.xlu0 %v274, 25
      %v277 = vpop.permute.xlu0 %276
      %vm279 = vcmask 722504
      %280 = vst.msk [vmem:[#allocation2] sm:$0x3] %vm279, %v277
      %v281 = vld [vmem:[%s246] sm:$0x3]
      %283 = vrot.lane.b32.xlu0 %v281, 27
      %v284 = vpop.permute.xlu0 %283
      %vm286 = vcmask 870104
      %287 = vst.msk [vmem:[#allocation2] sm:$0x3] %vm286, %v284
      %v288 = vld [vmem:[%s246] sm:$0x3]
      %290 = vrot.lane.b32.xlu0 %v288, 29
      %v291 = vpop.permute.xlu0 %290
      %vm293 = vcmask 1017704
      %294 = vst.msk [vmem:[#allocation2] sm:$0x3] %vm293, %v291
      %v295 = vld [vmem:[%s246] sm:$0x3]
      %297 = vrot.lane.b32.xlu0 %v295, 31
      %v298 = vpop.permute.xlu0 %297
      %v299 = vrot.slane %v298, 6
      %vm300 = vcmask 252928
      %v301 = vsel %vm300, %v299, %v298
      %vm303 = vcmask 1042424
      %vm304 = vcmask 117762
      %vm305 = vmor %vm304, %vm303
      %306 = vst.msk [vmem:[#allocation2] sm:$0xf] %vm305, %v301
      %v307 = vld [vmem:[%s246] sm:$0x3]
      %309 = vrot.lane.b32.xlu0 %v307, 33
      %v310 = vpop.permute.xlu0 %309
      %vm312 = vcmask 263304
      %313 = vst.msk [vmem:[#allocation2 + $0x2] sm:$0x3] %vm312, %v310
      %v314 = vld [vmem:[%s246 + $0x2] sm:$0x3]
      %316 = vrot.lane.b32.xlu0 %v314, 35
      %v317 = vpop.permute.xlu0 %316
      %vm319 = vcmask 410904
      %320 = vst.msk [vmem:[#allocation2 + $0x2] sm:$0x3] %vm319, %v317
      %v321 = vld [vmem:[%s246 + $0x2] sm:$0x3]
      %323 = vrot.lane.b32.xlu0 %v321, 37
      %v324 = vpop.permute.xlu0 %323
      %vm326 = vcmask 558504
      %327 = vst.msk [vmem:[#allocation2 + $0x2] sm:$0x3] %vm326, %v324
      %v328 = vld [vmem:[%s246 + $0x2] sm:$0x3]
      %330 = vrot.lane.b32.xlu0 %v328, 39
      %v331 = vpop.permute.xlu0 %330
      %vm333 = vcmask 706104
      %334 = vst.msk [vmem:[#allocation2 + $0x2] sm:$0x3] %vm333, %v331
      %v335 = vld [vmem:[%s246 + $0x2] sm:$0x3]
      %337 = vrot.lane.b32.xlu0 %v335, 41
      %v338 = vpop.permute.xlu0 %337
      %vm340 = vcmask 853704
      %341 = vst.msk [vmem:[#allocation2 + $0x2] sm:$0x3] %vm340, %v338
      %v342 = vld [vmem:[%s246 + $0x2] sm:$0x3]
      %344 = vrot.lane.b32.xlu0 %v342, 43
      %v345 = vpop.permute.xlu0 %344
      %vm347 = vcmask 1001304
      %348 = vst.msk [vmem:[#allocation2 + $0x2] sm:$0x3] %vm347, %v345
      %v349 = vld [vmem:[%s246 + $0x2] sm:$0x3]
      %351 = vrot.lane.b32.xlu0 %v349, 45
      %v352 = vpop.permute.xlu0 %351
      %v353 = vrot.slane %v352, 6
      %vm354 = vcmask 367616
      %v355 = vsel %vm354, %v353, %v352
      %vm357 = vcmask 1042408
      %vm358 = vcmask 101378
      %vm359 = vmor %vm358, %vm357
      %360 = vst.msk [vmem:[#allocation2 + $0x2] sm:$0xf] %vm359, %v355
      %v361 = vld [vmem:[%s246 + $0x2] sm:$0x3]
      %363 = vrot.lane.b32.xlu0 %v361, 47
      %v364 = vpop.permute.xlu0 %363
      %vm366 = vcmask 246904
      %367 = vst.msk [vmem:[#allocation2 + $0x4] sm:$0x3] %vm366, %v364
      %v368 = vld [vmem:[%s246 + $0x2] sm:$0x3]
      %370 = vrot.lane.b32.xlu0 %v368, 49
      %v371 = vpop.permute.xlu0 %370
      %vm373 = vcmask 394504
      %374 = vst.msk [vmem:[#allocation2 + $0x4] sm:$0x3] %vm373, %v371
      %v375 = vld [vmem:[#allocation2] sm:$0x3f]
      %v376 = vld [vmem:[%s1 + $0x1c0] ss:$0 sm:$0xff]
      %v377 = vld [vmem:[%s1] sm:$0xff]
      %v378 = vld [vmem:[%s1 + $0x10] sm:$0xff]
      %v380 = vcombine.high %v375, %v375
      %v382 = vunpack.c.l.s4 1983009808
      %v383 = vunpack.c.0.s8 %v382
      %v384 = vlaneseq
      %v385 = vshrl.u32 %v384, 7
      %v386 = vsub.s32 %v383, %v385
      %v387 = vrot.slane %v375, %v386
      %v389 = vunpack.c.l.s4 1983009808
      %v390 = vunpack.c.0.s8 %v389
      %v391 = vlaneseq
      %v392 = vshrl.u32 %v391, 7
      %v393 = vsub.s32 %v390, %v392
      %v394 = vrot.slane %v380, %v393
      %v395 = vcombine.high %v387, %v387
      %399 = vrot.lane.b32.xlu0 %v387, 19
      %v400 = vpop.permute.xlu0 %399
      %401 = vrot.lane.b32.xlu0 %v395, 19
      %v402 = vpop.permute.xlu0 %401
      %403 = vrot.lane.b32.xlu0 %v394, 19
      %v404 = vpop.permute.xlu0 %403
      %v405 = vlaneseq
      %v406 = vand.u32 %v405, 127
      %vm407 = vcmp.lt.s32.totalorder %v406, 19
      %v408 = vsel %vm407, %v402, %v404
      %v409 = vsel %vm407, %v400, %v402
      %v410 = vsel %vm407, %v404, %v400
      %411 = vrot.lane.b32.xlu0 %v387, 18
      %v412 = vpop.permute.xlu0 %411
      %413 = vrot.lane.b32.xlu0 %v395, 18
      %v414 = vpop.permute.xlu0 %413
      %415 = vrot.lane.b32.xlu0 %v394, 18
      %v416 = vpop.permute.xlu0 %415
      %vm417 = vcmp.lt.s32.totalorder %v406, 18
      %v418 = vsel %vm417, %v414, %v416
      %v419 = vsel %vm417, %v412, %v414
      %v420 = vsel %vm417, %v416, %v412
      %421 = vrot.lane.b32.xlu0 %v387, 17
      %v422 = vpop.permute.xlu0 %421
      %423 = vrot.lane.b32.xlu0 %v395, 17
      %v424 = vpop.permute.xlu0 %423
      %425 = vrot.lane.b32.xlu0 %v394, 17
      %v426 = vpop.permute.xlu0 %425
      %vm427 = vcmp.lt.s32.totalorder %v406, 17
      %v428 = vsel %vm427, %v424, %v426
      %v429 = vsel %vm427, %v422, %v424
      %v430 = vsel %vm427, %v426, %v422
      %431 = vrot.lane.b32.xlu0 %v387, 1
      %v432 = vpop.permute.xlu0 %431
      %433 = vrot.lane.b32.xlu0 %v395, 1
      %v434 = vpop.permute.xlu0 %433
      %435 = vrot.lane.b32.xlu0 %v394, 1
      %v436 = vpop.permute.xlu0 %435
      %vm437 = vcmp.lt.s32.totalorder %v406, 1
      %v438 = vsel %vm437, %v434, %v436
      %v439 = vsel %vm437, %v432, %v434
      %v440 = vsel %vm437, %v436, %v432
      %441 = vrot.lane.b32.xlu0 %v387, 127
      %v442 = vpop.permute.xlu0 %441
      %443 = vrot.lane.b32.xlu0 %v395, 127
      %v444 = vpop.permute.xlu0 %443
      %445 = vrot.lane.b32.xlu0 %v394, 127
      %v446 = vpop.permute.xlu0 %445
      %vm447 = vcmp.lt.s32.totalorder %v406, 127
      %v448 = vsel %vm447, %v444, %v446
      %v449 = vsel %vm447, %v442, %v444
      %v450 = vsel %vm447, %v446, %v442
      %451 = vrot.lane.b32.xlu0 %v387, 111
      %v452 = vpop.permute.xlu0 %451
      %453 = vrot.lane.b32.xlu0 %v395, 111
      %v454 = vpop.permute.xlu0 %453
      %455 = vrot.lane.b32.xlu0 %v394, 111
      %v456 = vpop.permute.xlu0 %455
      %vm457 = vcmp.lt.s32.totalorder %v406, 111
      %v458 = vsel %vm457, %v454, %v456
      %v459 = vsel %vm457, %v452, %v454
      %v460 = vsel %vm457, %v456, %v452
      %461 = vrot.lane.b32.xlu0 %v387, 110
      %v462 = vpop.permute.xlu0 %461
      %463 = vrot.lane.b32.xlu0 %v395, 110
      %v464 = vpop.permute.xlu0 %463
      %465 = vrot.lane.b32.xlu0 %v394, 110
      %v466 = vpop.permute.xlu0 %465
      %vm467 = vcmp.lt.s32.totalorder %v406, 110
      %v468 = vsel %vm467, %v464, %v466
      %v469 = vsel %vm467, %v462, %v464
      %v470 = vsel %vm467, %v466, %v462
      %471 = vrot.lane.b32.xlu0 %v387, 109
      %v472 = vpop.permute.xlu0 %471
      %473 = vrot.lane.b32.xlu0 %v395, 109
      %v474 = vpop.permute.xlu0 %473
      %475 = vrot.lane.b32.xlu0 %v394, 109
      %v476 = vpop.permute.xlu0 %475
      %vm477 = vcmp.lt.s32.totalorder %v406, 109
      %v478 = vsel %vm477, %v474, %v476
      %v479 = vsel %vm477, %v472, %v474
      %v480 = vsel %vm477, %v476, %v472
      %v484 = vrot.slane %v420, 6
      %v485 = vrot.slane %v419, 6
      %v486 = vrot.slane %v418, 6
      %v493 = vrot.slane %v430, 4
      %v494 = vrot.slane %v429, 4
      %v495 = vrot.slane %v428, 4
      %v502 = vrot.slane %v440, 2
      %v503 = vrot.slane %v439, 2
      %v504 = vrot.slane %v438, 2
      %v511 = vrot.slane %v449, 6
      %v512 = vrot.slane %v448, 6
      %v513 = vrot.slane %v450, 6
      %v520 = vrot.slane %v459, 4
      %v521 = vrot.slane %v458, 4
      %v522 = vrot.slane %v460, 4
      %v529 = vrot.slane %v469, 2
      %v530 = vrot.slane %v468, 2
      %v531 = vrot.slane %v470, 2
      %vm535 = vcmask 1041408
      %v536 = vsel %vm535, %v410, %v484
      %v537 = vsel %vm535, %v409, %v485
      %v538 = vsel %vm535, %v408, %v486
      %vm539 = vcmask 1043456
      %v540 = vsel %vm539, %v536, %v493
      %v541 = vsel %vm539, %v537, %v494
      %v542 = vsel %vm539, %v538, %v495
      %vm543 = vcmask 1045504
      %v544 = vsel %vm543, %v540, %v502
      %v545 = vsel %vm543, %v541, %v503
      %v546 = vsel %vm543, %v542, %v504
      %v547 = vsel %vm535, %v387, %v511
      %v548 = vsel %vm535, %v395, %v512
      %v549 = vsel %vm535, %v394, %v513
      %v550 = vsel %vm539, %v547, %v520
      %v551 = vsel %vm539, %v548, %v521
      %v552 = vsel %vm539, %v549, %v522
      %v553 = vsel %vm543, %v550, %v529
      %v554 = vsel %vm543, %v551, %v530
      %v555 = vsel %vm543, %v552, %v531
      %vm556 = vcmask 146432
      %v558 = vsel %vm556, %v377, 0
      %v561 = vsel %vm556, %v378, 0
      %v564 = vsel %vm535, %v479, 0
      %v567 = vsel %vm535, %v478, 0
      %v570 = vsel %vm535, %v480, 0
      %572 = vmatprep.subr.mxu0 %v545
      %573 = vmatpush1.msra.mxu0 %v544
      %574 = vmatprep.subr.mxu0 %v554
      %575 = vmatpush1.msra.mxu0 %v553
      %576 = vmatprep.subr.mxu0 %v567
      %577 = vmatpush1.msra.mxu0 %v564
      %578 = vmatprep.subr.mxu0 0.0
      %579 = vmatpush1.msra.mxu0 0.0
      %580 = vmatprep.subr.mxu0 0.0
      %581 = vmatpush1.msra.mxu0 0.0
      %582 = vmatprep.subr.mxu0 0.0
      %583 = vmatpush1.msra.mxu0 0.0
      %584 = vmatprep.subr.mxu0 0.0
      %585 = vmatpush1.msra.mxu0 0.0
      %586 = vmatprep.subr.mxu0 0.0
      %587 = vmatpush1.msra.mxu0 0.0
      %588 = vmatprep.subr.mxu0 0.0
      %589 = vmatpush1.msra.mxu0 0.0
      %590 = vmatprep.subr.mxu0 0.0
      %591 = vmatpush1.msra.mxu0 0.0
      %592 = vmatprep.subr.mxu0 0.0
      %593 = vmatpush1.msra.mxu0 0.0
      %594 = vmatprep.subr.mxu0 0.0
      %595 = vmatpush1.msra.mxu0 0.0
      %596 = vmatprep.subr.mxu0 0.0
      %597 = vmatpush1.msra.mxu0 0.0
      %598 = vmatprep.subr.mxu0 0.0
      %599 = vmatpush1.msra.mxu0 0.0
      %600 = vmatprep.subr.mxu0 0.0
      %601 = vmatpush1.msra.mxu0 0.0
      %602 = vmatprep.subr.mxu0 0.0
      %603 = vmatpush1.msra.mxu0 0.0
      %604 = vmatprep.subr.mxu0 0.0
      %605 = vmatpush1.msra.mxu0 0.0
      %606 = vmatprep.subr.mxu0 0.0
      %607 = vmatpush1.msra.mxu0 0.0
      %608 = vmatprep.subr.mxu0 0.0
      %609 = vmatpush1.msra.mxu0 0.0
      %610 = vmatprep.subr.mxu0 0.0
      %611 = vmatpush1.msra.mxu0 0.0
      %612 = vmatprep.subr.mxu0 0.0
      %613 = vmatpush1.msra.mxu0 0.0
      %614 = vmatprep.subr.mxu0 0.0
      %615 = vmatpush1.msra.mxu0 0.0
      %616 = vmatprep.subr.mxu0 0.0
      %617 = vmatpush1.msra.mxu0 0.0
      %618 = vmatprep.subr.mxu0 0.0
      %619 = vmatpush1.msra.mxu0 0.0
      %620 = vmatprep.subr.mxu0 0.0
      %621 = vmatpush1.msra.mxu0 0.0
      %622 = vmatprep.subr.mxu0 0.0
      %623 = vmatpush1.msra.mxu0 0.0
      %624 = vmatprep.subr.mxu0 0.0
      %625 = vmatpush1.msra.mxu0 0.0
      %626 = vmatprep.subr.mxu0 0.0
      %627 = vmatpush1.msra.mxu0 0.0
      %628 = vmatprep.subr.mxu0 0.0
      %629 = vmatpush1.msra.mxu0 0.0
      %630 = vmatprep.subr.mxu0 0.0
      %631 = vmatpush1.msra.mxu0 0.0
      %632 = vmatprep.subr.mxu0 0.0
      %633 = vmatpush1.msra.mxu0 0.0
      %634 = vmatprep.subr.mxu0 0.0
      %635 = vmatpush1.msra.mxu0 0.0
      %636 = vmatprep.mubr.f32.mxu0 0.0
      %637 = vmatmul.mubr.f32.gmra.mrb[0].mxu0 %v558
      %v638 = vpop.f32.mrb[0].mxu0
      %v639 = vadd.f32 0.0, %v638
      %v640 = vpop.f32.mrb[0].mxu0
      %v641 = vadd.f32 0.0, %v640
      %642 = vmatprep.mubr.f32.mxu0 0.0
      %643 = vmatmul.mubr.f32.gmra.mrb[0].mxu0 %v561
      %v644 = vpop.f32.mrb[0].mxu0
      %v645 = vadd.f32 0.0, %v644
      %v646 = vpop.f32.mrb[0].mxu0
      %v647 = vadd.f32 0.0, %v646
      %648 = vdwg.mxu0
      %649 = vmatprep.subr.mxu0 0.0
      %650 = vmatpush1.msra.mxu0 %v546
      %651 = vmatprep.subr.mxu0 0.0
      %652 = vmatpush1.msra.mxu0 %v555
      %653 = vmatprep.subr.mxu0 0.0
      %654 = vmatpush1.msra.mxu0 %v570
      %655 = vmatprep.subr.mxu0 0.0
      %656 = vmatpush1.msra.mxu0 0.0
      %657 = vmatprep.subr.mxu0 0.0
      %658 = vmatpush1.msra.mxu0 0.0
      %659 = vmatprep.subr.mxu0 0.0
      %660 = vmatpush1.msra.mxu0 0.0
      %661 = vmatprep.subr.mxu0 0.0
      %662 = vmatpush1.msra.mxu0 0.0
      %663 = vmatprep.subr.mxu0 0.0
      %664 = vmatpush1.msra.mxu0 0.0
      %665 = vmatprep.subr.mxu0 0.0
      %666 = vmatpush1.msra.mxu0 0.0
      %667 = vmatprep.subr.mxu0 0.0
      %668 = vmatpush1.msra.mxu0 0.0
      %669 = vmatprep.subr.mxu0 0.0
      %670 = vmatpush1.msra.mxu0 0.0
      %671 = vmatprep.subr.mxu0 0.0
      %672 = vmatpush1.msra.mxu0 0.0
      %673 = vmatprep.subr.mxu0 0.0
      %674 = vmatpush1.msra.mxu0 0.0
      %675 = vmatprep.subr.mxu0 0.0
      %676 = vmatpush1.msra.mxu0 0.0
      %677 = vmatprep.subr.mxu0 0.0
      %678 = vmatpush1.msra.mxu0 0.0
      %679 = vmatprep.subr.mxu0 0.0
      %680 = vmatpush1.msra.mxu0 0.0
      %681 = vmatprep.subr.mxu0 0.0
      %682 = vmatpush1.msra.mxu0 0.0
      %683 = vmatprep.subr.mxu0 0.0
      %684 = vmatpush1.msra.mxu0 0.0
      %685 = vmatprep.subr.mxu0 0.0
      %686 = vmatpush1.msra.mxu0 0.0
      %687 = vmatprep.subr.mxu0 0.0
      %688 = vmatpush1.msra.mxu0 0.0
      %689 = vmatprep.subr.mxu0 0.0
      %690 = vmatpush1.msra.mxu0 0.0
      %691 = vmatprep.subr.mxu0 0.0
      %692 = vmatpush1.msra.mxu0 0.0
      %693 = vmatprep.subr.mxu0 0.0
      %694 = vmatpush1.msra.mxu0 0.0
      %695 = vmatprep.subr.mxu0 0.0
      %696 = vmatpush1.msra.mxu0 0.0
      %697 = vmatprep.subr.mxu0 0.0
      %698 = vmatpush1.msra.mxu0 0.0
      %699 = vmatprep.subr.mxu0 0.0
      %700 = vmatpush1.msra.mxu0 0.0
      %701 = vmatprep.subr.mxu0 0.0
      %702 = vmatpush1.msra.mxu0 0.0
      %703 = vmatprep.subr.mxu0 0.0
      %704 = vmatpush1.msra.mxu0 0.0
      %705 = vmatprep.subr.mxu0 0.0
      %706 = vmatpush1.msra.mxu0 0.0
      %707 = vmatprep.subr.mxu0 0.0
      %708 = vmatpush1.msra.mxu0 0.0
      %709 = vmatprep.subr.mxu0 0.0
      %710 = vmatpush1.msra.mxu0 0.0
      %711 = vmatprep.subr.mxu0 0.0
      %712 = vmatpush1.msra.mxu0 0.0
      %713 = vmatprep.mubr.f32.mxu0 0.0
      %714 = vmatmul.mubr.f32.gmra.mrb[0].mxu0 %v558
      %v715 = vpop.f32.mrb[0].mxu0
      %v716 = vadd.f32 0.0, %v715
      %v717 = vpop.f32.mrb[0].mxu0
      %718 = vmatprep.mubr.f32.mxu0 0.0
      %719 = vmatmul.mubr.f32.gmra.mrb[0].mxu0 %v561
      %v720 = vpop.f32.mrb[0].mxu0
      %v721 = vadd.f32 0.0, %v720
      %v722 = vpop.f32.mrb[0].mxu0
      %723 = vdwg.mxu0
      %v724 = vld [vmem:[%s2] sm:$0xff]
      %v725 = vld [vmem:[%s2 + $0x8] sm:$0xff]
      %v726 = vld [vmem:[%s2 + $0x10] sm:$0xff]
      %v727 = vld [vmem:[%s2 + $0x18] sm:$0xff]
      %v728 = vld [vmem:[%s2 + $0x20] sm:$0xff]
      %v729 = vld [vmem:[%s2 + $0x28] sm:$0xff]
      %v730 = vld [vmem:[%s2 + $0x30] sm:$0xff]
      %v731 = vld [vmem:[%s2 + $0x38] sm:$0xff]
      %v732 = vld [vmem:[%s2 + $0x40] sm:$0xff]
      %v733 = vld [vmem:[%s2 + $0x48] sm:$0xff]
      %v734 = vld [vmem:[%s2 + $0x50] sm:$0xff]
      %v735 = vld [vmem:[%s2 + $0x58] sm:$0xff]
      %v736 = vld [vmem:[%s2 + $0x60] sm:$0xff]
      %v737 = vld [vmem:[%s2 + $0x68] sm:$0xff]
      %v738 = vld [vmem:[%s2 + $0x70] sm:$0xff]
      %v739 = vld [vmem:[%s2 + $0x78] sm:$0xff]
      %v740 = vld [vmem:[%s2 + $0x80] sm:$0xff]
      %v741 = vld [vmem:[%s2 + $0x88] sm:$0xff]
      %v742 = vld [vmem:[%s2 + $0x90] sm:$0xff]
      %v743 = vld [vmem:[%s2 + $0x98] sm:$0xff]
      %v744 = vld [vmem:[%s2 + $0xa0] sm:$0xff]
      %v745 = vld [vmem:[%s2 + $0xa8] sm:$0xff]
      %v746 = vld [vmem:[%s2 + $0xb0] sm:$0xff]
      %v747 = vld [vmem:[%s2 + $0xb8] sm:$0xff]
      %v748 = vld [vmem:[%s2 + $0xc0] sm:$0xff]
      %v749 = vld [vmem:[%s2 + $0xc8] sm:$0xff]
      %v750 = vld [vmem:[%s2 + $0xd0] sm:$0xff]
      %v751 = vld [vmem:[%s2 + $0xd8] sm:$0xff]
      %v752 = vld [vmem:[%s2 + $0xe0] sm:$0xff]
      %v753 = vld [vmem:[%s2 + $0xe8] sm:$0xff]
      %v754 = vld [vmem:[%s2 + $0xf0] sm:$0xff]
      %v755 = vld [vmem:[%s2 + $0xf8] sm:$0xff]
      %v756 = vld [vmem:[%s2 + $0x100] sm:$0xff]
      %v757 = vld [vmem:[%s2 + $0x108] sm:$0xff]
      %v758 = vld [vmem:[%s2 + $0x110] sm:$0xff]
      %v759 = vld [vmem:[%s2 + $0x118] sm:$0xff]
      %v760 = vld [vmem:[%s2 + $0x120] sm:$0xff]
      %v761 = vld [vmem:[%s2 + $0x128] sm:$0xff]
      %v762 = vld [vmem:[%s2 + $0x130] sm:$0xff]
      %v763 = vld [vmem:[%s2 + $0x138] sm:$0xff]
      %v764 = vld [vmem:[%s2 + $0x140] sm:$0xff]
      %v765 = vld [vmem:[%s2 + $0x148] sm:$0xff]
      %v766 = vld [vmem:[%s2 + $0x150] sm:$0xff]
      %v767 = vld [vmem:[%s2 + $0x158] sm:$0xff]
      %v768 = vld [vmem:[%s2 + $0x160] sm:$0xff]
      %v769 = vld [vmem:[%s2 + $0x168] sm:$0xff]
      %v770 = vld [vmem:[%s2 + $0x170] sm:$0xff]
      %v771 = vld [vmem:[%s2 + $0x178] sm:$0xff]
      %v772 = vld [vmem:[%s1 + $0xe0] sm:$0xff]
      %v773 = vld [vmem:[%s1 + $0xf0] sm:$0xff]
      %774 = vmatprep.subr.mxu0 0.0
      %775 = vmatpush1.msra.mxu0 %v724
      %776 = vmatprep.subr.mxu0 0.0
      %777 = vmatpush1.msra.mxu0 %v725
      %778 = vmatprep.subr.mxu0 0.0
      %779 = vmatpush1.msra.mxu0 %v726
      %780 = vmatprep.subr.mxu0 0.0
      %781 = vmatpush1.msra.mxu0 %v727
      %782 = vmatprep.subr.mxu0 0.0
      %783 = vmatpush1.msra.mxu0 %v728
      %784 = vmatprep.subr.mxu0 0.0
      %785 = vmatpush1.msra.mxu0 %v729
      %786 = vmatprep.subr.mxu0 0.0
      %787 = vmatpush1.msra.mxu0 %v730
      %788 = vmatprep.subr.mxu0 0.0
      %789 = vmatpush1.msra.mxu0 %v731
      %790 = vmatprep.subr.mxu0 0.0
      %791 = vmatpush1.msra.mxu0 %v732
      %792 = vmatprep.subr.mxu0 0.0
      %793 = vmatpush1.msra.mxu0 %v733
      %794 = vmatprep.subr.mxu0 0.0
      %795 = vmatpush1.msra.mxu0 %v734
      %796 = vmatprep.subr.mxu0 0.0
      %797 = vmatpush1.msra.mxu0 %v735
      %798 = vmatprep.subr.mxu0 0.0
      %799 = vmatpush1.msra.mxu0 %v736
      %800 = vmatprep.subr.mxu0 0.0
      %801 = vmatpush1.msra.mxu0 %v737
      %802 = vmatprep.subr.mxu0 0.0
      %803 = vmatpush1.msra.mxu0 %v738
      %804 = vmatprep.subr.mxu0 0.0
      %805 = vmatpush1.msra.mxu0 %v739
      %806 = vmatprep.subr.mxu0 0.0
      %807 = vmatpush1.msra.mxu0 %v740
      %808 = vmatprep.subr.mxu0 0.0
      %809 = vmatpush1.msra.mxu0 %v741
      %810 = vmatprep.subr.mxu0 0.0
      %811 = vmatpush1.msra.mxu0 %v742
      %812 = vmatprep.subr.mxu0 0.0
      %813 = vmatpush1.msra.mxu0 %v743
      %814 = vmatprep.subr.mxu0 0.0
      %815 = vmatpush1.msra.mxu0 %v744
      %816 = vmatprep.subr.mxu0 0.0
      %817 = vmatpush1.msra.mxu0 %v745
      %818 = vmatprep.subr.mxu0 0.0
      %819 = vmatpush1.msra.mxu0 %v746
      %820 = vmatprep.subr.mxu0 0.0
      %821 = vmatpush1.msra.mxu0 %v747
      %822 = vmatprep.subr.mxu0 0.0
      %823 = vmatpush1.msra.mxu0 %v748
      %824 = vmatprep.subr.mxu0 0.0
      %825 = vmatpush1.msra.mxu0 %v749
      %826 = vmatprep.subr.mxu0 0.0
      %827 = vmatpush1.msra.mxu0 %v750
      %828 = vmatprep.subr.mxu0 0.0
      %829 = vmatpush1.msra.mxu0 %v751
      %830 = vmatprep.subr.mxu0 0.0
      %831 = vmatpush1.msra.mxu0 %v752
      %832 = vmatprep.subr.mxu0 0.0
      %833 = vmatpush1.msra.mxu0 %v753
      %834 = vmatprep.subr.mxu0 0.0
      %835 = vmatpush1.msra.mxu0 %v754
      %836 = vmatprep.subr.mxu0 0.0
      %837 = vmatpush1.msra.mxu0 %v755
      %838 = vmatprep.mubr.f32.mxu0 %v641
      %839 = vmatmul.mubr.f32.gmra.mrb[0].mxu0 %v639
      %v840 = vpop.f32.mrb[0].mxu0
      %v841 = vadd.f32 %v772, %v840
      %v842 = vpop.f32.mrb[0].mxu0
      %843 = vmatprep.mubr.f32.mxu0 %v647
      %844 = vmatmul.mubr.f32.gmra.mrb[0].mxu0 %v645
      %v845 = vpop.f32.mrb[0].mxu0
      %v846 = vadd.f32 %v773, %v845
      %v847 = vpop.f32.mrb[0].mxu0
      %848 = vdwg.mxu0
      %849 = vmatprep.subr.mxu0 0.0
      %850 = vmatpush1.msra.mxu0 %v756
      %851 = vmatprep.subr.mxu0 0.0
      %852 = vmatpush1.msra.mxu0 %v757
      %853 = vmatprep.subr.mxu0 0.0
      %854 = vmatpush1.msra.mxu0 %v758
      %855 = vmatprep.subr.mxu0 0.0
      %856 = vmatpush1.msra.mxu0 %v759
      %857 = vmatprep.subr.mxu0 0.0
      %858 = vmatpush1.msra.mxu0 %v760
      %859 = vmatprep.subr.mxu0 0.0
      %860 = vmatpush1.msra.mxu0 %v761
      %861 = vmatprep.subr.mxu0 0.0
      %862 = vmatpush1.msra.mxu0 %v762
      %863 = vmatprep.subr.mxu0 0.0
      %864 = vmatpush1.msra.mxu0 %v763
      %865 = vmatprep.subr.mxu0 0.0
      %866 = vmatpush1.msra.mxu0 %v764
      %867 = vmatprep.subr.mxu0 0.0
      %868 = vmatpush1.msra.mxu0 %v765
      %869 = vmatprep.subr.mxu0 0.0
      %870 = vmatpush1.msra.mxu0 %v766
      %871 = vmatprep.subr.mxu0 0.0
      %872 = vmatpush1.msra.mxu0 %v767
      %873 = vmatprep.subr.mxu0 0.0
      %874 = vmatpush1.msra.mxu0 %v768
      %875 = vmatprep.subr.mxu0 0.0
      %876 = vmatpush1.msra.mxu0 %v769
      %877 = vmatprep.subr.mxu0 0.0
      %878 = vmatpush1.msra.mxu0 %v770
      %879 = vmatprep.subr.mxu0 0.0
      %880 = vmatpush1.msra.mxu0 %v771
      %881 = vmatprep.subr.mxu0 0.0
      %882 = vmatpush1.msra.mxu0 0.0
      %883 = vmatprep.subr.mxu0 0.0
      %884 = vmatpush1.msra.mxu0 0.0
      %885 = vmatprep.subr.mxu0 0.0
      %886 = vmatpush1.msra.mxu0 0.0
      %887 = vmatprep.subr.mxu0 0.0
      %888 = vmatpush1.msra.mxu0 0.0
      %889 = vmatprep.subr.mxu0 0.0
      %890 = vmatpush1.msra.mxu0 0.0
      %891 = vmatprep.subr.mxu0 0.0
      %892 = vmatpush1.msra.mxu0 0.0
      %893 = vmatprep.subr.mxu0 0.0
      %894 = vmatpush1.msra.mxu0 0.0
      %895 = vmatprep.subr.mxu0 0.0
      %896 = vmatpush1.msra.mxu0 0.0
      %897 = vmatprep.subr.mxu0 0.0
      %898 = vmatpush1.msra.mxu0 0.0
      %899 = vmatprep.subr.mxu0 0.0
      %900 = vmatpush1.msra.mxu0 0.0
      %901 = vmatprep.subr.mxu0 0.0
      %902 = vmatpush1.msra.mxu0 0.0
      %903 = vmatprep.subr.mxu0 0.0
      %904 = vmatpush1.msra.mxu0 0.0
      %905 = vmatprep.subr.mxu0 0.0
      %906 = vmatpush1.msra.mxu0 0.0
      %907 = vmatprep.subr.mxu0 0.0
      %908 = vmatpush1.msra.mxu0 0.0
      %909 = vmatprep.subr.mxu0 0.0
      %910 = vmatpush1.msra.mxu0 0.0
      %911 = vmatprep.subr.mxu0 0.0
      %912 = vmatpush1.msra.mxu0 0.0
      %913 = vmatprep.mubr.f32.mxu0 0.0
      %914 = vmatmul.mubr.f32.gmra.mrb[0].mxu0 %v716
      %v915 = vpop.f32.mrb[0].mxu0
      %v916 = vadd.f32 %v841, %v915
      %v917 = vpop.f32.mrb[0].mxu0
      %918 = vmatprep.mubr.f32.mxu0 0.0
      %919 = vmatmul.mubr.f32.gmra.mrb[0].mxu0 %v721
      %v920 = vpop.f32.mrb[0].mxu0
      %v921 = vadd.f32 %v846, %v920
      %v922 = vpop.f32.mrb[0].mxu0
      %923 = vdwg.mxu0
      %v924 = vmax.f32 %v916, 0.0
      %v925 = vmax.f32 %v921, 0.0
      %v926 = vld [vmem:[%s1 + $0x20] sm:$0xff]
      %v927 = vld [vmem:[%s1 + $0x28] sm:$0xff]
      %v928 = vld [vmem:[%s1 + $0x30] sm:$0xff]
      %v929 = vld [vmem:[%s1 + $0x38] sm:$0xff]
      %930 = vrot.lane.b32.xlu0 %v924, 11
      %v931 = vpop.permute.xlu0 %930
      %932 = vrot.lane.b32.xlu0 %v925, 11
      %v933 = vpop.permute.xlu0 %932
      %934 = vrot.lane.b32.xlu0 %v924, 10
      %v935 = vpop.permute.xlu0 %934
      %936 = vrot.lane.b32.xlu0 %v925, 10
      %v937 = vpop.permute.xlu0 %936
      %938 = vrot.lane.b32.xlu0 %v924, 9
      %v939 = vpop.permute.xlu0 %938
      %940 = vrot.lane.b32.xlu0 %v925, 9
      %v941 = vpop.permute.xlu0 %940
      %942 = vrot.lane.b32.xlu0 %v924, 1
      %v943 = vpop.permute.xlu0 %942
      %944 = vrot.lane.b32.xlu0 %v925, 1
      %v945 = vpop.permute.xlu0 %944
      %946 = vrot.lane.b32.xlu0 %v924, 127
      %v947 = vpop.permute.xlu0 %946
      %948 = vrot.lane.b32.xlu0 %v925, 127
      %v949 = vpop.permute.xlu0 %948
      %950 = vrot.lane.b32.xlu0 %v924, 119
      %v951 = vpop.permute.xlu0 %950
      %952 = vrot.lane.b32.xlu0 %v925, 119
      %v953 = vpop.permute.xlu0 %952
      %954 = vrot.lane.b32.xlu0 %v924, 118
      %v955 = vpop.permute.xlu0 %954
      %956 = vrot.lane.b32.xlu0 %v925, 118
      %v957 = vpop.permute.xlu0 %956
      %958 = vrot.lane.b32.xlu0 %v924, 117
      %v959 = vpop.permute.xlu0 %958
      %960 = vrot.lane.b32.xlu0 %v925, 117
      %v961 = vpop.permute.xlu0 %960
      %v962 = vld [vmem:[%s1 + $0x110] sm:$0xff]
      %v963 = vld [vmem:[%s1 + $0x120] sm:$0xff]
      %965 = vset.pattern.permute.xlu0 0
      %966 = vperm.xlu0 %965, %v962
      %v967 = vpop.permute.xlu0 %966
      %970 = vset.pattern.permute.xlu0 0
      %971 = vperm.xlu0 %970, %v963
      %v972 = vpop.permute.xlu0 %971
      %vm974 = vcmask 130048
      %v976 = vsel %vm974, %v927, 0
      %v979 = vsel %vm974, %v929, 0
      %981 = vmatprep.subr.mxu0 0.0
      %982 = vmatpush1.msra.mxu0 %v931
      %983 = vmatprep.subr.mxu0 0.0
      %984 = vmatpush1.msra.mxu0 %v933
      %985 = vmatprep.subr.mxu0 0.0
      %986 = vmatpush1.msra.mxu0 %v935
      %987 = vmatprep.subr.mxu0 0.0
      %988 = vmatpush1.msra.mxu0 %v937
      %989 = vmatprep.subr.mxu0 0.0
      %990 = vmatpush1.msra.mxu0 %v939
      %991 = vmatprep.subr.mxu0 0.0
      %992 = vmatpush1.msra.mxu0 %v941
      %993 = vmatprep.subr.mxu0 0.0
      %994 = vmatpush1.msra.mxu0 %v943
      %995 = vmatprep.subr.mxu0 0.0
      %996 = vmatpush1.msra.mxu0 %v945
      %997 = vmatprep.subr.mxu0 0.0
      %998 = vmatpush1.msra.mxu0 %v924
      %999 = vmatprep.subr.mxu0 0.0
      %1000 = vmatpush1.msra.mxu0 %v925
      %1001 = vmatprep.subr.mxu0 0.0
      %1002 = vmatpush1.msra.mxu0 %v947
      %1003 = vmatprep.subr.mxu0 0.0
      %1004 = vmatpush1.msra.mxu0 %v949
      %1005 = vmatprep.subr.mxu0 0.0
      %1006 = vmatpush1.msra.mxu0 %v951
      %1007 = vmatprep.subr.mxu0 0.0
      %1008 = vmatpush1.msra.mxu0 %v953
      %1009 = vmatprep.subr.mxu0 0.0
      %1010 = vmatpush1.msra.mxu0 %v955
      %1011 = vmatprep.subr.mxu0 0.0
      %1012 = vmatpush1.msra.mxu0 %v957
      %1013 = vmatprep.subr.mxu0 0.0
      %1014 = vmatpush1.msra.mxu0 %v959
      %1015 = vmatprep.subr.mxu0 0.0
      %1016 = vmatpush1.msra.mxu0 %v961
      %1017 = vmatprep.subr.mxu0 0.0
      %1018 = vmatpush1.msra.mxu0 0.0
      %1019 = vmatprep.subr.mxu0 0.0
      %1020 = vmatpush1.msra.mxu0 0.0
      %1021 = vmatprep.subr.mxu0 0.0
      %1022 = vmatpush1.msra.mxu0 0.0
      %1023 = vmatprep.subr.mxu0 0.0
      %1024 = vmatpush1.msra.mxu0 0.0
      %1025 = vmatprep.subr.mxu0 0.0
      %1026 = vmatpush1.msra.mxu0 0.0
      %1027 = vmatprep.subr.mxu0 0.0
      %1028 = vmatpush1.msra.mxu0 0.0
      %1029 = vmatprep.subr.mxu0 0.0
      %1030 = vmatpush1.msra.mxu0 0.0
      %1031 = vmatprep.subr.mxu0 0.0
      %1032 = vmatpush1.msra.mxu0 0.0
      %1033 = vmatprep.subr.mxu0 0.0
      %1034 = vmatpush1.msra.mxu0 0.0
      %1035 = vmatprep.subr.mxu0 0.0
      %1036 = vmatpush1.msra.mxu0 0.0
      %1037 = vmatprep.subr.mxu0 0.0
      %1038 = vmatpush1.msra.mxu0 0.0
      %1039 = vmatprep.subr.mxu0 0.0
      %1040 = vmatpush1.msra.mxu0 0.0
      %1041 = vmatprep.subr.mxu0 0.0
      %1042 = vmatpush1.msra.mxu0 0.0
      %1043 = vmatprep.subr.mxu0 0.0
      %1044 = vmatpush1.msra.mxu0 0.0
      %1045 = vmatprep.mubr.f32.mxu0 %v976
      %1046 = vmatmul.mubr.f32.gmra.mrb[0].mxu0 %v926
      %v1047 = vpop.f32.mrb[0].mxu0
      %v1048 = vadd.f32 %v967, %v1047
      %v1049 = vpop.f32.mrb[0].mxu0
      %1050 = vmatprep.mubr.f32.mxu0 %v979
      %1051 = vmatmul.mubr.f32.gmra.mrb[0].mxu0 %v928
      %v1052 = vpop.f32.mrb[0].mxu0
      %v1053 = vadd.f32 %v972, %v1052
      %v1054 = vpop.f32.mrb[0].mxu0
      %1055 = vdwg.mxu0
      %v1056 = vmax.f32 %v1048, 0.0
      %v1057 = vmax.f32 %v1053, 0.0
      %v1058 = vmul.f32 %v1056, %v376
      %v1059 = vmul.f32 %v1057, %v376
      %v1060 = vld [vmem:[%s1 + $0x40] sm:$0xff]
      %v1061 = vld [vmem:[%s1 + $0x48] sm:$0xff]
      %v1062 = vld [vmem:[%s1 + $0x50] sm:$0xff]
      %v1063 = vld [vmem:[%s1 + $0x58] sm:$0xff]
      %1064 = vrot.lane.b32.xlu0 %v1058, 11
      %v1065 = vpop.permute.xlu0 %1064
      %1066 = vrot.lane.b32.xlu0 %v1059, 11
      %v1067 = vpop.permute.xlu0 %1066
      %1068 = vrot.lane.b32.xlu0 %v1058, 10
      %v1069 = vpop.permute.xlu0 %1068
      %1070 = vrot.lane.b32.xlu0 %v1059, 10
      %v1071 = vpop.permute.xlu0 %1070
      %1072 = vrot.lane.b32.xlu0 %v1058, 9
      %v1073 = vpop.permute.xlu0 %1072
      %1074 = vrot.lane.b32.xlu0 %v1059, 9
      %v1075 = vpop.permute.xlu0 %1074
      %1076 = vrot.lane.b32.xlu0 %v1058, 1
      %v1077 = vpop.permute.xlu0 %1076
      %1078 = vrot.lane.b32.xlu0 %v1059, 1
      %v1079 = vpop.permute.xlu0 %1078
      %1080 = vrot.lane.b32.xlu0 %v1058, 127
      %v1081 = vpop.permute.xlu0 %1080
      %1082 = vrot.lane.b32.xlu0 %v1059, 127
      %v1083 = vpop.permute.xlu0 %1082
      %1084 = vrot.lane.b32.xlu0 %v1058, 119
      %v1085 = vpop.permute.xlu0 %1084
      %1086 = vrot.lane.b32.xlu0 %v1059, 119
      %v1087 = vpop.permute.xlu0 %1086
      %1088 = vrot.lane.b32.xlu0 %v1058, 118
      %v1089 = vpop.permute.xlu0 %1088
      %1090 = vrot.lane.b32.xlu0 %v1059, 118
      %v1091 = vpop.permute.xlu0 %1090
      %1092 = vrot.lane.b32.xlu0 %v1058, 117
      %v1093 = vpop.permute.xlu0 %1092
      %1094 = vrot.lane.b32.xlu0 %v1059, 117
      %v1095 = vpop.permute.xlu0 %1094
      %v1096 = vld [vmem:[%s1 + $0x130] sm:$0xff]
      %v1097 = vld [vmem:[%s1 + $0x140] sm:$0xff]
      %1099 = vset.pattern.permute.xlu0 0
      %1100 = vperm.xlu0 %1099, %v1096
      %v1101 = vpop.permute.xlu0 %1100
      %1104 = vset.pattern.permute.xlu0 0
      %1105 = vperm.xlu0 %1104, %v1097
      %v1106 = vpop.permute.xlu0 %1105
      %v1109 = vsel %vm974, %v1061, 0
      %v1112 = vsel %vm974, %v1063, 0
      %1114 = vmatprep.subr.mxu0 0.0
      %1115 = vmatpush1.msra.mxu0 %v1065
      %1116 = vmatprep.subr.mxu0 0.0
      %1117 = vmatpush1.msra.mxu0 %v1067
      %1118 = vmatprep.subr.mxu0 0.0
      %1119 = vmatpush1.msra.mxu0 %v1069
      %1120 = vmatprep.subr.mxu0 0.0
      %1121 = vmatpush1.msra.mxu0 %v1071
      %1122 = vmatprep.subr.mxu0 0.0
      %1123 = vmatpush1.msra.mxu0 %v1073
      %1124 = vmatprep.subr.mxu0 0.0
      %1125 = vmatpush1.msra.mxu0 %v1075
      %1126 = vmatprep.subr.mxu0 0.0
      %1127 = vmatpush1.msra.mxu0 %v1077
      %1128 = vmatprep.subr.mxu0 0.0
      %1129 = vmatpush1.msra.mxu0 %v1079
      %1130 = vmatprep.subr.mxu0 0.0
      %1131 = vmatpush1.msra.mxu0 %v1058
      %1132 = vmatprep.subr.mxu0 0.0
      %1133 = vmatpush1.msra.mxu0 %v1059
      %1134 = vmatprep.subr.mxu0 0.0
      %1135 = vmatpush1.msra.mxu0 %v1081
      %1136 = vmatprep.subr.mxu0 0.0
      %1137 = vmatpush1.msra.mxu0 %v1083
      %1138 = vmatprep.subr.mxu0 0.0
      %1139 = vmatpush1.msra.mxu0 %v1085
      %1140 = vmatprep.subr.mxu0 0.0
      %1141 = vmatpush1.msra.mxu0 %v1087
      %1142 = vmatprep.subr.mxu0 0.0
      %1143 = vmatpush1.msra.mxu0 %v1089
      %1144 = vmatprep.subr.mxu0 0.0
      %1145 = vmatpush1.msra.mxu0 %v1091
      %1146 = vmatprep.subr.mxu0 0.0
      %1147 = vmatpush1.msra.mxu0 %v1093
      %1148 = vmatprep.subr.mxu0 0.0
      %1149 = vmatpush1.msra.mxu0 %v1095
      %1150 = vmatprep.subr.mxu0 0.0
      %1151 = vmatpush1.msra.mxu0 0.0
      %1152 = vmatprep.subr.mxu0 0.0
      %1153 = vmatpush1.msra.mxu0 0.0
      %1154 = vmatprep.subr.mxu0 0.0
      %1155 = vmatpush1.msra.mxu0 0.0
      %1156 = vmatprep.subr.mxu0 0.0
      %1157 = vmatpush1.msra.mxu0 0.0
      %1158 = vmatprep.subr.mxu0 0.0
      %1159 = vmatpush1.msra.mxu0 0.0
      %1160 = vmatprep.subr.mxu0 0.0
      %1161 = vmatpush1.msra.mxu0 0.0
      %1162 = vmatprep.subr.mxu0 0.0
      %1163 = vmatpush1.msra.mxu0 0.0
      %1164 = vmatprep.subr.mxu0 0.0
      %1165 = vmatpush1.msra.mxu0 0.0
      %1166 = vmatprep.subr.mxu0 0.0
      %1167 = vmatpush1.msra.mxu0 0.0
      %1168 = vmatprep.subr.mxu0 0.0
      %1169 = vmatpush1.msra.mxu0 0.0
      %1170 = vmatprep.subr.mxu0 0.0
      %1171 = vmatpush1.msra.mxu0 0.0
      %1172 = vmatprep.subr.mxu0 0.0
      %1173 = vmatpush1.msra.mxu0 0.0
      %1174 = vmatprep.subr.mxu0 0.0
      %1175 = vmatpush1.msra.mxu0 0.0
      %1176 = vmatprep.subr.mxu0 0.0
      %1177 = vmatpush1.msra.mxu0 0.0
      %1178 = vmatprep.mubr.f32.mxu0 %v1109
      %1179 = vmatmul.mubr.f32.gmra.mrb[0].mxu0 %v1060
      %v1180 = vpop.f32.mrb[0].mxu0
      %v1181 = vadd.f32 %v1101, %v1180
      %v1182 = vpop.f32.mrb[0].mxu0
      %1183 = vmatprep.mubr.f32.mxu0 %v1112
      %1184 = vmatmul.mubr.f32.gmra.mrb[0].mxu0 %v1062
      %v1185 = vpop.f32.mrb[0].mxu0
      %v1186 = vadd.f32 %v1106, %v1185
      %v1187 = vpop.f32.mrb[0].mxu0
      %1188 = vdwg.mxu0
      %v1189 = vmax.f32 %v1181, 0.0
      %v1190 = vmax.f32 %v1186, 0.0
      %v1191 = vmul.f32 %v1189, %v376
      %v1192 = vmul.f32 %v1190, %v376
      %v1193 = vld [vmem:[%s1 + $0x60] sm:$0xf]
      %v1194 = vld [vmem:[%s1 + $0x68] sm:$0xf]
      %1195 = vrot.lane.b32.xlu0 %v1191, 11
      %v1196 = vpop.permute.xlu0 %1195
      %1197 = vrot.lane.b32.xlu0 %v1192, 11
      %v1198 = vpop.permute.xlu0 %1197
      %1199 = vrot.lane.b32.xlu0 %v1191, 10
      %v1200 = vpop.permute.xlu0 %1199
      %1201 = vrot.lane.b32.xlu0 %v1192, 10
      %v1202 = vpop.permute.xlu0 %1201
      %1203 = vrot.lane.b32.xlu0 %v1191, 9
      %v1204 = vpop.permute.xlu0 %1203
      %1205 = vrot.lane.b32.xlu0 %v1192, 9
      %v1206 = vpop.permute.xlu0 %1205
      %1207 = vrot.lane.b32.xlu0 %v1191, 1
      %v1208 = vpop.permute.xlu0 %1207
      %1209 = vrot.lane.b32.xlu0 %v1192, 1
      %v1210 = vpop.permute.xlu0 %1209
      %1211 = vrot.lane.b32.xlu0 %v1191, 127
      %v1212 = vpop.permute.xlu0 %1211
      %1213 = vrot.lane.b32.xlu0 %v1192, 127
      %v1214 = vpop.permute.xlu0 %1213
      %1215 = vrot.lane.b32.xlu0 %v1191, 119
      %v1216 = vpop.permute.xlu0 %1215
      %1217 = vrot.lane.b32.xlu0 %v1192, 119
      %v1218 = vpop.permute.xlu0 %1217
      %1219 = vrot.lane.b32.xlu0 %v1191, 118
      %v1220 = vpop.permute.xlu0 %1219
      %1221 = vrot.lane.b32.xlu0 %v1192, 118
      %v1222 = vpop.permute.xlu0 %1221
      %1223 = vrot.lane.b32.xlu0 %v1191, 117
      %v1224 = vpop.permute.xlu0 %1223
      %1225 = vrot.lane.b32.xlu0 %v1192, 117
      %v1226 = vpop.permute.xlu0 %1225
      %v1228 = vsel %vm974, %v1194, 0
      %1230 = vmatprep.subr.mxu0 0.0
      %1231 = vmatpush1.msra.mxu0 %v1196
      %1232 = vmatprep.subr.mxu0 0.0
      %1233 = vmatpush1.msra.mxu0 %v1198
      %1234 = vmatprep.subr.mxu0 0.0
      %1235 = vmatpush1.msra.mxu0 %v1200
      %1236 = vmatprep.subr.mxu0 0.0
      %1237 = vmatpush1.msra.mxu0 %v1202
      %1238 = vmatprep.subr.mxu0 0.0
      %1239 = vmatpush1.msra.mxu0 %v1204
      %1240 = vmatprep.subr.mxu0 0.0
      %1241 = vmatpush1.msra.mxu0 %v1206
      %1242 = vmatprep.subr.mxu0 0.0
      %1243 = vmatpush1.msra.mxu0 %v1208
      %1244 = vmatprep.subr.mxu0 0.0
      %1245 = vmatpush1.msra.mxu0 %v1210
      %1246 = vmatprep.subr.mxu0 0.0
      %1247 = vmatpush1.msra.mxu0 %v1191
      %1248 = vmatprep.subr.mxu0 0.0
      %1249 = vmatpush1.msra.mxu0 %v1192
      %1250 = vmatprep.subr.mxu0 0.0
      %1251 = vmatpush1.msra.mxu0 %v1212
      %1252 = vmatprep.subr.mxu0 0.0
      %1253 = vmatpush1.msra.mxu0 %v1214
      %1254 = vmatprep.subr.mxu0 0.0
      %1255 = vmatpush1.msra.mxu0 %v1216
      %1256 = vmatprep.subr.mxu0 0.0
      %1257 = vmatpush1.msra.mxu0 %v1218
      %1258 = vmatprep.subr.mxu0 0.0
      %1259 = vmatpush1.msra.mxu0 %v1220
      %1260 = vmatprep.subr.mxu0 0.0
      %1261 = vmatpush1.msra.mxu0 %v1222
      %1262 = vmatprep.subr.mxu0 0.0
      %1263 = vmatpush1.msra.mxu0 %v1224
      %1264 = vmatprep.subr.mxu0 0.0
      %1265 = vmatpush1.msra.mxu0 %v1226
      %1266 = vmatprep.subr.mxu0 0.0
      %1267 = vmatpush1.msra.mxu0 0.0
      %1268 = vmatprep.subr.mxu0 0.0
      %1269 = vmatpush1.msra.mxu0 0.0
      %1270 = vmatprep.subr.mxu0 0.0
      %1271 = vmatpush1.msra.mxu0 0.0
      %1272 = vmatprep.subr.mxu0 0.0
      %1273 = vmatpush1.msra.mxu0 0.0
      %1274 = vmatprep.subr.mxu0 0.0
      %1275 = vmatpush1.msra.mxu0 0.0
      %1276 = vmatprep.subr.mxu0 0.0
      %1277 = vmatpush1.msra.mxu0 0.0
      %1278 = vmatprep.subr.mxu0 0.0
      %1279 = vmatpush1.msra.mxu0 0.0
      %1280 = vmatprep.subr.mxu0 0.0
      %1281 = vmatpush1.msra.mxu0 0.0
      %1282 = vmatprep.subr.mxu0 0.0
      %1283 = vmatpush1.msra.mxu0 0.0
      %1284 = vmatprep.subr.mxu0 0.0
      %1285 = vmatpush1.msra.mxu0 0.0
      %1286 = vmatprep.subr.mxu0 0.0
      %1287 = vmatpush1.msra.mxu0 0.0
      %1288 = vmatprep.subr.mxu0 0.0
      %1289 = vmatpush1.msra.mxu0 0.0
      %1290 = vmatprep.subr.mxu0 0.0
      %1291 = vmatpush1.msra.mxu0 0.0
      %1292 = vmatprep.subr.mxu0 0.0
      %1293 = vmatpush1.msra.mxu0 0.0
      %1294 = vmatprep.mubr.f32.mxu0 %v1228
      %1295 = vmatmul.mubr.f32.gmra.mrb[0].mxu0 %v1193
      %v1296 = vpop.f32.mrb[0].mxu0
      %v1297 = vadd.f32 0.0, %v1296
      %v1298 = vpop.f32.mrb[0].mxu0
      %1299 = vdwg.mxu0
      %v1300 = vld [vmem:[%s3] sm:$0xff]
      %v1301 = vld [vmem:[%s3 + $0x8] sm:$0xff]
      %v1302 = vld [vmem:[%s3 + $0x10] sm:$0xff]
      %v1303 = vld [vmem:[%s3 + $0x18] sm:$0xff]
      %v1304 = vld [vmem:[%s3 + $0x20] sm:$0xff]
      %v1305 = vld [vmem:[%s3 + $0x28] sm:$0xff]
      %v1306 = vld [vmem:[%s3 + $0x30] sm:$0xff]
      %v1307 = vld [vmem:[%s3 + $0x38] sm:$0xff]
      %v1308 = vld [vmem:[%s3 + $0x40] sm:$0xff]
      %v1309 = vld [vmem:[%s3 + $0x48] sm:$0xff]
      %v1310 = vld [vmem:[%s3 + $0x50] sm:$0xff]
      %v1311 = vld [vmem:[%s3 + $0x58] sm:$0xff]
      %v1312 = vld [vmem:[%s3 + $0x60] sm:$0xff]
      %v1313 = vld [vmem:[%s3 + $0x68] sm:$0xff]
      %v1314 = vld [vmem:[%s3 + $0x70] sm:$0xff]
      %v1315 = vld [vmem:[%s3 + $0x78] sm:$0xff]
      %v1316 = vld [vmem:[%s1 + $0x100] sm:$0xf]
      %1317 = vmatprep.subr.mxu0 0.0
      %1318 = vmatpush1.msra.mxu0 %v1300
      %1319 = vmatprep.subr.mxu0 0.0
      %1320 = vmatpush1.msra.mxu0 %v1301
      %1321 = vmatprep.subr.mxu0 0.0
      %1322 = vmatpush1.msra.mxu0 %v1302
      %1323 = vmatprep.subr.mxu0 0.0
      %1324 = vmatpush1.msra.mxu0 %v1303
      %1325 = vmatprep.subr.mxu0 0.0
      %1326 = vmatpush1.msra.mxu0 %v1304
      %1327 = vmatprep.subr.mxu0 0.0
      %1328 = vmatpush1.msra.mxu0 %v1305
      %1329 = vmatprep.subr.mxu0 0.0
      %1330 = vmatpush1.msra.mxu0 %v1306
      %1331 = vmatprep.subr.mxu0 0.0
      %1332 = vmatpush1.msra.mxu0 %v1307
      %1333 = vmatprep.subr.mxu0 0.0
      %1334 = vmatpush1.msra.mxu0 %v1308
      %1335 = vmatprep.subr.mxu0 0.0
      %1336 = vmatpush1.msra.mxu0 %v1309
      %1337 = vmatprep.subr.mxu0 0.0
      %1338 = vmatpush1.msra.mxu0 %v1310
      %1339 = vmatprep.subr.mxu0 0.0
      %1340 = vmatpush1.msra.mxu0 %v1311
      %1341 = vmatprep.subr.mxu0 0.0
      %1342 = vmatpush1.msra.mxu0 %v1312
      %1343 = vmatprep.subr.mxu0 0.0
      %1344 = vmatpush1.msra.mxu0 %v1313
      %1345 = vmatprep.subr.mxu0 0.0
      %1346 = vmatpush1.msra.mxu0 %v1314
      %1347 = vmatprep.subr.mxu0 0.0
      %1348 = vmatpush1.msra.mxu0 %v1315
      %1349 = vmatprep.subr.mxu0 0.0
      %1350 = vmatpush1.msra.mxu0 0.0
      %1351 = vmatprep.subr.mxu0 0.0
      %1352 = vmatpush1.msra.mxu0 0.0
      %1353 = vmatprep.subr.mxu0 0.0
      %1354 = vmatpush1.msra.mxu0 0.0
      %1355 = vmatprep.subr.mxu0 0.0
      %1356 = vmatpush1.msra.mxu0 0.0
      %1357 = vmatprep.subr.mxu0 0.0
      %1358 = vmatpush1.msra.mxu0 0.0
      %1359 = vmatprep.subr.mxu0 0.0
      %1360 = vmatpush1.msra.mxu0 0.0
      %1361 = vmatprep.subr.mxu0 0.0
      %1362 = vmatpush1.msra.mxu0 0.0
      %1363 = vmatprep.subr.mxu0 0.0
      %1364 = vmatpush1.msra.mxu0 0.0
      %1365 = vmatprep.subr.mxu0 0.0
      %1366 = vmatpush1.msra.mxu0 0.0
      %1367 = vmatprep.subr.mxu0 0.0
      %1368 = vmatpush1.msra.mxu0 0.0
      %1369 = vmatprep.subr.mxu0 0.0
      %1370 = vmatpush1.msra.mxu0 0.0
      %1371 = vmatprep.subr.mxu0 0.0
      %1372 = vmatpush1.msra.mxu0 0.0
      %1373 = vmatprep.subr.mxu0 0.0
      %1374 = vmatpush1.msra.mxu0 0.0
      %1375 = vmatprep.subr.mxu0 0.0
      %1376 = vmatpush1.msra.mxu0 0.0
      %1377 = vmatprep.subr.mxu0 0.0
      %1378 = vmatpush1.msra.mxu0 0.0
      %1379 = vmatprep.subr.mxu0 0.0
      %1380 = vmatpush1.msra.mxu0 0.0
      %1381 = vmatprep.mubr.f32.mxu0 0.0
      %1382 = vmatmul.mubr.f32.gmra.mrb[0].mxu0 %v1297
      %v1383 = vpop.f32.mrb[0].mxu0
      %v1384 = vadd.f32 %v1316, %v1383
      %v1385 = vpop.f32.mrb[0].mxu0
      %1386 = vdwg.mxu0
      %v1387 = vmax.f32 %v1384, 0.0
      %v1388 = vld [vmem:[%s4] sm:$0xff]
      %v1389 = vld [vmem:[%s4 + $0x8] sm:$0xff]
      %v1390 = vld [vmem:[%s4 + $0x10] sm:$0xff]
      %v1391 = vld [vmem:[%s4 + $0x18] sm:$0xff]
      %v1392 = vld [vmem:[%s4 + $0x20] sm:$0xff]
      %v1393 = vld [vmem:[%s4 + $0x28] sm:$0xff]
      %v1394 = vld [vmem:[%s4 + $0x30] sm:$0xff]
      %v1395 = vld [vmem:[%s4 + $0x38] sm:$0xff]
      %vm1396 = vcmask 523264
      %v1398 = vsel %vm1396, %v1387, 0
      %1400 = vmatprep.subr.mxu0 0.0
      %1401 = vmatpush1.msra.mxu0 %v1388
      %1402 = vmatprep.subr.mxu0 0.0
      %1403 = vmatpush1.msra.mxu0 %v1389
      %1404 = vmatprep.subr.mxu0 0.0
      %1405 = vmatpush1.msra.mxu0 %v1390
      %1406 = vmatprep.subr.mxu0 0.0
      %1407 = vmatpush1.msra.mxu0 %v1391
      %1408 = vmatprep.subr.mxu0 0.0
      %1409 = vmatpush1.msra.mxu0 %v1392
      %1410 = vmatprep.subr.mxu0 0.0
      %1411 = vmatpush1.msra.mxu0 %v1393
      %1412 = vmatprep.subr.mxu0 0.0
      %1413 = vmatpush1.msra.mxu0 %v1394
      %1414 = vmatprep.subr.mxu0 0.0
      %1415 = vmatpush1.msra.mxu0 %v1395
      %1416 = vmatprep.subr.mxu0 0.0
      %1417 = vmatpush1.msra.mxu0 0.0
      %1418 = vmatprep.subr.mxu0 0.0
      %1419 = vmatpush1.msra.mxu0 0.0
      %1420 = vmatprep.subr.mxu0 0.0
      %1421 = vmatpush1.msra.mxu0 0.0
      %1422 = vmatprep.subr.mxu0 0.0
      %1423 = vmatpush1.msra.mxu0 0.0
      %1424 = vmatprep.subr.mxu0 0.0
      %1425 = vmatpush1.msra.mxu0 0.0
      %1426 = vmatprep.subr.mxu0 0.0
      %1427 = vmatpush1.msra.mxu0 0.0
      %1428 = vmatprep.subr.mxu0 0.0
      %1429 = vmatpush1.msra.mxu0 0.0
      %1430 = vmatprep.subr.mxu0 0.0
      %1431 = vmatpush1.msra.mxu0 0.0
      %1432 = vmatprep.subr.mxu0 0.0
      %1433 = vmatpush1.msra.mxu0 0.0
      %1434 = vmatprep.subr.mxu0 0.0
      %1435 = vmatpush1.msra.mxu0 0.0
      %1436 = vmatprep.subr.mxu0 0.0
      %1437 = vmatpush1.msra.mxu0 0.0
      %1438 = vmatprep.subr.mxu0 0.0
      %1439 = vmatpush1.msra.mxu0 0.0
      %1440 = vmatprep.subr.mxu0 0.0
      %1441 = vmatpush1.msra.mxu0 0.0
      %1442 = vmatprep.subr.mxu0 0.0
      %1443 = vmatpush1.msra.mxu0 0.0
      %1444 = vmatprep.subr.mxu0 0.0
      %1445 = vmatpush1.msra.mxu0 0.0
      %1446 = vmatprep.subr.mxu0 0.0
      %1447 = vmatpush1.msra.mxu0 0.0
      %1448 = vmatprep.subr.mxu0 0.0
      %1449 = vmatpush1.msra.mxu0 0.0
      %1450 = vmatprep.subr.mxu0 0.0
      %1451 = vmatpush1.msra.mxu0 0.0
      %1452 = vmatprep.subr.mxu0 0.0
      %1453 = vmatpush1.msra.mxu0 0.0
      %1454 = vmatprep.subr.mxu0 0.0
      %1455 = vmatpush1.msra.mxu0 0.0
      %1456 = vmatprep.subr.mxu0 0.0
      %1457 = vmatpush1.msra.mxu0 0.0
      %1458 = vmatprep.subr.mxu0 0.0
      %1459 = vmatpush1.msra.mxu0 0.0
      %1460 = vmatprep.subr.mxu0 0.0
      %1461 = vmatpush1.msra.mxu0 0.0
      %1462 = vmatprep.subr.mxu0 0.0
      %1463 = vmatpush1.msra.mxu0 0.0
      %1464 = vmatprep.mubr.f32.mxu0 0.0
      %1465 = vmatmul.mubr.f32.gmra.mrb[0].mxu0 %v1398
      %v1466 = vpop.f32.mrb[0].mxu0
      %v1467 = vadd.f32 0.0, %v1466
      %v1468 = vpop.f32.mrb[0].mxu0
      %1469 = vdwg.mxu0
      %v1470 = vld [vmem:[%s1 + $0x70] sm:$0xff]
      %v1471 = vld [vmem:[%s1 + $0x80] sm:$0xff]
      %1472 = vrot.lane.b32.xlu0 %v1467, 11
      %v1473 = vpop.permute.xlu0 %1472
      %1474 = vrot.lane.b32.xlu0 %v1467, 10
      %v1475 = vpop.permute.xlu0 %1474
      %1476 = vrot.lane.b32.xlu0 %v1467, 9
      %v1477 = vpop.permute.xlu0 %1476
      %1478 = vrot.lane.b32.xlu0 %v1467, 1
      %v1479 = vpop.permute.xlu0 %1478
      %1480 = vrot.lane.b32.xlu0 %v1467, 127
      %v1481 = vpop.permute.xlu0 %1480
      %1482 = vrot.lane.b32.xlu0 %v1467, 119
      %v1483 = vpop.permute.xlu0 %1482
      %1484 = vrot.lane.b32.xlu0 %v1467, 118
      %v1485 = vpop.permute.xlu0 %1484
      %1486 = vrot.lane.b32.xlu0 %v1467, 117
      %v1487 = vpop.permute.xlu0 %1486
      %v1489 = vrot.slane %v1475, 4
      %v1492 = vrot.slane %v1479, 4
      %v1495 = vrot.slane %v1481, 4
      %v1498 = vrot.slane %v1485, 4
      %v1500 = vsel %vm539, %v1473, %v1489
      %v1501 = vsel %vm539, %v1477, %v1492
      %v1502 = vsel %vm539, %v1467, %v1495
      %v1503 = vsel %vm539, %v1483, %v1498
      %v1504 = vld [vmem:[%s1 + $0x150] sm:$0xff]
      %v1505 = vld [vmem:[%s1 + $0x160] sm:$0xff]
      %1507 = vset.pattern.permute.xlu0 0
      %1508 = vperm.xlu0 %1507, %v1504
      %v1509 = vpop.permute.xlu0 %1508
      %1512 = vset.pattern.permute.xlu0 0
      %1513 = vperm.xlu0 %1512, %v1505
      %v1514 = vpop.permute.xlu0 %1513
      %vm1516 = vcmask 293888
      %v1518 = vsel %vm1516, %v1470, 0
      %v1521 = vsel %vm1516, %v1471, 0
      %v1524 = vsel %vm539, %v1487, 0
      %1526 = vmatprep.subr.mxu0 0.0
      %1527 = vmatpush1.msra.mxu0 %v1500
      %1528 = vmatprep.subr.mxu0 0.0
      %1529 = vmatpush1.msra.mxu0 %v1501
      %1530 = vmatprep.subr.mxu0 0.0
      %1531 = vmatpush1.msra.mxu0 %v1502
      %1532 = vmatprep.subr.mxu0 0.0
      %1533 = vmatpush1.msra.mxu0 %v1503
      %1534 = vmatprep.subr.mxu0 0.0
      %1535 = vmatpush1.msra.mxu0 %v1524
      %1536 = vmatprep.subr.mxu0 0.0
      %1537 = vmatpush1.msra.mxu0 0.0
      %1538 = vmatprep.subr.mxu0 0.0
      %1539 = vmatpush1.msra.mxu0 0.0
      %1540 = vmatprep.subr.mxu0 0.0
      %1541 = vmatpush1.msra.mxu0 0.0
      %1542 = vmatprep.subr.mxu0 0.0
      %1543 = vmatpush1.msra.mxu0 0.0
      %1544 = vmatprep.subr.mxu0 0.0
      %1545 = vmatpush1.msra.mxu0 0.0
      %1546 = vmatprep.subr.mxu0 0.0
      %1547 = vmatpush1.msra.mxu0 0.0
      %1548 = vmatprep.subr.mxu0 0.0
      %1549 = vmatpush1.msra.mxu0 0.0
      %1550 = vmatprep.subr.mxu0 0.0
      %1551 = vmatpush1.msra.mxu0 0.0
      %1552 = vmatprep.subr.mxu0 0.0
      %1553 = vmatpush1.msra.mxu0 0.0
      %1554 = vmatprep.subr.mxu0 0.0
      %1555 = vmatpush1.msra.mxu0 0.0
      %1556 = vmatprep.subr.mxu0 0.0
      %1557 = vmatpush1.msra.mxu0 0.0
      %1558 = vmatprep.subr.mxu0 0.0
      %1559 = vmatpush1.msra.mxu0 0.0
      %1560 = vmatprep.subr.mxu0 0.0
      %1561 = vmatpush1.msra.mxu0 0.0
      %1562 = vmatprep.subr.mxu0 0.0
      %1563 = vmatpush1.msra.mxu0 0.0
      %1564 = vmatprep.subr.mxu0 0.0
      %1565 = vmatpush1.msra.mxu0 0.0
      %1566 = vmatprep.subr.mxu0 0.0
      %1567 = vmatpush1.msra.mxu0 0.0
      %1568 = vmatprep.subr.mxu0 0.0
      %1569 = vmatpush1.msra.mxu0 0.0
      %1570 = vmatprep.subr.mxu0 0.0
      %1571 = vmatpush1.msra.mxu0 0.0
      %1572 = vmatprep.subr.mxu0 0.0
      %1573 = vmatpush1.msra.mxu0 0.0
      %1574 = vmatprep.subr.mxu0 0.0
      %1575 = vmatpush1.msra.mxu0 0.0
      %1576 = vmatprep.subr.mxu0 0.0
      %1577 = vmatpush1.msra.mxu0 0.0
      %1578 = vmatprep.subr.mxu0 0.0
      %1579 = vmatpush1.msra.mxu0 0.0
      %1580 = vmatprep.subr.mxu0 0.0
      %1581 = vmatpush1.msra.mxu0 0.0
      %1582 = vmatprep.subr.mxu0 0.0
      %1583 = vmatpush1.msra.mxu0 0.0
      %1584 = vmatprep.subr.mxu0 0.0
      %1585 = vmatpush1.msra.mxu0 0.0
      %1586 = vmatprep.subr.mxu0 0.0
      %1587 = vmatpush1.msra.mxu0 0.0
      %1588 = vmatprep.subr.mxu0 0.0
      %1589 = vmatpush1.msra.mxu0 0.0
      %1590 = vmatprep.mubr.f32.mxu0 0.0
      %1591 = vmatmul.mubr.f32.gmra.mrb[0].mxu0 %v1518
      %v1592 = vpop.f32.mrb[0].mxu0
      %v1593 = vadd.f32 %v1509, %v1592
      %v1594 = vpop.f32.mrb[0].mxu0
      %1595 = vmatprep.mubr.f32.mxu0 0.0
      %1596 = vmatmul.mubr.f32.gmra.mrb[0].mxu0 %v1521
      %v1597 = vpop.f32.mrb[0].mxu0
      %v1598 = vadd.f32 %v1514, %v1597
      %v1599 = vpop.f32.mrb[0].mxu0
      %1600 = vdwg.mxu0
      %v1601 = vmax.f32 %v1593, 0.0
      %v1602 = vmax.f32 %v1598, 0.0
      %v1603 = vmul.f32 %v1601, %v376
      %v1604 = vmul.f32 %v1602, %v376
      %v1605 = vld [vmem:[%s1 + $0x90] sm:$0xff]
      %v1606 = vld [vmem:[%s1 + $0x98] sm:$0xff]
      %v1607 = vld [vmem:[%s1 + $0xa0] sm:$0xff]
      %v1608 = vld [vmem:[%s1 + $0xa8] sm:$0xff]
      %1609 = vrot.lane.b32.xlu0 %v1603, 11
      %v1610 = vpop.permute.xlu0 %1609
      %1611 = vrot.lane.b32.xlu0 %v1604, 11
      %v1612 = vpop.permute.xlu0 %1611
      %1613 = vrot.lane.b32.xlu0 %v1603, 10
      %v1614 = vpop.permute.xlu0 %1613
      %1615 = vrot.lane.b32.xlu0 %v1604, 10
      %v1616 = vpop.permute.xlu0 %1615
      %1617 = vrot.lane.b32.xlu0 %v1603, 9
      %v1618 = vpop.permute.xlu0 %1617
      %1619 = vrot.lane.b32.xlu0 %v1604, 9
      %v1620 = vpop.permute.xlu0 %1619
      %1621 = vrot.lane.b32.xlu0 %v1603, 1
      %v1622 = vpop.permute.xlu0 %1621
      %1623 = vrot.lane.b32.xlu0 %v1604, 1
      %v1624 = vpop.permute.xlu0 %1623
      %1625 = vrot.lane.b32.xlu0 %v1603, 127
      %v1626 = vpop.permute.xlu0 %1625
      %1627 = vrot.lane.b32.xlu0 %v1604, 127
      %v1628 = vpop.permute.xlu0 %1627
      %1629 = vrot.lane.b32.xlu0 %v1603, 119
      %v1630 = vpop.permute.xlu0 %1629
      %1631 = vrot.lane.b32.xlu0 %v1604, 119
      %v1632 = vpop.permute.xlu0 %1631
      %1633 = vrot.lane.b32.xlu0 %v1603, 118
      %v1634 = vpop.permute.xlu0 %1633
      %1635 = vrot.lane.b32.xlu0 %v1604, 118
      %v1636 = vpop.permute.xlu0 %1635
      %1637 = vrot.lane.b32.xlu0 %v1603, 117
      %v1638 = vpop.permute.xlu0 %1637
      %1639 = vrot.lane.b32.xlu0 %v1604, 117
      %v1640 = vpop.permute.xlu0 %1639
      %v1641 = vld [vmem:[%s1 + $0x170] sm:$0xff]
      %v1642 = vld [vmem:[%s1 + $0x180] sm:$0xff]
      %1644 = vset.pattern.permute.xlu0 0
      %1645 = vperm.xlu0 %1644, %v1641
      %v1646 = vpop.permute.xlu0 %1645
      %1649 = vset.pattern.permute.xlu0 0
      %1650 = vperm.xlu0 %1649, %v1642
      %v1651 = vpop.permute.xlu0 %1650
      %v1654 = vsel %vm974, %v1606, 0
      %v1657 = vsel %vm974, %v1608, 0
      %1659 = vmatprep.subr.mxu0 0.0
      %1660 = vmatpush1.msra.mxu0 %v1610
      %1661 = vmatprep.subr.mxu0 0.0
      %1662 = vmatpush1.msra.mxu0 %v1612
      %1663 = vmatprep.subr.mxu0 0.0
      %1664 = vmatpush1.msra.mxu0 %v1614
      %1665 = vmatprep.subr.mxu0 0.0
      %1666 = vmatpush1.msra.mxu0 %v1616
      %1667 = vmatprep.subr.mxu0 0.0
      %1668 = vmatpush1.msra.mxu0 %v1618
      %1669 = vmatprep.subr.mxu0 0.0
      %1670 = vmatpush1.msra.mxu0 %v1620
      %1671 = vmatprep.subr.mxu0 0.0
      %1672 = vmatpush1.msra.mxu0 %v1622
      %1673 = vmatprep.subr.mxu0 0.0
      %1674 = vmatpush1.msra.mxu0 %v1624
      %1675 = vmatprep.subr.mxu0 0.0
      %1676 = vmatpush1.msra.mxu0 %v1603
      %1677 = vmatprep.subr.mxu0 0.0
      %1678 = vmatpush1.msra.mxu0 %v1604
      %1679 = vmatprep.subr.mxu0 0.0
      %1680 = vmatpush1.msra.mxu0 %v1626
      %1681 = vmatprep.subr.mxu0 0.0
      %1682 = vmatpush1.msra.mxu0 %v1628
      %1683 = vmatprep.subr.mxu0 0.0
      %1684 = vmatpush1.msra.mxu0 %v1630
      %1685 = vmatprep.subr.mxu0 0.0
      %1686 = vmatpush1.msra.mxu0 %v1632
      %1687 = vmatprep.subr.mxu0 0.0
      %1688 = vmatpush1.msra.mxu0 %v1634
      %1689 = vmatprep.subr.mxu0 0.0
      %1690 = vmatpush1.msra.mxu0 %v1636
      %1691 = vmatprep.subr.mxu0 0.0
      %1692 = vmatpush1.msra.mxu0 %v1638
      %1693 = vmatprep.subr.mxu0 0.0
      %1694 = vmatpush1.msra.mxu0 %v1640
      %1695 = vmatprep.subr.mxu0 0.0
      %1696 = vmatpush1.msra.mxu0 0.0
      %1697 = vmatprep.subr.mxu0 0.0
      %1698 = vmatpush1.msra.mxu0 0.0
      %1699 = vmatprep.subr.mxu0 0.0
      %1700 = vmatpush1.msra.mxu0 0.0
      %1701 = vmatprep.subr.mxu0 0.0
      %1702 = vmatpush1.msra.mxu0 0.0
      %1703 = vmatprep.subr.mxu0 0.0
      %1704 = vmatpush1.msra.mxu0 0.0
      %1705 = vmatprep.subr.mxu0 0.0
      %1706 = vmatpush1.msra.mxu0 0.0
      %1707 = vmatprep.subr.mxu0 0.0
      %1708 = vmatpush1.msra.mxu0 0.0
      %1709 = vmatprep.subr.mxu0 0.0
      %1710 = vmatpush1.msra.mxu0 0.0
      %1711 = vmatprep.subr.mxu0 0.0
      %1712 = vmatpush1.msra.mxu0 0.0
      %1713 = vmatprep.subr.mxu0 0.0
      %1714 = vmatpush1.msra.mxu0 0.0
      %1715 = vmatprep.subr.mxu0 0.0
      %1716 = vmatpush1.msra.mxu0 0.0
      %1717 = vmatprep.subr.mxu0 0.0
      %1718 = vmatpush1.msra.mxu0 0.0
      %1719 = vmatprep.subr.mxu0 0.0
      %1720 = vmatpush1.msra.mxu0 0.0
      %1721 = vmatprep.subr.mxu0 0.0
      %1722 = vmatpush1.msra.mxu0 0.0
      %1723 = vmatprep.mubr.f32.mxu0 %v1654
      %1724 = vmatmul.mubr.f32.gmra.mrb[0].mxu0 %v1605
      %v1725 = vpop.f32.mrb[0].mxu0
      %v1726 = vadd.f32 %v1646, %v1725
      %v1727 = vpop.f32.mrb[0].mxu0
      %1728 = vmatprep.mubr.f32.mxu0 %v1657
      %1729 = vmatmul.mubr.f32.gmra.mrb[0].mxu0 %v1607
      %v1730 = vpop.f32.mrb[0].mxu0
      %v1731 = vadd.f32 %v1651, %v1730
      %v1732 = vpop.f32.mrb[0].mxu0
      %1733 = vdwg.mxu0
      %v1734 = vmax.f32 %v1726, 0.0
      %v1735 = vmax.f32 %v1731, 0.0
      %v1736 = vmul.f32 %v1734, %v376
      %v1737 = vmul.f32 %v1735, %v376
      %v1738 = vld [vmem:[%s1 + $0xb0] sm:$0xff]
      %v1739 = vld [vmem:[%s1 + $0xb8] sm:$0xff]
      %v1740 = vld [vmem:[%s1 + $0xc0] sm:$0xff]
      %v1741 = vld [vmem:[%s1 + $0xc8] sm:$0xff]
      %1742 = vrot.lane.b32.xlu0 %v1736, 11
      %v1743 = vpop.permute.xlu0 %1742
      %1744 = vrot.lane.b32.xlu0 %v1737, 11
      %v1745 = vpop.permute.xlu0 %1744
      %1746 = vrot.lane.b32.xlu0 %v1736, 10
      %v1747 = vpop.permute.xlu0 %1746
      %1748 = vrot.lane.b32.xlu0 %v1737, 10
      %v1749 = vpop.permute.xlu0 %1748
      %1750 = vrot.lane.b32.xlu0 %v1736, 9
      %v1751 = vpop.permute.xlu0 %1750
      %1752 = vrot.lane.b32.xlu0 %v1737, 9
      %v1753 = vpop.permute.xlu0 %1752
      %1754 = vrot.lane.b32.xlu0 %v1736, 1
      %v1755 = vpop.permute.xlu0 %1754
      %1756 = vrot.lane.b32.xlu0 %v1737, 1
      %v1757 = vpop.permute.xlu0 %1756
      %1758 = vrot.lane.b32.xlu0 %v1736, 127
      %v1759 = vpop.permute.xlu0 %1758
      %1760 = vrot.lane.b32.xlu0 %v1737, 127
      %v1761 = vpop.permute.xlu0 %1760
      %1762 = vrot.lane.b32.xlu0 %v1736, 119
      %v1763 = vpop.permute.xlu0 %1762
      %1764 = vrot.lane.b32.xlu0 %v1737, 119
      %v1765 = vpop.permute.xlu0 %1764
      %1766 = vrot.lane.b32.xlu0 %v1736, 118
      %v1767 = vpop.permute.xlu0 %1766
      %1768 = vrot.lane.b32.xlu0 %v1737, 118
      %v1769 = vpop.permute.xlu0 %1768
      %1770 = vrot.lane.b32.xlu0 %v1736, 117
      %v1771 = vpop.permute.xlu0 %1770
      %1772 = vrot.lane.b32.xlu0 %v1737, 117
      %v1773 = vpop.permute.xlu0 %1772
      %v1774 = vld [vmem:[%s1 + $0x190] sm:$0xff]
      %v1775 = vld [vmem:[%s1 + $0x1a0] sm:$0xff]
      %1777 = vset.pattern.permute.xlu0 0
      %1778 = vperm.xlu0 %1777, %v1774
      %v1779 = vpop.permute.xlu0 %1778
      %1782 = vset.pattern.permute.xlu0 0
      %1783 = vperm.xlu0 %1782, %v1775
      %v1784 = vpop.permute.xlu0 %1783
      %v1787 = vsel %vm974, %v1739, 0
      %v1790 = vsel %vm974, %v1741, 0
      %1792 = vmatprep.subr.mxu0 0.0
      %1793 = vmatpush1.msra.mxu0 %v1743
      %1794 = vmatprep.subr.mxu0 0.0
      %1795 = vmatpush1.msra.mxu0 %v1745
      %1796 = vmatprep.subr.mxu0 0.0
      %1797 = vmatpush1.msra.mxu0 %v1747
      %1798 = vmatprep.subr.mxu0 0.0
      %1799 = vmatpush1.msra.mxu0 %v1749
      %1800 = vmatprep.subr.mxu0 0.0
      %1801 = vmatpush1.msra.mxu0 %v1751
      %1802 = vmatprep.subr.mxu0 0.0
      %1803 = vmatpush1.msra.mxu0 %v1753
      %1804 = vmatprep.subr.mxu0 0.0
      %1805 = vmatpush1.msra.mxu0 %v1755
      %1806 = vmatprep.subr.mxu0 0.0
      %1807 = vmatpush1.msra.mxu0 %v1757
      %1808 = vmatprep.subr.mxu0 0.0
      %1809 = vmatpush1.msra.mxu0 %v1736
      %1810 = vmatprep.subr.mxu0 0.0
      %1811 = vmatpush1.msra.mxu0 %v1737
      %1812 = vmatprep.subr.mxu0 0.0
      %1813 = vmatpush1.msra.mxu0 %v1759
      %1814 = vmatprep.subr.mxu0 0.0
      %1815 = vmatpush1.msra.mxu0 %v1761
      %1816 = vmatprep.subr.mxu0 0.0
      %1817 = vmatpush1.msra.mxu0 %v1763
      %1818 = vmatprep.subr.mxu0 0.0
      %1819 = vmatpush1.msra.mxu0 %v1765
      %1820 = vmatprep.subr.mxu0 0.0
      %1821 = vmatpush1.msra.mxu0 %v1767
      %1822 = vmatprep.subr.mxu0 0.0
      %1823 = vmatpush1.msra.mxu0 %v1769
      %1824 = vmatprep.subr.mxu0 0.0
      %1825 = vmatpush1.msra.mxu0 %v1771
      %1826 = vmatprep.subr.mxu0 0.0
      %1827 = vmatpush1.msra.mxu0 %v1773
      %1828 = vmatprep.subr.mxu0 0.0
      %1829 = vmatpush1.msra.mxu0 0.0
      %1830 = vmatprep.subr.mxu0 0.0
      %1831 = vmatpush1.msra.mxu0 0.0
      %1832 = vmatprep.subr.mxu0 0.0
      %1833 = vmatpush1.msra.mxu0 0.0
      %1834 = vmatprep.subr.mxu0 0.0
      %1835 = vmatpush1.msra.mxu0 0.0
      %1836 = vmatprep.subr.mxu0 0.0
      %1837 = vmatpush1.msra.mxu0 0.0
      %1838 = vmatprep.subr.mxu0 0.0
      %1839 = vmatpush1.msra.mxu0 0.0
      %1840 = vmatprep.subr.mxu0 0.0
      %1841 = vmatpush1.msra.mxu0 0.0
      %1842 = vmatprep.subr.mxu0 0.0
      %1843 = vmatpush1.msra.mxu0 0.0
      %1844 = vmatprep.subr.mxu0 0.0
      %1845 = vmatpush1.msra.mxu0 0.0
      %1846 = vmatprep.subr.mxu0 0.0
      %1847 = vmatpush1.msra.mxu0 0.0
      %1848 = vmatprep.subr.mxu0 0.0
      %1849 = vmatpush1.msra.mxu0 0.0
      %1850 = vmatprep.subr.mxu0 0.0
      %1851 = vmatpush1.msra.mxu0 0.0
      %1852 = vmatprep.subr.mxu0 0.0
      %1853 = vmatpush1.msra.mxu0 0.0
      %1854 = vmatprep.subr.mxu0 0.0
      %1855 = vmatpush1.msra.mxu0 0.0
      %1856 = vmatprep.mubr.f32.mxu0 %v1787
      %1857 = vmatmul.mubr.f32.gmra.mrb[0].mxu0 %v1738
      %v1858 = vpop.f32.mrb[0].mxu0
      %v1859 = vadd.f32 %v1779, %v1858
      %v1860 = vpop.f32.mrb[0].mxu0
      %1861 = vmatprep.mubr.f32.mxu0 %v1790
      %1862 = vmatmul.mubr.f32.gmra.mrb[0].mxu0 %v1740
      %v1863 = vpop.f32.mrb[0].mxu0
      %v1864 = vadd.f32 %v1784, %v1863
      %v1865 = vpop.f32.mrb[0].mxu0
      %1866 = vdwg.mxu0
      %v1867 = vmax.f32 %v1859, 0.0
      %v1868 = vmax.f32 %v1864, 0.0
      %v1869 = vmul.f32 %v1867, %v376
      %v1870 = vmul.f32 %v1868, %v376
      %v1871 = vld [vmem:[%s5] sm:$0xff]
      %v1872 = vld [vmem:[%s5 + $0x8] sm:$0xff]
      %v1873 = vld [vmem:[%s5 + $0x10] sm:$0xff]
      %v1874 = vld [vmem:[%s5 + $0x18] sm:$0xff]
      %v1875 = vld [vmem:[%s5 + $0x20] sm:$0xff]
      %v1876 = vld [vmem:[%s5 + $0x28] sm:$0xff]
      %v1877 = vld [vmem:[%s5 + $0x30] sm:$0xff]
      %v1878 = vld [vmem:[%s5 + $0x38] sm:$0xff]
      %v1879 = vld [vmem:[%s5 + $0x40] sm:$0xff]
      %v1880 = vld [vmem:[%s5 + $0x48] sm:$0xff]
      %v1881 = vld [vmem:[%s5 + $0x50] sm:$0xff]
      %v1882 = vld [vmem:[%s5 + $0x58] sm:$0xff]
      %v1883 = vld [vmem:[%s5 + $0x60] sm:$0xff]
      %v1884 = vld [vmem:[%s5 + $0x68] sm:$0xff]
      %v1885 = vld [vmem:[%s5 + $0x70] sm:$0xff]
      %v1886 = vld [vmem:[%s5 + $0x78] sm:$0xff]
      %v1887 = vld [vmem:[%s5 + $0x80] sm:$0xff]
      %v1888 = vld [vmem:[%s5 + $0x88] sm:$0xff]
      %v1889 = vld [vmem:[%s5 + $0x90] sm:$0xff]
      %v1890 = vld [vmem:[%s5 + $0x98] sm:$0xff]
      %v1891 = vld [vmem:[%s5 + $0xa0] sm:$0xff]
      %v1892 = vld [vmem:[%s5 + $0xa8] sm:$0xff]
      %v1893 = vld [vmem:[%s5 + $0xb0] sm:$0xff]
      %v1894 = vld [vmem:[%s5 + $0xb8] sm:$0xff]
      %v1895 = vld [vmem:[%s5 + $0xc0] sm:$0xff]
      %v1896 = vld [vmem:[%s5 + $0xc8] sm:$0xff]
      %v1897 = vld [vmem:[%s5 + $0xd0] sm:$0xff]
      %v1898 = vld [vmem:[%s5 + $0xd8] sm:$0xff]
      %v1899 = vld [vmem:[%s5 + $0xe0] sm:$0xff]
      %v1900 = vld [vmem:[%s5 + $0xe8] sm:$0xff]
      %v1901 = vld [vmem:[%s5 + $0xf0] sm:$0xff]
      %v1902 = vld [vmem:[%s5 + $0xf8] sm:$0xff]
      %v1903 = vld [vmem:[%s5 + $0x100] sm:$0xff]
      %v1904 = vld [vmem:[%s5 + $0x108] sm:$0xff]
      %v1905 = vld [vmem:[%s5 + $0x110] sm:$0xff]
      %v1906 = vld [vmem:[%s5 + $0x118] sm:$0xff]
      %v1907 = vld [vmem:[%s5 + $0x120] sm:$0xff]
      %v1908 = vld [vmem:[%s5 + $0x128] sm:$0xff]
      %v1909 = vld [vmem:[%s5 + $0x130] sm:$0xff]
      %v1910 = vld [vmem:[%s5 + $0x138] sm:$0xff]
      %v1911 = vld [vmem:[%s5 + $0x140] sm:$0xff]
      %v1912 = vld [vmem:[%s5 + $0x148] sm:$0xff]
      %v1913 = vld [vmem:[%s5 + $0x150] sm:$0xff]
      %v1914 = vld [vmem:[%s5 + $0x158] sm:$0xff]
      %v1915 = vld [vmem:[%s5 + $0x160] sm:$0xff]
      %v1916 = vld [vmem:[%s5 + $0x168] sm:$0xff]
      %v1917 = vld [vmem:[%s5 + $0x170] sm:$0xff]
      %v1918 = vld [vmem:[%s5 + $0x178] sm:$0xff]
      %1919 = vmatprep.subr.mxu0 %v1872
      %1920 = vmatpush1.msra.mxu0 %v1871
      %1921 = vmatprep.subr.mxu0 %v1875
      %1922 = vmatpush1.msra.mxu0 %v1874
      %1923 = vmatprep.subr.mxu0 %v1878
      %1924 = vmatpush1.msra.mxu0 %v1877
      %1925 = vmatprep.subr.mxu0 %v1881
      %1926 = vmatpush1.msra.mxu0 %v1880
      %1927 = vmatprep.subr.mxu0 %v1884
      %1928 = vmatpush1.msra.mxu0 %v1883
      %1929 = vmatprep.subr.mxu0 %v1887
      %1930 = vmatpush1.msra.mxu0 %v1886
      %1931 = vmatprep.subr.mxu0 %v1890
      %1932 = vmatpush1.msra.mxu0 %v1889
      %1933 = vmatprep.subr.mxu0 %v1893
      %1934 = vmatpush1.msra.mxu0 %v1892
      %1935 = vmatprep.subr.mxu0 %v1896
      %1936 = vmatpush1.msra.mxu0 %v1895
      %1937 = vmatprep.subr.mxu0 %v1899
      %1938 = vmatpush1.msra.mxu0 %v1898
      %1939 = vmatprep.subr.mxu0 %v1902
      %1940 = vmatpush1.msra.mxu0 %v1901
      %1941 = vmatprep.subr.mxu0 %v1905
      %1942 = vmatpush1.msra.mxu0 %v1904
      %1943 = vmatprep.subr.mxu0 %v1908
      %1944 = vmatpush1.msra.mxu0 %v1907
      %1945 = vmatprep.subr.mxu0 %v1911
      %1946 = vmatpush1.msra.mxu0 %v1910
      %1947 = vmatprep.subr.mxu0 %v1914
      %1948 = vmatpush1.msra.mxu0 %v1913
      %1949 = vmatprep.subr.mxu0 %v1917
      %1950 = vmatpush1.msra.mxu0 %v1916
      %1951 = vmatprep.subr.mxu0 0.0
      %1952 = vmatpush1.msra.mxu0 0.0
      %1953 = vmatprep.subr.mxu0 0.0
      %1954 = vmatpush1.msra.mxu0 0.0
      %1955 = vmatprep.subr.mxu0 0.0
      %1956 = vmatpush1.msra.mxu0 0.0
      %1957 = vmatprep.subr.mxu0 0.0
      %1958 = vmatpush1.msra.mxu0 0.0
      %1959 = vmatprep.subr.mxu0 0.0
      %1960 = vmatpush1.msra.mxu0 0.0
      %1961 = vmatprep.subr.mxu0 0.0
      %1962 = vmatpush1.msra.mxu0 0.0
      %1963 = vmatprep.subr.mxu0 0.0
      %1964 = vmatpush1.msra.mxu0 0.0
      %1965 = vmatprep.subr.mxu0 0.0
      %1966 = vmatpush1.msra.mxu0 0.0
      %1967 = vmatprep.subr.mxu0 0.0
      %1968 = vmatpush1.msra.mxu0 0.0
      %1969 = vmatprep.subr.mxu0 0.0
      %1970 = vmatpush1.msra.mxu0 0.0
      %1971 = vmatprep.subr.mxu0 0.0
      %1972 = vmatpush1.msra.mxu0 0.0
      %1973 = vmatprep.subr.mxu0 0.0
      %1974 = vmatpush1.msra.mxu0 0.0
      %1975 = vmatprep.subr.mxu0 0.0
      %1976 = vmatpush1.msra.mxu0 0.0
      %1977 = vmatprep.subr.mxu0 0.0
      %1978 = vmatpush1.msra.mxu0 0.0
      %1979 = vmatprep.subr.mxu0 0.0
      %1980 = vmatpush1.msra.mxu0 0.0
      %1981 = vmatprep.subr.mxu0 0.0
      %1982 = vmatpush1.msra.mxu0 0.0
      %1983 = vmatprep.mubr.f32.mxu0 0.0
      %1984 = vmatmul.mubr.f32.gmra.mrb[0].mxu0 %v1869
      %v1985 = vpop.f32.mrb[0].mxu0
      %v1986 = vadd.f32 0.0, %v1985
      %v1987 = vpop.f32.mrb[0].mxu0
      %v1988 = vadd.f32 0.0, %v1987
      %1989 = vmatprep.mubr.f32.mxu0 0.0
      %1990 = vmatmul.mubr.f32.gmra.mrb[0].mxu0 %v1870
      %v1991 = vpop.f32.mrb[0].mxu0
      %v1992 = vadd.f32 0.0, %v1991
      %v1993 = vpop.f32.mrb[0].mxu0
      %v1994 = vadd.f32 0.0, %v1993
      %1995 = vdwg.mxu0
      %1996 = vmatprep.subr.mxu0 0.0
      %1997 = vmatpush1.msra.mxu0 %v1873
      %1998 = vmatprep.subr.mxu0 0.0
      %1999 = vmatpush1.msra.mxu0 %v1876
      %2000 = vmatprep.subr.mxu0 0.0
      %2001 = vmatpush1.msra.mxu0 %v1879
      %2002 = vmatprep.subr.mxu0 0.0
      %2003 = vmatpush1.msra.mxu0 %v1882
      %2004 = vmatprep.subr.mxu0 0.0
      %2005 = vmatpush1.msra.mxu0 %v1885
      %2006 = vmatprep.subr.mxu0 0.0
      %2007 = vmatpush1.msra.mxu0 %v1888
      %2008 = vmatprep.subr.mxu0 0.0
      %2009 = vmatpush1.msra.mxu0 %v1891
      %2010 = vmatprep.subr.mxu0 0.0
      %2011 = vmatpush1.msra.mxu0 %v1894
      %2012 = vmatprep.subr.mxu0 0.0
      %2013 = vmatpush1.msra.mxu0 %v1897
      %2014 = vmatprep.subr.mxu0 0.0
      %2015 = vmatpush1.msra.mxu0 %v1900
      %2016 = vmatprep.subr.mxu0 0.0
      %2017 = vmatpush1.msra.mxu0 %v1903
      %2018 = vmatprep.subr.mxu0 0.0
      %2019 = vmatpush1.msra.mxu0 %v1906
      %2020 = vmatprep.subr.mxu0 0.0
      %2021 = vmatpush1.msra.mxu0 %v1909
      %2022 = vmatprep.subr.mxu0 0.0
      %2023 = vmatpush1.msra.mxu0 %v1912
      %2024 = vmatprep.subr.mxu0 0.0
      %2025 = vmatpush1.msra.mxu0 %v1915
      %2026 = vmatprep.subr.mxu0 0.0
      %2027 = vmatpush1.msra.mxu0 %v1918
      %2028 = vmatprep.subr.mxu0 0.0
      %2029 = vmatpush1.msra.mxu0 0.0
      %2030 = vmatprep.subr.mxu0 0.0
      %2031 = vmatpush1.msra.mxu0 0.0
      %2032 = vmatprep.subr.mxu0 0.0
      %2033 = vmatpush1.msra.mxu0 0.0
      %2034 = vmatprep.subr.mxu0 0.0
      %2035 = vmatpush1.msra.mxu0 0.0
      %2036 = vmatprep.subr.mxu0 0.0
      %2037 = vmatpush1.msra.mxu0 0.0
      %2038 = vmatprep.subr.mxu0 0.0
      %2039 = vmatpush1.msra.mxu0 0.0
      %2040 = vmatprep.subr.mxu0 0.0
      %2041 = vmatpush1.msra.mxu0 0.0
      %2042 = vmatprep.subr.mxu0 0.0
      %2043 = vmatpush1.msra.mxu0 0.0
      %2044 = vmatprep.subr.mxu0 0.0
      %2045 = vmatpush1.msra.mxu0 0.0
      %2046 = vmatprep.subr.mxu0 0.0
      %2047 = vmatpush1.msra.mxu0 0.0
      %2048 = vmatprep.subr.mxu0 0.0
      %2049 = vmatpush1.msra.mxu0 0.0
      %2050 = vmatprep.subr.mxu0 0.0
      %2051 = vmatpush1.msra.mxu0 0.0
      %2052 = vmatprep.subr.mxu0 0.0
      %2053 = vmatpush1.msra.mxu0 0.0
      %2054 = vmatprep.subr.mxu0 0.0
      %2055 = vmatpush1.msra.mxu0 0.0
      %2056 = vmatprep.subr.mxu0 0.0
      %2057 = vmatpush1.msra.mxu0 0.0
      %2058 = vmatprep.subr.mxu0 0.0
      %2059 = vmatpush1.msra.mxu0 0.0
      %2060 = vmatprep.mubr.f32.mxu0 0.0
      %2061 = vmatmul.mubr.f32.gmra.mrb[0].mxu0 %v1869
      %v2062 = vpop.f32.mrb[0].mxu0
      %v2063 = vadd.f32 0.0, %v2062
      %v2064 = vpop.f32.mrb[0].mxu0
      %2065 = vmatprep.mubr.f32.mxu0 0.0
      %2066 = vmatmul.mubr.f32.gmra.mrb[0].mxu0 %v1870
      %v2067 = vpop.f32.mrb[0].mxu0
      %v2068 = vadd.f32 0.0, %v2067
      %v2069 = vpop.f32.mrb[0].mxu0
      %2070 = vdwg.mxu0
      %v2071 = vld [vmem:[%s1 + $0xd0] sm:$0x3]
      %v2072 = vld [vmem:[%s1 + $0xd8] sm:$0x3]
      %2073 = vrot.lane.b32.xlu0 %v1986, 19
      %v2074 = vpop.permute.xlu0 %2073
      %2075 = vrot.lane.b32.xlu0 %v1992, 19
      %v2076 = vpop.permute.xlu0 %2075
      %2077 = vrot.lane.b32.xlu0 %v1988, 19
      %v2078 = vpop.permute.xlu0 %2077
      %2079 = vrot.lane.b32.xlu0 %v1994, 19
      %v2080 = vpop.permute.xlu0 %2079
      %2081 = vrot.lane.b32.xlu0 %v2063, 19
      %v2082 = vpop.permute.xlu0 %2081
      %2083 = vrot.lane.b32.xlu0 %v2068, 19
      %v2084 = vpop.permute.xlu0 %2083
      %v2085 = vsel %vm407, %v2078, %v2082
      %v2086 = vsel %vm407, %v2080, %v2084
      %v2087 = vsel %vm407, %v2074, %v2078
      %v2088 = vsel %vm407, %v2076, %v2080
      %v2089 = vsel %vm407, %v2082, %v2074
      %v2090 = vsel %vm407, %v2084, %v2076
      %2091 = vrot.lane.b32.xlu0 %v1986, 18
      %v2092 = vpop.permute.xlu0 %2091
      %2093 = vrot.lane.b32.xlu0 %v1992, 18
      %v2094 = vpop.permute.xlu0 %2093
      %2095 = vrot.lane.b32.xlu0 %v1988, 18
      %v2096 = vpop.permute.xlu0 %2095
      %2097 = vrot.lane.b32.xlu0 %v1994, 18
      %v2098 = vpop.permute.xlu0 %2097
      %2099 = vrot.lane.b32.xlu0 %v2063, 18
      %v2100 = vpop.permute.xlu0 %2099
      %2101 = vrot.lane.b32.xlu0 %v2068, 18
      %v2102 = vpop.permute.xlu0 %2101
      %v2103 = vsel %vm417, %v2096, %v2100
      %v2104 = vsel %vm417, %v2098, %v2102
      %v2105 = vsel %vm417, %v2092, %v2096
      %v2106 = vsel %vm417, %v2094, %v2098
      %v2107 = vsel %vm417, %v2100, %v2092
      %v2108 = vsel %vm417, %v2102, %v2094
      %2109 = vrot.lane.b32.xlu0 %v1986, 17
      %v2110 = vpop.permute.xlu0 %2109
      %2111 = vrot.lane.b32.xlu0 %v1992, 17
      %v2112 = vpop.permute.xlu0 %2111
      %2113 = vrot.lane.b32.xlu0 %v1988, 17
      %v2114 = vpop.permute.xlu0 %2113
      %2115 = vrot.lane.b32.xlu0 %v1994, 17
      %v2116 = vpop.permute.xlu0 %2115
      %2117 = vrot.lane.b32.xlu0 %v2063, 17
      %v2118 = vpop.permute.xlu0 %2117
      %2119 = vrot.lane.b32.xlu0 %v2068, 17
      %v2120 = vpop.permute.xlu0 %2119
      %v2121 = vsel %vm427, %v2114, %v2118
      %v2122 = vsel %vm427, %v2116, %v2120
      %v2123 = vsel %vm427, %v2110, %v2114
      %v2124 = vsel %vm427, %v2112, %v2116
      %v2125 = vsel %vm427, %v2118, %v2110
      %v2126 = vsel %vm427, %v2120, %v2112
      %2127 = vrot.lane.b32.xlu0 %v1986, 1
      %v2128 = vpop.permute.xlu0 %2127
      %2129 = vrot.lane.b32.xlu0 %v1992, 1
      %v2130 = vpop.permute.xlu0 %2129
      %2131 = vrot.lane.b32.xlu0 %v1988, 1
      %v2132 = vpop.permute.xlu0 %2131
      %2133 = vrot.lane.b32.xlu0 %v1994, 1
      %v2134 = vpop.permute.xlu0 %2133
      %2135 = vrot.lane.b32.xlu0 %v2063, 1
      %v2136 = vpop.permute.xlu0 %2135
      %2137 = vrot.lane.b32.xlu0 %v2068, 1
      %v2138 = vpop.permute.xlu0 %2137
      %v2139 = vsel %vm437, %v2132, %v2136
      %v2140 = vsel %vm437, %v2134, %v2138
      %v2141 = vsel %vm437, %v2128, %v2132
      %v2142 = vsel %vm437, %v2130, %v2134
      %v2143 = vsel %vm437, %v2136, %v2128
      %v2144 = vsel %vm437, %v2138, %v2130
      %2145 = vrot.lane.b32.xlu0 %v1986, 127
      %v2146 = vpop.permute.xlu0 %2145
      %2147 = vrot.lane.b32.xlu0 %v1992, 127
      %v2148 = vpop.permute.xlu0 %2147
      %2149 = vrot.lane.b32.xlu0 %v1988, 127
      %v2150 = vpop.permute.xlu0 %2149
      %2151 = vrot.lane.b32.xlu0 %v1994, 127
      %v2152 = vpop.permute.xlu0 %2151
      %2153 = vrot.lane.b32.xlu0 %v2063, 127
      %v2154 = vpop.permute.xlu0 %2153
      %2155 = vrot.lane.b32.xlu0 %v2068, 127
      %v2156 = vpop.permute.xlu0 %2155
      %v2157 = vsel %vm447, %v2150, %v2154
      %v2158 = vsel %vm447, %v2152, %v2156
      %v2159 = vsel %vm447, %v2146, %v2150
      %v2160 = vsel %vm447, %v2148, %v2152
      %v2161 = vsel %vm447, %v2154, %v2146
      %v2162 = vsel %vm447, %v2156, %v2148
      %2163 = vrot.lane.b32.xlu0 %v1986, 111
      %v2164 = vpop.permute.xlu0 %2163
      %2165 = vrot.lane.b32.xlu0 %v1992, 111
      %v2166 = vpop.permute.xlu0 %2165
      %2167 = vrot.lane.b32.xlu0 %v1988, 111
      %v2168 = vpop.permute.xlu0 %2167
      %2169 = vrot.lane.b32.xlu0 %v1994, 111
      %v2170 = vpop.permute.xlu0 %2169
      %2171 = vrot.lane.b32.xlu0 %v2063, 111
      %v2172 = vpop.permute.xlu0 %2171
      %2173 = vrot.lane.b32.xlu0 %v2068, 111
      %v2174 = vpop.permute.xlu0 %2173
      %v2175 = vsel %vm457, %v2168, %v2172
      %v2176 = vsel %vm457, %v2170, %v2174
      %v2177 = vsel %vm457, %v2164, %v2168
      %v2178 = vsel %vm457, %v2166, %v2170
      %v2179 = vsel %vm457, %v2172, %v2164
      %v2180 = vsel %vm457, %v2174, %v2166
      %2181 = vrot.lane.b32.xlu0 %v1986, 110
      %v2182 = vpop.permute.xlu0 %2181
      %2183 = vrot.lane.b32.xlu0 %v1992, 110
      %v2184 = vpop.permute.xlu0 %2183
      %2185 = vrot.lane.b32.xlu0 %v1988, 110
      %v2186 = vpop.permute.xlu0 %2185
      %2187 = vrot.lane.b32.xlu0 %v1994, 110
      %v2188 = vpop.permute.xlu0 %2187
      %2189 = vrot.lane.b32.xlu0 %v2063, 110
      %v2190 = vpop.permute.xlu0 %2189
      %2191 = vrot.lane.b32.xlu0 %v2068, 110
      %v2192 = vpop.permute.xlu0 %2191
      %v2193 = vsel %vm467, %v2186, %v2190
      %v2194 = vsel %vm467, %v2188, %v2192
      %v2195 = vsel %vm467, %v2182, %v2186
      %v2196 = vsel %vm467, %v2184, %v2188
      %v2197 = vsel %vm467, %v2190, %v2182
      %v2198 = vsel %vm467, %v2192, %v2184
      %2199 = vrot.lane.b32.xlu0 %v1986, 109
      %v2200 = vpop.permute.xlu0 %2199
      %2201 = vrot.lane.b32.xlu0 %v1992, 109
      %v2202 = vpop.permute.xlu0 %2201
      %2203 = vrot.lane.b32.xlu0 %v1988, 109
      %v2204 = vpop.permute.xlu0 %2203
      %2205 = vrot.lane.b32.xlu0 %v1994, 109
      %v2206 = vpop.permute.xlu0 %2205
      %2207 = vrot.lane.b32.xlu0 %v2063, 109
      %v2208 = vpop.permute.xlu0 %2207
      %2209 = vrot.lane.b32.xlu0 %v2068, 109
      %v2210 = vpop.permute.xlu0 %2209
      %v2211 = vsel %vm477, %v2204, %v2208
      %v2212 = vsel %vm477, %v2206, %v2210
      %v2213 = vsel %vm477, %v2200, %v2204
      %v2214 = vsel %vm477, %v2202, %v2206
      %v2215 = vsel %vm477, %v2208, %v2200
      %v2216 = vsel %vm477, %v2210, %v2202
      %v2217 = vld [vmem:[%s1 + $0x1b0] sm:$0x3]
      %2219 = vset.pattern.permute.xlu0 0
      %2220 = vperm.xlu0 %2219, %v2217
      %v2221 = vpop.permute.xlu0 %2220
      %v2224 = vsel %vm974, %v2072, 0
      %2226 = vmatprep.subr.mxu0 %v2087
      %2227 = vmatpush1.msra.mxu0 %v2089
      %2228 = vmatprep.subr.mxu0 %v2088
      %2229 = vmatpush1.msra.mxu0 %v2090
      %2230 = vmatprep.subr.mxu0 %v2105
      %2231 = vmatpush1.msra.mxu0 %v2107
      %2232 = vmatprep.subr.mxu0 %v2106
      %2233 = vmatpush1.msra.mxu0 %v2108
      %2234 = vmatprep.subr.mxu0 %v2123
      %2235 = vmatpush1.msra.mxu0 %v2125
      %2236 = vmatprep.subr.mxu0 %v2124
      %2237 = vmatpush1.msra.mxu0 %v2126
      %2238 = vmatprep.subr.mxu0 %v2141
      %2239 = vmatpush1.msra.mxu0 %v2143
      %2240 = vmatprep.subr.mxu0 %v2142
      %2241 = vmatpush1.msra.mxu0 %v2144
      %2242 = vmatprep.subr.mxu0 %v1988
      %2243 = vmatpush1.msra.mxu0 %v1986
      %2244 = vmatprep.subr.mxu0 %v1994
      %2245 = vmatpush1.msra.mxu0 %v1992
      %2246 = vmatprep.subr.mxu0 %v2157
      %2247 = vmatpush1.msra.mxu0 %v2159
      %2248 = vmatprep.subr.mxu0 %v2158
      %2249 = vmatpush1.msra.mxu0 %v2160
      %2250 = vmatprep.subr.mxu0 %v2175
      %2251 = vmatpush1.msra.mxu0 %v2177
      %2252 = vmatprep.subr.mxu0 %v2176
      %2253 = vmatpush1.msra.mxu0 %v2178
      %2254 = vmatprep.subr.mxu0 %v2193
      %2255 = vmatpush1.msra.mxu0 %v2195
      %2256 = vmatprep.subr.mxu0 %v2194
      %2257 = vmatpush1.msra.mxu0 %v2196
      %2258 = vmatprep.subr.mxu0 %v2211
      %2259 = vmatpush1.msra.mxu0 %v2213
      %2260 = vmatprep.subr.mxu0 %v2212
      %2261 = vmatpush1.msra.mxu0 %v2214
      %2262 = vmatprep.subr.mxu0 0.0
      %2263 = vmatpush1.msra.mxu0 0.0
      %2264 = vmatprep.subr.mxu0 0.0
      %2265 = vmatpush1.msra.mxu0 0.0
      %2266 = vmatprep.subr.mxu0 0.0
      %2267 = vmatpush1.msra.mxu0 0.0
      %2268 = vmatprep.subr.mxu0 0.0
      %2269 = vmatpush1.msra.mxu0 0.0
      %2270 = vmatprep.subr.mxu0 0.0
      %2271 = vmatpush1.msra.mxu0 0.0
      %2272 = vmatprep.subr.mxu0 0.0
      %2273 = vmatpush1.msra.mxu0 0.0
      %2274 = vmatprep.subr.mxu0 0.0
      %2275 = vmatpush1.msra.mxu0 0.0
      %2276 = vmatprep.subr.mxu0 0.0
      %2277 = vmatpush1.msra.mxu0 0.0
      %2278 = vmatprep.subr.mxu0 0.0
      %2279 = vmatpush1.msra.mxu0 0.0
      %2280 = vmatprep.subr.mxu0 0.0
      %2281 = vmatpush1.msra.mxu0 0.0
      %2282 = vmatprep.subr.mxu0 0.0
      %2283 = vmatpush1.msra.mxu0 0.0
      %2284 = vmatprep.subr.mxu0 0.0
      %2285 = vmatpush1.msra.mxu0 0.0
      %2286 = vmatprep.subr.mxu0 0.0
      %2287 = vmatpush1.msra.mxu0 0.0
      %2288 = vmatprep.subr.mxu0 0.0
      %2289 = vmatpush1.msra.mxu0 0.0
      %2290 = vmatprep.mubr.f32.mxu0 %v2224
      %2291 = vmatmul.mubr.f32.gmra.mrb[0].mxu0 %v2071
      %v2292 = vpop.f32.mrb[0].mxu0
      %v2293 = vadd.f32 %v2221, %v2292
      %v2294 = vpop.f32.mrb[0].mxu0
      %v2295 = vadd.f32 %v2221, %v2294
      %2296 = vdwg.mxu0
      %2297 = vmatprep.subr.mxu0 0.0
      %2298 = vmatpush1.msra.mxu0 %v2085
      %2299 = vmatprep.subr.mxu0 0.0
      %2300 = vmatpush1.msra.mxu0 %v2086
      %2301 = vmatprep.subr.mxu0 0.0
      %2302 = vmatpush1.msra.mxu0 %v2103
      %2303 = vmatprep.subr.mxu0 0.0
      %2304 = vmatpush1.msra.mxu0 %v2104
      %2305 = vmatprep.subr.mxu0 0.0
      %2306 = vmatpush1.msra.mxu0 %v2121
      %2307 = vmatprep.subr.mxu0 0.0
      %2308 = vmatpush1.msra.mxu0 %v2122
      %2309 = vmatprep.subr.mxu0 0.0
      %2310 = vmatpush1.msra.mxu0 %v2139
      %2311 = vmatprep.subr.mxu0 0.0
      %2312 = vmatpush1.msra.mxu0 %v2140
      %2313 = vmatprep.subr.mxu0 0.0
      %2314 = vmatpush1.msra.mxu0 %v2063
      %2315 = vmatprep.subr.mxu0 0.0
      %2316 = vmatpush1.msra.mxu0 %v2068
      %2317 = vmatprep.subr.mxu0 0.0
      %2318 = vmatpush1.msra.mxu0 %v2161
      %2319 = vmatprep.subr.mxu0 0.0
      %2320 = vmatpush1.msra.mxu0 %v2162
      %2321 = vmatprep.subr.mxu0 0.0
      %2322 = vmatpush1.msra.mxu0 %v2179
      %2323 = vmatprep.subr.mxu0 0.0
      %2324 = vmatpush1.msra.mxu0 %v2180
      %2325 = vmatprep.subr.mxu0 0.0
      %2326 = vmatpush1.msra.mxu0 %v2197
      %2327 = vmatprep.subr.mxu0 0.0
      %2328 = vmatpush1.msra.mxu0 %v2198
      %2329 = vmatprep.subr.mxu0 0.0
      %2330 = vmatpush1.msra.mxu0 %v2215
      %2331 = vmatprep.subr.mxu0 0.0
      %2332 = vmatpush1.msra.mxu0 %v2216
      %2333 = vmatprep.subr.mxu0 0.0
      %2334 = vmatpush1.msra.mxu0 0.0
      %2335 = vmatprep.subr.mxu0 0.0
      %2336 = vmatpush1.msra.mxu0 0.0
      %2337 = vmatprep.subr.mxu0 0.0
      %2338 = vmatpush1.msra.mxu0 0.0
      %2339 = vmatprep.subr.mxu0 0.0
      %2340 = vmatpush1.msra.mxu0 0.0
      %2341 = vmatprep.subr.mxu0 0.0
      %2342 = vmatpush1.msra.mxu0 0.0
      %2343 = vmatprep.subr.mxu0 0.0
      %2344 = vmatpush1.msra.mxu0 0.0
      %2345 = vmatprep.subr.mxu0 0.0
      %2346 = vmatpush1.msra.mxu0 0.0
      %2347 = vmatprep.subr.mxu0 0.0
      %2348 = vmatpush1.msra.mxu0 0.0
      %2349 = vmatprep.subr.mxu0 0.0
      %2350 = vmatpush1.msra.mxu0 0.0
      %2351 = vmatprep.subr.mxu0 0.0
      %2352 = vmatpush1.msra.mxu0 0.0
      %2353 = vmatprep.subr.mxu0 0.0
      %2354 = vmatpush1.msra.mxu0 0.0
      %2355 = vmatprep.subr.mxu0 0.0
      %2356 = vmatpush1.msra.mxu0 0.0
      %2357 = vmatprep.subr.mxu0 0.0
      %2358 = vmatpush1.msra.mxu0 0.0
      %2359 = vmatprep.subr.mxu0 0.0
      %2360 = vmatpush1.msra.mxu0 0.0
      %2361 = vmatprep.mubr.f32.mxu0 %v2224
      %2362 = vmatmul.mubr.f32.gmra.mrb[0].mxu0 %v2071
      %v2363 = vpop.f32.mrb[0].mxu0
      %v2364 = vadd.f32 %v2221, %v2363
      %v2365 = vpop.f32.mrb[0].mxu0
      %2366 = vdwg.mxu0
      %v2367 = vtanh.pop %v2293
      %v2368 = vtanh.pop %v2295
      %v2369 = vtanh.pop %v2364
      %v2372 = vunpack.c.l.s4 1983009808
      %v2373 = vunpack.c.0.s8 %v2372
      %v2374 = vlaneseq
      %v2375 = vshrl.u32 %v2374, 7
      %v2376 = vsub.s32 %v2373, %v2375
      %v2377 = vrot.slane %v2367, %v2376
      %2378 = vrot.lane.b32.xlu0 %v2377, 109
      %v2379 = vpop.permute.xlu0 %2378
      %vm2381 = vcmask 123904
      %2382 = vst.msk [vmem:[%s251] sm:$0x3] %vm2381, %v2379
      %2383 = vrot.lane.b32.xlu0 %v2377, 107
      %v2384 = vpop.permute.xlu0 %2383
      %vm2386 = vcmask 255104
      %2387 = vst.msk [vmem:[%s251] sm:$0x3] %vm2386, %v2384
      %2388 = vrot.lane.b32.xlu0 %v2377, 105
      %v2389 = vpop.permute.xlu0 %2388
      %vm2391 = vcmask 386304
      %2392 = vst.msk [vmem:[%s251] sm:$0x3] %vm2391, %v2389
      %2393 = vrot.lane.b32.xlu0 %v2377, 103
      %v2394 = vpop.permute.xlu0 %2393
      %vm2396 = vcmask 517504
      %2397 = vst.msk [vmem:[%s251] sm:$0x3] %vm2396, %v2394
      %2398 = vrot.lane.b32.xlu0 %v2377, 101
      %v2399 = vpop.permute.xlu0 %2398
      %vm2401 = vcmask 648704
      %2402 = vst.msk [vmem:[%s251] sm:$0x3] %vm2401, %v2399
      %2403 = vrot.lane.b32.xlu0 %v2377, 99
      %v2404 = vpop.permute.xlu0 %2403
      %vm2406 = vcmask 779904
      %2407 = vst.msk [vmem:[%s251] sm:$0x3] %vm2406, %v2404
      %v2409 = vcombine.low %v2367, %v2368
      %v2411 = vunpack.c.l.s4 1983009808
      %v2412 = vunpack.c.0.s8 %v2411
      %v2413 = vlaneseq
      %v2414 = vshrl.u32 %v2413, 7
      %v2415 = vsub.s32 %v2412, %v2414
      %v2416 = vrot.slane %v2409, %v2415
      %2417 = vrot.lane.b32.xlu0 %v2416, 97
      %v2418 = vpop.permute.xlu0 %2417
      %v2419 = vrot.slane %v2418, 2
      %vm2420 = vcmask 793600
      %v2421 = vsel %vm2420, %v2418, %v2419
      %vm2423 = vcmask 911104
      %2424 = vst.msk [vmem:[%s251] sm:$0x3] %vm2423, %v2421
      %v2426 = vunpack.c.l.s4 1983009808
      %v2427 = vunpack.c.0.s8 %v2426
      %v2428 = vlaneseq
      %v2429 = vshrl.u32 %v2428, 7
      %v2430 = vsub.s32 %v2427, %v2429
      %v2431 = vrot.slane %v2368, %v2430
      %2432 = vrot.lane.b32.xlu0 %v2431, 95
      %v2433 = vpop.permute.xlu0 %2432
      %vm2435 = vcmask 1042304
      %2436 = vst.msk [vmem:[%s251] sm:$0x3] %vm2435, %v2433
      %2437 = vrot.lane.b32.xlu0 %v2431, 93
      %v2438 = vpop.permute.xlu0 %2437
      %2440 = vst.msk [vmem:[%s251 + $0x2] sm:$0x3] %vm2381, %v2438
      %2441 = vrot.lane.b32.xlu0 %v2431, 91
      %v2442 = vpop.permute.xlu0 %2441
      %2444 = vst.msk [vmem:[%s251 + $0x2] sm:$0x3] %vm2386, %v2442
      %2445 = vrot.lane.b32.xlu0 %v2431, 89
      %v2446 = vpop.permute.xlu0 %2445
      %2448 = vst.msk [vmem:[%s251 + $0x2] sm:$0x3] %vm2391, %v2446
      %2449 = vrot.lane.b32.xlu0 %v2431, 87
      %v2450 = vpop.permute.xlu0 %2449
      %2452 = vst.msk [vmem:[%s251 + $0x2] sm:$0x3] %vm2396, %v2450
      %2453 = vrot.lane.b32.xlu0 %v2431, 85
      %v2454 = vpop.permute.xlu0 %2453
      %2456 = vst.msk [vmem:[%s251 + $0x2] sm:$0x3] %vm2401, %v2454
      %v2458 = vcombine.low %v2368, %v2369
      %v2460 = vunpack.c.l.s4 1983009808
      %v2461 = vunpack.c.0.s8 %v2460
      %v2462 = vlaneseq
      %v2463 = vshrl.u32 %v2462, 7
      %v2464 = vsub.s32 %v2461, %v2463
      %v2465 = vrot.slane %v2458, %v2464
      %2466 = vrot.lane.b32.xlu0 %v2465, 83
      %v2467 = vpop.permute.xlu0 %2466
      %v2468 = vrot.slane %v2467, 2
      %vm2469 = vcmask 678912
      %v2470 = vsel %vm2469, %v2467, %v2468
      %2472 = vst.msk [vmem:[%s251 + $0x2] sm:$0x3] %vm2406, %v2470
      %v2474 = vunpack.c.l.s4 1983009808
      %v2475 = vunpack.c.0.s8 %v2474
      %v2476 = vlaneseq
      %v2477 = vshrl.u32 %v2476, 7
      %v2478 = vsub.s32 %v2475, %v2477
      %v2479 = vrot.slane %v2369, %v2478
      %2480 = vrot.lane.b32.xlu0 %v2479, 81
      %v2481 = vpop.permute.xlu0 %2480
      %2483 = vst.msk [vmem:[%s251 + $0x2] sm:$0x3] %vm2423, %v2481
      %2484 = vrot.lane.b32.xlu0 %v2479, 79
      %v2485 = vpop.permute.xlu0 %2484
      %2487 = vst.msk [vmem:[%s251 + $0x2] sm:$0x3] %vm2435, %v2485
      %p2488 = scmp.lt.s32.totalorder %s17, 1
      %s2489 = scalar_select %p2488, %s17, 1
      %s2490 = smul.addr %s2489, 2
      %s2491 = smul.addr %s2490, 2
      %s2492 = scalar_lea.vmem %s6, %s2491
      // Predicated region
      $region45: #{forward.1} parent=43 // pred_check
        %p2493 = pneg %p166
      $region46: #{forward.1} parent=43 // pred_check_branch
        %2495 = sbr.rel (%p2493) target = $region48
      $region47: #{forward.1} parent=43 // pred_region
        _
      $region48: #{forward.1} parent=43 // pred_fallthru
        _
    $region44: #{forward.1} parent=5 // pred_fallthru
      _
    %p2496 = scmp.le.s32.totalorder 2, %s12
    // Predicated region
    $region49: #{forward.1} parent=5 // pred_check
      %p2497 = pneg %p2496
    $region50: #{forward.1} parent=5 // pred_check_branch
      %2499 = sbr.rel (%p2497) target = $region52
    $region51: #{forward.1} parent=5 // pred_region
      %s2500 = ssub.s32 %s12, 2
      // Predicated region
      $region53: #{forward.1} parent=51 // pred_check
        %p2501 = pneg %p172
      $region54: #{forward.1} parent=51 // pred_check_branch
        %2503 = sbr.rel (%p2501) target = $region56
      $region55: #{forward.1} parent=51 // pred_region
        %p2504 = scmp.lt.s32.totalorder %s18, 1
        %s2505 = scalar_select %p2504, %s18, 1
        %s2506 = smul.addr %s2505, 2
        %s2507 = smul.addr %s2506, 2
        %s2508 = scalar_lea.vmem %s6, %s2507
      $region56: #{forward.1} parent=51 // pred_fallthru
        _
    $region52: #{forward.1} parent=5 // pred_fallthru
      _
  $region6: #{forward.1} parent=0 // loop_footer
    %s16 = sadd.s32 1, %s12
  $region7: #{forward.1} parent=0 // loop_footer_branch
    %11 = sbr.rel target = $region3
  $region8: #{forward.1} parent=0 // loop_exit
    _

</llo_original>
